<compile_context>
chip_gen: v7x
topology: tpu7x:2x2x1
jax: 0.10.0
libtpu: 0.0.40
codegen_flags: <defaults>
</compile_context>

<pallas_src>
import jax
import jax.numpy as jnp
import numpy as np
from jax.experimental import pallas as pl
from jax.experimental.pallas import tpu as pltpu

NEG_SLOPE = 0.1
BN_EPS = 1e-5


# ------------------------------ Pallas kernel --------------------------------

def _make_fused_kernel(batch, stages, fc_cfg):
    """Build the fully fused forward kernel (all shapes/config are static)."""
    n_fc_rows = fc_cfg["h"]
    fc_rs = fc_cfg["rs"]

    def kernel(x_ref, w1_ref, s1_ref, w2_ref, s2_ref, w3_ref, s3_ref,
               wfc_ref, bfc_ref, o_ref):
        w_refs = (w1_ref, w2_ref, w3_ref)
        # Hoist all weight loads out of the (unrolled) batch loop.
        s_rows = (s1_ref[...], s2_ref[...], s3_ref[...])
        w_mats = tuple(tuple(w_refs[si][ky] for ky in range(3))
                       for si in range(3))
        wfc_mats = tuple(wfc_ref[h] for h in range(n_fc_rows))
        bfc = bfc_ref[...]

        for b in range(batch):                       # static unroll over batch
            a = x_ref[b]                             # per-sample (rows, lanes)
            for si, st in enumerate(stages):
                rs, ro, cout = st["rs"], st["ro"], st["cout"]
                # 3x3 "valid" conv == 3 accumulating MXU matmuls against
                # banded, BN-scale-folded weight matrices (kx, cin folded in).
                y = jnp.dot(a[0:ro, :], w_mats[si][0],
                            preferred_element_type=jnp.float32)
                y = y + jnp.dot(a[rs:rs + ro, :], w_mats[si][1],
                                preferred_element_type=jnp.float32)
                y = y + jnp.dot(a[2 * rs:2 * rs + ro, :], w_mats[si][2],
                                preferred_element_type=jnp.float32)
                y = y + s_rows[si]                   # folded BN shift + bias
                y = jnp.where(y >= 0.0, y, NEG_SLOPE * y)   # LeakyReLU(0.1)
                if st["pool"]:
                    # MaxPool2d(2,2), floor mode: two shifted-slice maxima.
                    # Valid results land at strided row/lane positions that
                    # the next banded matrix / row-stride bookkeeping skips.
                    v = jnp.maximum(y[0:ro - rs, :], y[rs:ro, :])
                    ln = v.shape[1]
                    a = jnp.maximum(v[:, 0:ln - cout], v[:, cout:ln])
                else:
                    a = y
            # Flatten (NCHW permutation folded into wfc) + Linear.
            ob = bfc
            for h in range(n_fc_rows):
                row = a[h * fc_rs:h * fc_rs + 1, :]
                ob = ob + jnp.dot(row, wfc_mats[h],
                                  preferred_element_type=jnp.float32)
            o_ref[pl.ds(b, 1), :] = ob.astype(o_ref.dtype)

    return kernel


def _full_spec(shape):
    nd = len(shape)
    return pl.BlockSpec(shape, lambda i, _nd=nd: (0,) * _nd)


def cnn_forward(x_nchw, prep):
    """Full fused forward pass, matching CNN.forward (eval-mode BatchNorm)."""
    B, Cin, H, W = x_nchw.shape
    # Only wrapper-side layout op: NCHW -> per-sample (H, W*Cin) tiles.
    x2d = jnp.transpose(x_nchw, (0, 2, 3, 1)).reshape(B, H, W * Cin)
    x2d = x2d.astype(jnp.float32)

    operands = (x2d, prep["w1"], prep["s1"], prep["w2"], prep["s2"],
                prep["w3"], prep["s3"], prep["wfc"], prep["bfc"])
    out_features = prep["bfc"].shape[1]

    kernel = _make_fused_kernel(B, prep["stages"], prep["fc"])
    # TODO(synk): at large batch, tile B with a "parallel" grid axis (2 TCs on
    # v7x) instead of the single full-extent block used here (B=2 is tiny).
    return pl.pallas_call(
        kernel,
        out_shape=jax.ShapeDtypeStruct((B, out_features), jnp.float32),
        grid=(1,),
        in_specs=[_full_spec(op.shape) for op in operands],
        out_specs=_full_spec((B, out_features)),
        compiler_params=pltpu.CompilerParams(
            dimension_semantics=("arbitrary",)),
    )(*operands)


# -------------------- one-time parameter preparation -------------------------

def prepare_params(params, in_h, in_w):
    """Fold BN + conv bias + im2col + flatten-permutation into weight matrices.

    Pure layout plumbing, done once outside the per-call path.  For each conv
    layer it builds a (3, L_in, Wo*Cout) banded matrix mapping the physical
    (rows x lanes) activation layout (including the strided "inflated" layout
    left behind by the fused in-kernel maxpool) to a compact conv output, with
    the eval-mode BN scale folded into the columns; plus a lane-tiled shift
    row folding BN shift + conv bias.  The FC weight is permuted so it
    consumes the kernel layout directly (PyTorch flattens NCHW).
    """
    p = {k: np.asarray(v, dtype=np.float32) for k, v in params.items()}
    prep = {}
    stages = []
    h_log, w_log = in_h, in_w            # logical spatial dims
    c = p["conv1_w"].shape[1]            # current channel count
    rs, lw = 1, c                        # physical row stride / lane stride
    n_lanes = in_w * c                   # physical lane count

    for i in (1, 2, 3):
        cw = p[f"conv{i}_w"]             # (Cout, Cin, 3, 3)
        cout, cin = cw.shape[0], cw.shape[1]
        assert cin == c
        scale = p[f"bn{i}_gamma"] / np.sqrt(p[f"bn{i}_var"] + BN_EPS)
        shift = p[f"bn{i}_beta"] + scale * (p[f"conv{i}_b"] - p[f"bn{i}_mean"])
        ho, wo = h_log - 2, w_log - 2
        ro = rs * (ho - 1) + 1           # physical output rows
        mat = np.zeros((3, n_lanes, wo * cout), np.float32)
        wt = np.transpose(cw, (2, 3, 1, 0))        # (ky, kx, cin, cout)
        for ky in range(3):
            for kx in range(3):
                blk = wt[ky, kx] * scale[None, :]  # BN scale folded in
                for woi in range(wo):
                    l0 = (woi + kx) * lw
                    mat[ky, l0:l0 + cin, woi * cout:(woi + 1) * cout] = blk
        prep[f"w{i}"] = jnp.asarray(mat)
        prep[f"s{i}"] = jnp.asarray(np.tile(shift, wo)[None, :])
        stages.append(dict(rs=rs, ro=ro, cout=cout, pool=(i < 3)))
        # Post-conv physical layout: row stride rs, compact lanes.
        h_log, w_log, c = ho, wo, cout
        n_lanes, lw = wo * cout, cout
        if i < 3:                        # fused MaxPool2d(2,2), floor mode
            h_log, w_log = ho // 2, wo // 2
            n_lanes = n_lanes - c
            rs, lw = rs * 2, 2 * c

    fc_w = p["fc_w"]                     # (Out, C*H*W), PyTorch NCHW flatten
    out_f = fc_w.shape[0]
    assert fc_w.shape[1] == h_log * w_log * c
    mfc = np.zeros((h_log, w_log * c, out_f), np.float32)
    for hh in range(h_log):
        for ww in range(w_log):
            for cc in range(c):
                mfc[hh, ww * c + cc, :] = fc_w[:, cc * h_log * w_log
                                               + hh * w_log + ww]
    prep["wfc"] = jnp.asarray(mfc)
    prep["bfc"] = jnp.asarray(p["fc_b"][None, :])
    prep["stages"] = tuple(stages)
    prep["fc"] = dict(rs=rs, h=h_log)
    return prep


# --------------------------- pure-JAX reference -------------------------------

def cnn_forward_ref(x_nchw, params):
    hp = jax.lax.Precision.HIGHEST
    x = x_nchw.astype(jnp.float32)
    for i in (1, 2, 3):
        w = params[f"conv{i}_w"]
        b = params[f"conv{i}_b"]
        x = jax.lax.conv_general_dilated(
            x, w, window_strides=(1, 1), padding="VALID",
            dimension_numbers=("NCHW", "OIHW", "NCHW"), precision=hp)
        x = x + b[None, :, None, None]
        gamma = params[f"bn{i}_gamma"][None, :, None, None]
        beta = params[f"bn{i}_beta"][None, :, None, None]
        mean = params[f"bn{i}_mean"][None, :, None, None]
        var = params[f"bn{i}_var"][None, :, None, None]
        x = gamma * (x - mean) / jnp.sqrt(var + BN_EPS) + beta
        x = jnp.where(x >= 0.0, x, NEG_SLOPE * x)
        if i < 3:
            x = jax.lax.reduce_window(
                x, jnp.array(-jnp.inf, dtype=x.dtype), jax.lax.max,
                (1, 1, 2, 2), (1, 1, 2, 2), "VALID")
    B = x.shape[0]
    x = x.reshape(B, -1)
    return jnp.dot(x, params["fc_w"].T, precision=hp) + params["fc_b"]


# ------------------------------- params init ----------------------------------

def init_params(key, hidden_layer=4, out_features=10):
    c1 = 2 ** hidden_layer          # 16
    c2 = c1 // 2                    # 8
    c3 = c1 // 4                    # 4
    ks = jax.random.split(key, 20)

    def norm(k, shape, s=0.1):
        return s * jax.random.normal(k, shape, dtype=jnp.float32)

    params = {
        "conv1_w": norm(ks[0], (c1, 1, 3, 3)),
        "conv1_b": norm(ks[1], (c1,)),
        "bn1_gamma": 1.0 + norm(ks[2], (c1,)),
        "bn1_beta": norm(ks[3], (c1,)),
        "bn1_mean": norm(ks[4], (c1,)),
        "bn1_var": 1.0 + jnp.abs(norm(ks[5], (c1,))),

        "conv2_w": norm(ks[6], (c2, c1, 3, 3)),
        "conv2_b": norm(ks[7], (c2,)),
        "bn2_gamma": 1.0 + norm(ks[8], (c2,)),
        "bn2_beta": norm(ks[9], (c2,)),
        "bn2_mean": norm(ks[10], (c2,)),
        "bn2_var": 1.0 + jnp.abs(norm(ks[11], (c2,))),

        "conv3_w": norm(ks[12], (c3, c2, 3, 3)),
        "conv3_b": norm(ks[13], (c3,)),
        "bn3_gamma": 1.0 + norm(ks[14], (c3,)),
        "bn3_beta": norm(ks[15], (c3,)),
        "bn3_mean": norm(ks[16], (c3,)),
        "bn3_var": 1.0 + jnp.abs(norm(ks[17], (c3,))),

        "fc_w": norm(ks[18], (out_features, c3 * 3 * 3)),
        "fc_b": norm(ks[19], (out_features,)),
    }
    return params


# ----------------------------------- main --------------------------------------

if __name__ == "__main__":
    key = jax.random.PRNGKey(0)
    k_x, k_p = jax.random.split(key)

    hidden_layer = 4
    out_features = 10
    # 28x28 input is what the module's fc (in_features = 2**h//4 * 3 * 3) implies.
    x = jax.random.normal(k_x, (2, 1, 28, 28), dtype=jnp.float32)
    params = init_params(k_p, hidden_layer=hidden_layer,
                         out_features=out_features)
    prep = prepare_params(params, in_h=28, in_w=28)   # one-time weight prep

    fwd = jax.jit(lambda inp: cnn_forward(inp, prep))
    y = fwd(x)
    jax.block_until_ready(y)

    assert y.shape == (2, out_features), f"shape mismatch: {y.shape}"
    assert y.dtype == jnp.float32, f"dtype mismatch: {y.dtype}"
    assert bool(jnp.all(jnp.isfinite(y))), "non-finite output"

    y_ref = cnn_forward_ref(x, params)
    jax.block_until_ready(y_ref)
    assert bool(jnp.allclose(y, y_ref, rtol=5e-2, atol=5e-2)), (
        f"mismatch vs reference: max |diff| = "
        f"{float(jnp.max(jnp.abs(y - y_ref)))}")

    print("KERNEL_OK")
</pallas_src>

<mosaic_0001>
module attributes {stable_mosaic.version = 11 : i64} {
  func.func @kernel(%arg0: i32, %arg1: memref<2x28x28xf32, #tpu.memory_space<vmem>>, %arg2: memref<3x28x416xf32, #tpu.memory_space<vmem>>, %arg3: memref<1x416xf32, #tpu.memory_space<vmem>>, %arg4: memref<3x400x88xf32, #tpu.memory_space<vmem>>, %arg5: memref<1x88xf32, #tpu.memory_space<vmem>>, %arg6: memref<3x80x12xf32, #tpu.memory_space<vmem>>, %arg7: memref<1x12xf32, #tpu.memory_space<vmem>>, %arg8: memref<3x12x10xf32, #tpu.memory_space<vmem>>, %arg9: memref<1x10xf32, #tpu.memory_space<vmem>>, %arg10: memref<2x10xf32, #tpu.memory_space<vmem>>) attributes {dimension_semantics = [#tpu.dimension_semantics<arbitrary>], iteration_bounds = array<i64: 1>, scalar_prefetch = 0 : i64, scratch_operands = 0 : i64, tpu.core_type = #tpu.core_type<tc>, window_params = [{pipeline_mode = #tpu.pipeline_mode<synchronous>, transform_indices = @transform_0, window_bounds = array<i64: 2, 28, 28>}, {pipeline_mode = #tpu.pipeline_mode<synchronous>, transform_indices = @transform_1, window_bounds = array<i64: 3, 28, 416>}, {pipeline_mode = #tpu.pipeline_mode<synchronous>, transform_indices = @transform_2, window_bounds = array<i64: 1, 416>}, {pipeline_mode = #tpu.pipeline_mode<synchronous>, transform_indices = @transform_3, window_bounds = array<i64: 3, 400, 88>}, {pipeline_mode = #tpu.pipeline_mode<synchronous>, transform_indices = @transform_4, window_bounds = array<i64: 1, 88>}, {pipeline_mode = #tpu.pipeline_mode<synchronous>, transform_indices = @transform_5, window_bounds = array<i64: 3, 80, 12>}, {pipeline_mode = #tpu.pipeline_mode<synchronous>, transform_indices = @transform_6, window_bounds = array<i64: 1, 12>}, {pipeline_mode = #tpu.pipeline_mode<synchronous>, transform_indices = @transform_7, window_bounds = array<i64: 3, 12, 10>}, {pipeline_mode = #tpu.pipeline_mode<synchronous>, transform_indices = @transform_8, window_bounds = array<i64: 1, 10>}, {pipeline_mode = #tpu.pipeline_mode<synchronous>, transform_indices = @transform_9, window_bounds = array<i64: 2, 10>}]} {
    %c0 = arith.constant 0 : index
    %c0_0 = arith.constant 0 : index
    %0 = vector.load %arg3[%c0, %c0_0] : memref<1x416xf32, #tpu.memory_space<vmem>>, vector<1x416xf32>
    %c0_1 = arith.constant 0 : index
    %c0_2 = arith.constant 0 : index
    %1 = vector.load %arg5[%c0_1, %c0_2] : memref<1x88xf32, #tpu.memory_space<vmem>>, vector<1x88xf32>
    %c0_3 = arith.constant 0 : index
    %c0_4 = arith.constant 0 : index
    %2 = vector.load %arg7[%c0_3, %c0_4] : memref<1x12xf32, #tpu.memory_space<vmem>>, vector<1x12xf32>
    %c0_5 = arith.constant 0 : index
    %c0_6 = arith.constant 0 : index
    %c0_7 = arith.constant 0 : index
    %3 = vector.load %arg2[%c0_5, %c0_6, %c0_7] : memref<3x28x416xf32, #tpu.memory_space<vmem>>, vector<1x28x416xf32>
    %4 = vector.shape_cast %3 : vector<1x28x416xf32> to vector<28x416xf32>
    %c1 = arith.constant 1 : index
    %c0_8 = arith.constant 0 : index
    %c0_9 = arith.constant 0 : index
    %5 = vector.load %arg2[%c1, %c0_8, %c0_9] : memref<3x28x416xf32, #tpu.memory_space<vmem>>, vector<1x28x416xf32>
    %6 = vector.shape_cast %5 : vector<1x28x416xf32> to vector<28x416xf32>
    %c2 = arith.constant 2 : index
    %c0_10 = arith.constant 0 : index
    %c0_11 = arith.constant 0 : index
    %7 = vector.load %arg2[%c2, %c0_10, %c0_11] : memref<3x28x416xf32, #tpu.memory_space<vmem>>, vector<1x28x416xf32>
    %8 = vector.shape_cast %7 : vector<1x28x416xf32> to vector<28x416xf32>
    %c0_12 = arith.constant 0 : index
    %c0_13 = arith.constant 0 : index
    %c0_14 = arith.constant 0 : index
    %9 = vector.load %arg4[%c0_12, %c0_13, %c0_14] : memref<3x400x88xf32, #tpu.memory_space<vmem>>, vector<1x400x88xf32>
    %10 = vector.shape_cast %9 : vector<1x400x88xf32> to vector<400x88xf32>
    %c1_15 = arith.constant 1 : index
    %c0_16 = arith.constant 0 : index
    %c0_17 = arith.constant 0 : index
    %11 = vector.load %arg4[%c1_15, %c0_16, %c0_17] : memref<3x400x88xf32, #tpu.memory_space<vmem>>, vector<1x400x88xf32>
    %12 = vector.shape_cast %11 : vector<1x400x88xf32> to vector<400x88xf32>
    %c2_18 = arith.constant 2 : index
    %c0_19 = arith.constant 0 : index
    %c0_20 = arith.constant 0 : index
    %13 = vector.load %arg4[%c2_18, %c0_19, %c0_20] : memref<3x400x88xf32, #tpu.memory_space<vmem>>, vector<1x400x88xf32>
    %14 = vector.shape_cast %13 : vector<1x400x88xf32> to vector<400x88xf32>
    %c0_21 = arith.constant 0 : index
    %c0_22 = arith.constant 0 : index
    %c0_23 = arith.constant 0 : index
    %15 = vector.load %arg6[%c0_21, %c0_22, %c0_23] : memref<3x80x12xf32, #tpu.memory_space<vmem>>, vector<1x80x12xf32>
    %16 = vector.shape_cast %15 : vector<1x80x12xf32> to vector<80x12xf32>
    %c1_24 = arith.constant 1 : index
    %c0_25 = arith.constant 0 : index
    %c0_26 = arith.constant 0 : index
    %17 = vector.load %arg6[%c1_24, %c0_25, %c0_26] : memref<3x80x12xf32, #tpu.memory_space<vmem>>, vector<1x80x12xf32>
    %18 = vector.shape_cast %17 : vector<1x80x12xf32> to vector<80x12xf32>
    %c2_27 = arith.constant 2 : index
    %c0_28 = arith.constant 0 : index
    %c0_29 = arith.constant 0 : index
    %19 = vector.load %arg6[%c2_27, %c0_28, %c0_29] : memref<3x80x12xf32, #tpu.memory_space<vmem>>, vector<1x80x12xf32>
    %20 = vector.shape_cast %19 : vector<1x80x12xf32> to vector<80x12xf32>
    %c0_30 = arith.constant 0 : index
    %c0_31 = arith.constant 0 : index
    %c0_32 = arith.constant 0 : index
    %21 = vector.load %arg8[%c0_30, %c0_31, %c0_32] : memref<3x12x10xf32, #tpu.memory_space<vmem>>, vector<1x12x10xf32>
    %22 = vector.shape_cast %21 : vector<1x12x10xf32> to vector<12x10xf32>
    %c1_33 = arith.constant 1 : index
    %c0_34 = arith.constant 0 : index
    %c0_35 = arith.constant 0 : index
    %23 = vector.load %arg8[%c1_33, %c0_34, %c0_35] : memref<3x12x10xf32, #tpu.memory_space<vmem>>, vector<1x12x10xf32>
    %24 = vector.shape_cast %23 : vector<1x12x10xf32> to vector<12x10xf32>
    %c2_36 = arith.constant 2 : index
    %c0_37 = arith.constant 0 : index
    %c0_38 = arith.constant 0 : index
    %25 = vector.load %arg8[%c2_36, %c0_37, %c0_38] : memref<3x12x10xf32, #tpu.memory_space<vmem>>, vector<1x12x10xf32>
    %26 = vector.shape_cast %25 : vector<1x12x10xf32> to vector<12x10xf32>
    %c0_39 = arith.constant 0 : index
    %c0_40 = arith.constant 0 : index
    %27 = vector.load %arg9[%c0_39, %c0_40] : memref<1x10xf32, #tpu.memory_space<vmem>>, vector<1x10xf32>
    %c0_41 = arith.constant 0 : index
    %c0_42 = arith.constant 0 : index
    %c0_43 = arith.constant 0 : index
    %28 = vector.load %arg1[%c0_41, %c0_42, %c0_43] : memref<2x28x28xf32, #tpu.memory_space<vmem>>, vector<1x28x28xf32>
    %29 = vector.shape_cast %28 : vector<1x28x28xf32> to vector<28x28xf32>
    %30 = vector.extract_strided_slice %29 {offsets = [0, 0], sizes = [26, 28], strides = [1, 1]} : vector<28x28xf32> to vector<26x28xf32>
    %cst = arith.constant dense<0.000000e+00> : vector<26x416xf32>
    %31 = tpu.matmul %30, %4, %cst {dimension_numbers = #tpu.dot_dimension_numbers<[1], [0], [0], [1], [0, 0, 1, 1], [], []>} : vector<26x28xf32>, vector<28x416xf32>, vector<26x416xf32> -> vector<26x416xf32>
    %32 = vector.extract_strided_slice %29 {offsets = [1, 0], sizes = [26, 28], strides = [1, 1]} : vector<28x28xf32> to vector<26x28xf32>
    %cst_44 = arith.constant dense<0.000000e+00> : vector<26x416xf32>
    %33 = tpu.matmul %32, %6, %cst_44 {dimension_numbers = #tpu.dot_dimension_numbers<[1], [0], [0], [1], [0, 0, 1, 1], [], []>} : vector<26x28xf32>, vector<28x416xf32>, vector<26x416xf32> -> vector<26x416xf32>
    %34 = arith.addf %31, %33 : vector<26x416xf32>
    %35 = vector.extract_strided_slice %29 {offsets = [2, 0], sizes = [26, 28], strides = [1, 1]} : vector<28x28xf32> to vector<26x28xf32>
    %cst_45 = arith.constant dense<0.000000e+00> : vector<26x416xf32>
    %36 = tpu.matmul %35, %8, %cst_45 {dimension_numbers = #tpu.dot_dimension_numbers<[1], [0], [0], [1], [0, 0, 1, 1], [], []>} : vector<26x28xf32>, vector<28x416xf32>, vector<26x416xf32> -> vector<26x416xf32>
    %37 = arith.addf %34, %36 : vector<26x416xf32>
    %38 = vector.broadcast %0 : vector<1x416xf32> to vector<26x416xf32>
    %39 = arith.addf %37, %38 : vector<26x416xf32>
    %cst_46 = arith.constant 0.000000e+00 : f32
    %40 = vector.broadcast %cst_46 : f32 to vector<26x416xf32>
    %41 = arith.cmpf oge, %39, %40 : vector<26x416xf32>
    %cst_47 = arith.constant 1.000000e-01 : f32
    %42 = vector.broadcast %cst_47 : f32 to vector<26x416xf32>
    %43 = arith.mulf %42, %39 : vector<26x416xf32>
    %44 = arith.select %41, %39, %43 : vector<26x416xi1>, vector<26x416xf32>
    %45 = vector.extract_strided_slice %44 {offsets = [0, 0], sizes = [25, 416], strides = [1, 1]} : vector<26x416xf32> to vector<25x416xf32>
    %46 = vector.extract_strided_slice %44 {offsets = [1, 0], sizes = [25, 416], strides = [1, 1]} : vector<26x416xf32> to vector<25x416xf32>
    %47 = arith.maximumf %45, %46 : vector<25x416xf32>
    %48 = vector.extract_strided_slice %47 {offsets = [0, 0], sizes = [25, 400], strides = [1, 1]} : vector<25x416xf32> to vector<25x400xf32>
    %49 = vector.extract_strided_slice %47 {offsets = [0, 16], sizes = [25, 400], strides = [1, 1]} : vector<25x416xf32> to vector<25x400xf32>
    %50 = arith.maximumf %48, %49 : vector<25x400xf32>
    %51 = vector.extract_strided_slice %50 {offsets = [0, 0], sizes = [21, 400], strides = [1, 1]} : vector<25x400xf32> to vector<21x400xf32>
    %cst_48 = arith.constant dense<0.000000e+00> : vector<21x88xf32>
    %52 = tpu.matmul %51, %10, %cst_48 {dimension_numbers = #tpu.dot_dimension_numbers<[1], [0], [0], [1], [0, 0, 1, 1], [], []>} : vector<21x400xf32>, vector<400x88xf32>, vector<21x88xf32> -> vector<21x88xf32>
    %53 = vector.extract_strided_slice %50 {offsets = [2, 0], sizes = [21, 400], strides = [1, 1]} : vector<25x400xf32> to vector<21x400xf32>
    %cst_49 = arith.constant dense<0.000000e+00> : vector<21x88xf32>
    %54 = tpu.matmul %53, %12, %cst_49 {dimension_numbers = #tpu.dot_dimension_numbers<[1], [0], [0], [1], [0, 0, 1, 1], [], []>} : vector<21x400xf32>, vector<400x88xf32>, vector<21x88xf32> -> vector<21x88xf32>
    %55 = arith.addf %52, %54 : vector<21x88xf32>
    %56 = vector.extract_strided_slice %50 {offsets = [4, 0], sizes = [21, 400], strides = [1, 1]} : vector<25x400xf32> to vector<21x400xf32>
    %cst_50 = arith.constant dense<0.000000e+00> : vector<21x88xf32>
    %57 = tpu.matmul %56, %14, %cst_50 {dimension_numbers = #tpu.dot_dimension_numbers<[1], [0], [0], [1], [0, 0, 1, 1], [], []>} : vector<21x400xf32>, vector<400x88xf32>, vector<21x88xf32> -> vector<21x88xf32>
    %58 = arith.addf %55, %57 : vector<21x88xf32>
    %59 = vector.broadcast %1 : vector<1x88xf32> to vector<21x88xf32>
    %60 = arith.addf %58, %59 : vector<21x88xf32>
    %cst_51 = arith.constant 0.000000e+00 : f32
    %61 = vector.broadcast %cst_51 : f32 to vector<21x88xf32>
    %62 = arith.cmpf oge, %60, %61 : vector<21x88xf32>
    %cst_52 = arith.constant 1.000000e-01 : f32
    %63 = vector.broadcast %cst_52 : f32 to vector<21x88xf32>
    %64 = arith.mulf %63, %60 : vector<21x88xf32>
    %65 = arith.select %62, %60, %64 : vector<21x88xi1>, vector<21x88xf32>
    %66 = vector.extract_strided_slice %65 {offsets = [0, 0], sizes = [19, 88], strides = [1, 1]} : vector<21x88xf32> to vector<19x88xf32>
    %67 = vector.extract_strided_slice %65 {offsets = [2, 0], sizes = [19, 88], strides = [1, 1]} : vector<21x88xf32> to vector<19x88xf32>
    %68 = arith.maximumf %66, %67 : vector<19x88xf32>
    %69 = vector.extract_strided_slice %68 {offsets = [0, 0], sizes = [19, 80], strides = [1, 1]} : vector<19x88xf32> to vector<19x80xf32>
    %70 = vector.extract_strided_slice %68 {offsets = [0, 8], sizes = [19, 80], strides = [1, 1]} : vector<19x88xf32> to vector<19x80xf32>
    %71 = arith.maximumf %69, %70 : vector<19x80xf32>
    %72 = vector.extract_strided_slice %71 {offsets = [0, 0], sizes = [9, 80], strides = [1, 1]} : vector<19x80xf32> to vector<9x80xf32>
    %cst_53 = arith.constant dense<0.000000e+00> : vector<9x12xf32>
    %73 = tpu.matmul %72, %16, %cst_53 {dimension_numbers = #tpu.dot_dimension_numbers<[1], [0], [0], [1], [0, 0, 1, 1], [], []>} : vector<9x80xf32>, vector<80x12xf32>, vector<9x12xf32> -> vector<9x12xf32>
    %74 = vector.extract_strided_slice %71 {offsets = [4, 0], sizes = [9, 80], strides = [1, 1]} : vector<19x80xf32> to vector<9x80xf32>
    %cst_54 = arith.constant dense<0.000000e+00> : vector<9x12xf32>
    %75 = tpu.matmul %74, %18, %cst_54 {dimension_numbers = #tpu.dot_dimension_numbers<[1], [0], [0], [1], [0, 0, 1, 1], [], []>} : vector<9x80xf32>, vector<80x12xf32>, vector<9x12xf32> -> vector<9x12xf32>
    %76 = arith.addf %73, %75 : vector<9x12xf32>
    %77 = vector.extract_strided_slice %71 {offsets = [8, 0], sizes = [9, 80], strides = [1, 1]} : vector<19x80xf32> to vector<9x80xf32>
    %cst_55 = arith.constant dense<0.000000e+00> : vector<9x12xf32>
    %78 = tpu.matmul %77, %20, %cst_55 {dimension_numbers = #tpu.dot_dimension_numbers<[1], [0], [0], [1], [0, 0, 1, 1], [], []>} : vector<9x80xf32>, vector<80x12xf32>, vector<9x12xf32> -> vector<9x12xf32>
    %79 = arith.addf %76, %78 : vector<9x12xf32>
    %80 = vector.broadcast %2 : vector<1x12xf32> to vector<9x12xf32>
    %81 = arith.addf %79, %80 : vector<9x12xf32>
    %cst_56 = arith.constant 0.000000e+00 : f32
    %82 = vector.broadcast %cst_56 : f32 to vector<9x12xf32>
    %83 = arith.cmpf oge, %81, %82 : vector<9x12xf32>
    %cst_57 = arith.constant 1.000000e-01 : f32
    %84 = vector.broadcast %cst_57 : f32 to vector<9x12xf32>
    %85 = arith.mulf %84, %81 : vector<9x12xf32>
    %86 = arith.select %83, %81, %85 : vector<9x12xi1>, vector<9x12xf32>
    %87 = vector.extract_strided_slice %86 {offsets = [0, 0], sizes = [1, 12], strides = [1, 1]} : vector<9x12xf32> to vector<1x12xf32>
    %cst_58 = arith.constant dense<0.000000e+00> : vector<1x10xf32>
    %88 = tpu.matmul %87, %22, %cst_58 {dimension_numbers = #tpu.dot_dimension_numbers<[1], [0], [0], [1], [0, 0, 1, 1], [], []>} : vector<1x12xf32>, vector<12x10xf32>, vector<1x10xf32> -> vector<1x10xf32>
    %89 = arith.addf %27, %88 : vector<1x10xf32>
    %90 = vector.extract_strided_slice %86 {offsets = [4, 0], sizes = [1, 12], strides = [1, 1]} : vector<9x12xf32> to vector<1x12xf32>
    %cst_59 = arith.constant dense<0.000000e+00> : vector<1x10xf32>
    %91 = tpu.matmul %90, %24, %cst_59 {dimension_numbers = #tpu.dot_dimension_numbers<[1], [0], [0], [1], [0, 0, 1, 1], [], []>} : vector<1x12xf32>, vector<12x10xf32>, vector<1x10xf32> -> vector<1x10xf32>
    %92 = arith.addf %89, %91 : vector<1x10xf32>
    %93 = vector.extract_strided_slice %86 {offsets = [8, 0], sizes = [1, 12], strides = [1, 1]} : vector<9x12xf32> to vector<1x12xf32>
    %cst_60 = arith.constant dense<0.000000e+00> : vector<1x10xf32>
    %94 = tpu.matmul %93, %26, %cst_60 {dimension_numbers = #tpu.dot_dimension_numbers<[1], [0], [0], [1], [0, 0, 1, 1], [], []>} : vector<1x12xf32>, vector<12x10xf32>, vector<1x10xf32> -> vector<1x10xf32>
    %95 = arith.addf %92, %94 : vector<1x10xf32>
    %c0_61 = arith.constant 0 : index
    %c0_62 = arith.constant 0 : index
    %96 = vector.load %arg10[%c0_61, %c0_62] : memref<2x10xf32, #tpu.memory_space<vmem>>, vector<1x10xf32>
    tpu.vector_store %arg10[%c0_61, %c0_62], %95 {strides = array<i32>} : memref<2x10xf32, #tpu.memory_space<vmem>>, vector<1x10xf32>,
    %c1_63 = arith.constant 1 : index
    %c0_64 = arith.constant 0 : index
    %c0_65 = arith.constant 0 : index
    %97 = vector.load %arg1[%c1_63, %c0_64, %c0_65] : memref<2x28x28xf32, #tpu.memory_space<vmem>>, vector<1x28x28xf32>
    %98 = vector.shape_cast %97 : vector<1x28x28xf32> to vector<28x28xf32>
    %99 = vector.extract_strided_slice %98 {offsets = [0, 0], sizes = [26, 28], strides = [1, 1]} : vector<28x28xf32> to vector<26x28xf32>
    %cst_66 = arith.constant dense<0.000000e+00> : vector<26x416xf32>
    %100 = tpu.matmul %99, %4, %cst_66 {dimension_numbers = #tpu.dot_dimension_numbers<[1], [0], [0], [1], [0, 0, 1, 1], [], []>} : vector<26x28xf32>, vector<28x416xf32>, vector<26x416xf32> -> vector<26x416xf32>
    %101 = vector.extract_strided_slice %98 {offsets = [1, 0], sizes = [26, 28], strides = [1, 1]} : vector<28x28xf32> to vector<26x28xf32>
    %cst_67 = arith.constant dense<0.000000e+00> : vector<26x416xf32>
    %102 = tpu.matmul %101, %6, %cst_67 {dimension_numbers = #tpu.dot_dimension_numbers<[1], [0], [0], [1], [0, 0, 1, 1], [], []>} : vector<26x28xf32>, vector<28x416xf32>, vector<26x416xf32> -> vector<26x416xf32>
    %103 = arith.addf %100, %102 : vector<26x416xf32>
    %104 = vector.extract_strided_slice %98 {offsets = [2, 0], sizes = [26, 28], strides = [1, 1]} : vector<28x28xf32> to vector<26x28xf32>
    %cst_68 = arith.constant dense<0.000000e+00> : vector<26x416xf32>
    %105 = tpu.matmul %104, %8, %cst_68 {dimension_numbers = #tpu.dot_dimension_numbers<[1], [0], [0], [1], [0, 0, 1, 1], [], []>} : vector<26x28xf32>, vector<28x416xf32>, vector<26x416xf32> -> vector<26x416xf32>
    %106 = arith.addf %103, %105 : vector<26x416xf32>
    %107 = vector.broadcast %0 : vector<1x416xf32> to vector<26x416xf32>
    %108 = arith.addf %106, %107 : vector<26x416xf32>
    %cst_69 = arith.constant 0.000000e+00 : f32
    %109 = vector.broadcast %cst_69 : f32 to vector<26x416xf32>
    %110 = arith.cmpf oge, %108, %109 : vector<26x416xf32>
    %cst_70 = arith.constant 1.000000e-01 : f32
    %111 = vector.broadcast %cst_70 : f32 to vector<26x416xf32>
    %112 = arith.mulf %111, %108 : vector<26x416xf32>
    %113 = arith.select %110, %108, %112 : vector<26x416xi1>, vector<26x416xf32>
    %114 = vector.extract_strided_slice %113 {offsets = [0, 0], sizes = [25, 416], strides = [1, 1]} : vector<26x416xf32> to vector<25x416xf32>
    %115 = vector.extract_strided_slice %113 {offsets = [1, 0], sizes = [25, 416], strides = [1, 1]} : vector<26x416xf32> to vector<25x416xf32>
    %116 = arith.maximumf %114, %115 : vector<25x416xf32>
    %117 = vector.extract_strided_slice %116 {offsets = [0, 0], sizes = [25, 400], strides = [1, 1]} : vector<25x416xf32> to vector<25x400xf32>
    %118 = vector.extract_strided_slice %116 {offsets = [0, 16], sizes = [25, 400], strides = [1, 1]} : vector<25x416xf32> to vector<25x400xf32>
    %119 = arith.maximumf %117, %118 : vector<25x400xf32>
    %120 = vector.extract_strided_slice %119 {offsets = [0, 0], sizes = [21, 400], strides = [1, 1]} : vector<25x400xf32> to vector<21x400xf32>
    %cst_71 = arith.constant dense<0.000000e+00> : vector<21x88xf32>
    %121 = tpu.matmul %120, %10, %cst_71 {dimension_numbers = #tpu.dot_dimension_numbers<[1], [0], [0], [1], [0, 0, 1, 1], [], []>} : vector<21x400xf32>, vector<400x88xf32>, vector<21x88xf32> -> vector<21x88xf32>
    %122 = vector.extract_strided_slice %119 {offsets = [2, 0], sizes = [21, 400], strides = [1, 1]} : vector<25x400xf32> to vector<21x400xf32>
    %cst_72 = arith.constant dense<0.000000e+00> : vector<21x88xf32>
    %123 = tpu.matmul %122, %12, %cst_72 {dimension_numbers = #tpu.dot_dimension_numbers<[1], [0], [0], [1], [0, 0, 1, 1], [], []>} : vector<21x400xf32>, vector<400x88xf32>, vector<21x88xf32> -> vector<21x88xf32>
    %124 = arith.addf %121, %123 : vector<21x88xf32>
    %125 = vector.extract_strided_slice %119 {offsets = [4, 0], sizes = [21, 400], strides = [1, 1]} : vector<25x400xf32> to vector<21x400xf32>
    %cst_73 = arith.constant dense<0.000000e+00> : vector<21x88xf32>
    %126 = tpu.matmul %125, %14, %cst_73 {dimension_numbers = #tpu.dot_dimension_numbers<[1], [0], [0], [1], [0, 0, 1, 1], [], []>} : vector<21x400xf32>, vector<400x88xf32>, vector<21x88xf32> -> vector<21x88xf32>
    %127 = arith.addf %124, %126 : vector<21x88xf32>
    %128 = vector.broadcast %1 : vector<1x88xf32> to vector<21x88xf32>
    %129 = arith.addf %127, %128 : vector<21x88xf32>
    %cst_74 = arith.constant 0.000000e+00 : f32
    %130 = vector.broadcast %cst_74 : f32 to vector<21x88xf32>
    %131 = arith.cmpf oge, %129, %130 : vector<21x88xf32>
    %cst_75 = arith.constant 1.000000e-01 : f32
    %132 = vector.broadcast %cst_75 : f32 to vector<21x88xf32>
    %133 = arith.mulf %132, %129 : vector<21x88xf32>
    %134 = arith.select %131, %129, %133 : vector<21x88xi1>, vector<21x88xf32>
    %135 = vector.extract_strided_slice %134 {offsets = [0, 0], sizes = [19, 88], strides = [1, 1]} : vector<21x88xf32> to vector<19x88xf32>
    %136 = vector.extract_strided_slice %134 {offsets = [2, 0], sizes = [19, 88], strides = [1, 1]} : vector<21x88xf32> to vector<19x88xf32>
    %137 = arith.maximumf %135, %136 : vector<19x88xf32>
    %138 = vector.extract_strided_slice %137 {offsets = [0, 0], sizes = [19, 80], strides = [1, 1]} : vector<19x88xf32> to vector<19x80xf32>
    %139 = vector.extract_strided_slice %137 {offsets = [0, 8], sizes = [19, 80], strides = [1, 1]} : vector<19x88xf32> to vector<19x80xf32>
    %140 = arith.maximumf %138, %139 : vector<19x80xf32>
    %141 = vector.extract_strided_slice %140 {offsets = [0, 0], sizes = [9, 80], strides = [1, 1]} : vector<19x80xf32> to vector<9x80xf32>
    %cst_76 = arith.constant dense<0.000000e+00> : vector<9x12xf32>
    %142 = tpu.matmul %141, %16, %cst_76 {dimension_numbers = #tpu.dot_dimension_numbers<[1], [0], [0], [1], [0, 0, 1, 1], [], []>} : vector<9x80xf32>, vector<80x12xf32>, vector<9x12xf32> -> vector<9x12xf32>
    %143 = vector.extract_strided_slice %140 {offsets = [4, 0], sizes = [9, 80], strides = [1, 1]} : vector<19x80xf32> to vector<9x80xf32>
    %cst_77 = arith.constant dense<0.000000e+00> : vector<9x12xf32>
    %144 = tpu.matmul %143, %18, %cst_77 {dimension_numbers = #tpu.dot_dimension_numbers<[1], [0], [0], [1], [0, 0, 1, 1], [], []>} : vector<9x80xf32>, vector<80x12xf32>, vector<9x12xf32> -> vector<9x12xf32>
    %145 = arith.addf %142, %144 : vector<9x12xf32>
    %146 = vector.extract_strided_slice %140 {offsets = [8, 0], sizes = [9, 80], strides = [1, 1]} : vector<19x80xf32> to vector<9x80xf32>
    %cst_78 = arith.constant dense<0.000000e+00> : vector<9x12xf32>
    %147 = tpu.matmul %146, %20, %cst_78 {dimension_numbers = #tpu.dot_dimension_numbers<[1], [0], [0], [1], [0, 0, 1, 1], [], []>} : vector<9x80xf32>, vector<80x12xf32>, vector<9x12xf32> -> vector<9x12xf32>
    %148 = arith.addf %145, %147 : vector<9x12xf32>
    %149 = vector.broadcast %2 : vector<1x12xf32> to vector<9x12xf32>
    %150 = arith.addf %148, %149 : vector<9x12xf32>
    %cst_79 = arith.constant 0.000000e+00 : f32
    %151 = vector.broadcast %cst_79 : f32 to vector<9x12xf32>
    %152 = arith.cmpf oge, %150, %151 : vector<9x12xf32>
    %cst_80 = arith.constant 1.000000e-01 : f32
    %153 = vector.broadcast %cst_80 : f32 to vector<9x12xf32>
    %154 = arith.mulf %153, %150 : vector<9x12xf32>
    %155 = arith.select %152, %150, %154 : vector<9x12xi1>, vector<9x12xf32>
    %156 = vector.extract_strided_slice %155 {offsets = [0, 0], sizes = [1, 12], strides = [1, 1]} : vector<9x12xf32> to vector<1x12xf32>
    %cst_81 = arith.constant dense<0.000000e+00> : vector<1x10xf32>
    %157 = tpu.matmul %156, %22, %cst_81 {dimension_numbers = #tpu.dot_dimension_numbers<[1], [0], [0], [1], [0, 0, 1, 1], [], []>} : vector<1x12xf32>, vector<12x10xf32>, vector<1x10xf32> -> vector<1x10xf32>
    %158 = arith.addf %27, %157 : vector<1x10xf32>
    %159 = vector.extract_strided_slice %155 {offsets = [4, 0], sizes = [1, 12], strides = [1, 1]} : vector<9x12xf32> to vector<1x12xf32>
    %cst_82 = arith.constant dense<0.000000e+00> : vector<1x10xf32>
    %160 = tpu.matmul %159, %24, %cst_82 {dimension_numbers = #tpu.dot_dimension_numbers<[1], [0], [0], [1], [0, 0, 1, 1], [], []>} : vector<1x12xf32>, vector<12x10xf32>, vector<1x10xf32> -> vector<1x10xf32>
    %161 = arith.addf %158, %160 : vector<1x10xf32>
    %162 = vector.extract_strided_slice %155 {offsets = [8, 0], sizes = [1, 12], strides = [1, 1]} : vector<9x12xf32> to vector<1x12xf32>
    %cst_83 = arith.constant dense<0.000000e+00> : vector<1x10xf32>
    %163 = tpu.matmul %162, %26, %cst_83 {dimension_numbers = #tpu.dot_dimension_numbers<[1], [0], [0], [1], [0, 0, 1, 1], [], []>} : vector<1x12xf32>, vector<12x10xf32>, vector<1x10xf32> -> vector<1x10xf32>
    %164 = arith.addf %161, %163 : vector<1x10xf32>
    %c1_84 = arith.constant 1 : index
    %c0_85 = arith.constant 0 : index
    %165 = vector.load %arg10[%c1_84, %c0_85] : memref<2x10xf32, #tpu.memory_space<vmem>>, vector<1x10xf32>
    tpu.vector_store %arg10[%c1_84, %c0_85], %164 {strides = array<i32>} : memref<2x10xf32, #tpu.memory_space<vmem>>, vector<1x10xf32>,
    return
  }
  func.func @transform_0(%arg0: i32) -> (i32, i32, i32) {
    %c0_i32 = arith.constant 0 : i32
    %c0_i32_0 = arith.constant 0 : i32
    %c0_i32_1 = arith.constant 0 : i32
    %c0_i32_2 = arith.constant 0 : i32
    return %c0_i32, %c0_i32_0, %c0_i32_1 : i32, i32, i32
  }
  func.func @transform_1(%arg0: i32) -> (i32, i32, i32) {
    %c0_i32 = arith.constant 0 : i32
    %c0_i32_0 = arith.constant 0 : i32
    %c0_i32_1 = arith.constant 0 : i32
    %c0_i32_2 = arith.constant 0 : i32
    return %c0_i32, %c0_i32_0, %c0_i32_1 : i32, i32, i32
  }
  func.func @transform_2(%arg0: i32) -> (i32, i32) {
    %c0_i32 = arith.constant 0 : i32
    %c0_i32_0 = arith.constant 0 : i32
    %c0_i32_1 = arith.constant 0 : i32
    return %c0_i32, %c0_i32_0 : i32, i32
  }
  func.func @transform_3(%arg0: i32) -> (i32, i32, i32) {
    %c0_i32 = arith.constant 0 : i32
    %c0_i32_0 = arith.constant 0 : i32
    %c0_i32_1 = arith.constant 0 : i32
    %c0_i32_2 = arith.constant 0 : i32
    return %c0_i32, %c0_i32_0, %c0_i32_1 : i32, i32, i32
  }
  func.func @transform_4(%arg0: i32) -> (i32, i32) {
    %c0_i32 = arith.constant 0 : i32
    %c0_i32_0 = arith.constant 0 : i32
    %c0_i32_1 = arith.constant 0 : i32
    return %c0_i32, %c0_i32_0 : i32, i32
  }
  func.func @transform_5(%arg0: i32) -> (i32, i32, i32) {
    %c0_i32 = arith.constant 0 : i32
    %c0_i32_0 = arith.constant 0 : i32
    %c0_i32_1 = arith.constant 0 : i32
    %c0_i32_2 = arith.constant 0 : i32
    return %c0_i32, %c0_i32_0, %c0_i32_1 : i32, i32, i32
  }
  func.func @transform_6(%arg0: i32) -> (i32, i32) {
    %c0_i32 = arith.constant 0 : i32
    %c0_i32_0 = arith.constant 0 : i32
    %c0_i32_1 = arith.constant 0 : i32
    return %c0_i32, %c0_i32_0 : i32, i32
  }
  func.func @transform_7(%arg0: i32) -> (i32, i32, i32) {
    %c0_i32 = arith.constant 0 : i32
    %c0_i32_0 = arith.constant 0 : i32
    %c0_i32_1 = arith.constant 0 : i32
    %c0_i32_2 = arith.constant 0 : i32
    return %c0_i32, %c0_i32_0, %c0_i32_1 : i32, i32, i32
  }
  func.func @transform_8(%arg0: i32) -> (i32, i32) {
    %c0_i32 = arith.constant 0 : i32
    %c0_i32_0 = arith.constant 0 : i32
    %c0_i32_1 = arith.constant 0 : i32
    return %c0_i32, %c0_i32_0 : i32, i32
  }
  func.func @transform_9(%arg0: i32) -> (i32, i32) {
    %c0_i32 = arith.constant 0 : i32
    %c0_i32_0 = arith.constant 0 : i32
    %c0_i32_1 = arith.constant 0 : i32
    return %c0_i32, %c0_i32_0 : i32, i32
  }
}

</mosaic_0001>

<llo_original>
// kernel: _lambda_.1
$region0: #{_lambda_.1}
  #allocation0 [shape = 'u32[]', space=smem, size = 0x4, offset = 0x4, fixed_abs, tag = 'smem constant byte address 0x4 - core index']
  #allocation1 [shape = 'u32[144,128]{1,0:T(1,128)}', space=vmem, size = 0x12000, scoped, tag = 'internal scratch']
  %s0 = inlined_call_operand.vmem [shape: f32[2,28,28], index: 0, kind: input, shape index: {}]
  %s1 = inlined_call_operand.hbm [shape: f32[3,28,416], index: 1, kind: input, shape index: {}]
  %s2 = inlined_call_operand.vmem [shape: f32[1,416], index: 2, kind: input, shape index: {}]
  %s3 = inlined_call_operand.hbm [shape: f32[3,400,88], index: 3, kind: input, shape index: {}]
  %s4 = inlined_call_operand.vmem [shape: f32[1,88], index: 4, kind: input, shape index: {}]
  %s5 = inlined_call_operand.vmem [shape: f32[3,80,12], index: 5, kind: input, shape index: {}]
  %s6 = inlined_call_operand.vmem [shape: f32[1,12], index: 6, kind: input, shape index: {}]
  %s7 = inlined_call_operand.hbm [shape: f32[3,12,10], index: 7, kind: input, shape index: {}]
  %s8 = inlined_call_operand.vmem [shape: f32[1,10], index: 8, kind: input, shape index: {}]
  %s9 = inlined_call_operand.hbm [shape: f32[2,10], index: 9, kind: output, shape index: {}]
  %s10 = sld [smem:[#allocation0]]
  $region58: #{_lambda_.1} parent=0
    _
  %s12 = ssub.s32 1, %s10
  %s13 = scalar_select 0, %s12, %s10
  $region1: #{_lambda_.1} parent=0
    #allocation2 [shape = 'u8[196608]{0}', space=vmem, size = 0x30000, scoped, tag = 'input window, operand 1, single buffered']
    #allocation3 [shape = 's32[1]{0}', space=sflag, size = 0x4, scoped, tag = 'scoped memory for _lambda_.1']
    #allocation4 [shape = 's32[1]{0}', space=sflag, size = 0x4, scoped, tag = 'scoped memory for _lambda_.1']
    #allocation5 [shape = 'u8[614400]{0}', space=vmem, size = 0x96000, scoped, tag = 'input window, operand 3, single buffered']
    #allocation6 [shape = 's32[1]{0}', space=sflag, size = 0x4, scoped, tag = 'scoped memory for _lambda_.1']
    #allocation7 [shape = 'u8[24576]{0}', space=vmem, size = 0x6000, scoped, tag = 'input window, operand 7, single buffered']
    #allocation8 [shape = 'u8[1024]{0}', space=vmem, size = 0x400, scoped, tag = 'output window, operand 0, single buffered']
    %14 = vsyncpa [#allocation3], 0
    %15 = vsyncpa [#allocation6], 0
    %16 = vsyncpa [#allocation4], 0
    // Predicated region
    $region2: #{_lambda_.1} parent=1 // pred_check
      _
    $region3: #{_lambda_.1} parent=1 // pred_check_branch
      %18 = sbr.rel (0) target = $region5
    $region4: #{_lambda_.1} parent=1 // pred_region
      _
    $region5: #{_lambda_.1} parent=1 // pred_fallthru
      _
    // Predicated region
    $region6: #{_lambda_.1} parent=1 // pred_check
      _
    $region7: #{_lambda_.1} parent=1 // pred_check_branch
      %20 = sbr.rel (0) target = $region9
    $region8: #{_lambda_.1} parent=1 // pred_region
      %s22 = ssub.s32 6144, 6144
      %23 = vsyncadd [#allocation3], %s22
      %s24 = sshll.u32 [#allocation2], 4
      %s25 = int_to_ptr.vmem [resolvable:$true] %s24
      %30 = dma.hbm_to_vmem [thread:$0]  %s1, 6144, %s25, [#allocation3], 512, 512, 32
    $region9: #{_lambda_.1} parent=1 // pred_fallthru
      _
    // Predicated region
    $region10: #{_lambda_.1} parent=1 // pred_check
      _
    $region11: #{_lambda_.1} parent=1 // pred_check_branch
      %32 = sbr.rel (0) target = $region13
    $region12: #{_lambda_.1} parent=1 // pred_region
      _
    $region13: #{_lambda_.1} parent=1 // pred_fallthru
      _
    // Predicated region
    $region14: #{_lambda_.1} parent=1 // pred_check
      _
    $region15: #{_lambda_.1} parent=1 // pred_check_branch
      %34 = sbr.rel (0) target = $region17
    $region16: #{_lambda_.1} parent=1 // pred_region
      %s36 = ssub.s32 19200, 19200
      %37 = vsyncadd [#allocation6], %s36
      %s38 = sshll.u32 [#allocation5], 4
      %s39 = int_to_ptr.vmem [resolvable:$true] %s38
      %44 = dma.hbm_to_vmem [thread:$0]  %s3, 19200, %s39, [#allocation6], 128, 128, 8
    $region17: #{_lambda_.1} parent=1 // pred_fallthru
      _
    // Predicated region
    $region18: #{_lambda_.1} parent=1 // pred_check
      _
    $region19: #{_lambda_.1} parent=1 // pred_check_branch
      %46 = sbr.rel (0) target = $region21
    $region20: #{_lambda_.1} parent=1 // pred_region
      _
    $region21: #{_lambda_.1} parent=1 // pred_fallthru
      _
    // Predicated region
    $region22: #{_lambda_.1} parent=1 // pred_check
      _
    $region23: #{_lambda_.1} parent=1 // pred_check_branch
      %48 = sbr.rel (0) target = $region25
    $region24: #{_lambda_.1} parent=1 // pred_region
      _
    $region25: #{_lambda_.1} parent=1 // pred_fallthru
      _
    // Predicated region
    $region26: #{_lambda_.1} parent=1 // pred_check
      _
    $region27: #{_lambda_.1} parent=1 // pred_check_branch
      %50 = sbr.rel (0) target = $region29
    $region28: #{_lambda_.1} parent=1 // pred_region
      _
    $region29: #{_lambda_.1} parent=1 // pred_fallthru
      _
    // Predicated region
    $region30: #{_lambda_.1} parent=1 // pred_check
      _
    $region31: #{_lambda_.1} parent=1 // pred_check_branch
      %52 = sbr.rel (0) target = $region33
    $region32: #{_lambda_.1} parent=1 // pred_region
      %s54 = ssub.s32 768, 768
      %55 = vsyncadd [#allocation6], %s54
      %s56 = sshll.u32 [#allocation7], 4
      %s57 = int_to_ptr.vmem [resolvable:$true] %s56
      %62 = dma.hbm_to_vmem [thread:$0]  %s7, 768, %s57, [#allocation6], 128, 128, 8
    $region33: #{_lambda_.1} parent=1 // pred_fallthru
      _
    // Predicated region
    $region34: #{_lambda_.1} parent=1 // pred_check
      _
    $region35: #{_lambda_.1} parent=1 // pred_check_branch
      %64 = sbr.rel (0) target = $region37
    $region36: #{_lambda_.1} parent=1 // pred_region
      _
    $region37: #{_lambda_.1} parent=1 // pred_fallthru
      _
    // Predicated region
    $region38: #{_lambda_.1} parent=1 // pred_check
      _
    $region39: #{_lambda_.1} parent=1 // pred_check_branch
      %66 = sbr.rel (0) target = $region41
    $region40: #{_lambda_.1} parent=1 // pred_region
      %67 = dma.done [#allocation3], 6144
    $region41: #{_lambda_.1} parent=1 // pred_fallthru
      _
    // Predicated region
    $region42: #{_lambda_.1} parent=1 // pred_check
      _
    $region43: #{_lambda_.1} parent=1 // pred_check_branch
      %69 = sbr.rel (0) target = $region45
    $region44: #{_lambda_.1} parent=1 // pred_region
      %70 = dma.done [#allocation6], 19200
    $region45: #{_lambda_.1} parent=1 // pred_fallthru
      _
    // Predicated region
    $region46: #{_lambda_.1} parent=1 // pred_check
      _
    $region47: #{_lambda_.1} parent=1 // pred_check_branch
      %72 = sbr.rel (0) target = $region49
    $region48: #{_lambda_.1} parent=1 // pred_region
      %73 = dma.done [#allocation6], 768
    $region49: #{_lambda_.1} parent=1 // pred_fallthru
      _
    %v74 = vld [vmem:[%s2] sm:$0xf]
    %v75 = vld [vmem:[%s4] sm:$0x1]
    %v76 = vld [vmem:[%s6] sm:$0x1]
    %v77 = vld [vmem:[#allocation2] sm:$0xff]
    %v78 = vld [vmem:[#allocation2 + $0x8] sm:$0xff]
    %v79 = vld [vmem:[#allocation2 + $0x10] sm:$0xff]
    %v80 = vld [vmem:[#allocation2 + $0x18] sm:$0xff]
    %v81 = vld [vmem:[#allocation2 + $0x20] sm:$0xff]
    %v82 = vld [vmem:[#allocation2 + $0x28] sm:$0xff]
    %v83 = vld [vmem:[#allocation2 + $0x30] sm:$0xff]
    %v84 = vld [vmem:[#allocation2 + $0x38] sm:$0xff]
    %v85 = vld [vmem:[#allocation2 + $0x40] sm:$0xff]
    %v86 = vld [vmem:[#allocation2 + $0x48] sm:$0xff]
    %v87 = vld [vmem:[#allocation2 + $0x50] sm:$0xff]
    %v88 = vld [vmem:[#allocation2 + $0x58] sm:$0xff]
    %v89 = vld [vmem:[#allocation2 + $0x60] sm:$0xf]
    %v90 = vld [vmem:[#allocation2 + $0x68] sm:$0xf]
    %v91 = vld [vmem:[#allocation2 + $0x70] sm:$0xf]
    %v92 = vld [vmem:[#allocation2 + $0x78] sm:$0xf]
    %s93 = scalar_lea.vmem [#allocation2], 128
    %v94 = vld [vmem:[%s93] sm:$0xff]
    %v95 = vld [vmem:[%s93 + $0x8] sm:$0xff]
    %v96 = vld [vmem:[%s93 + $0x10] sm:$0xff]
    %v97 = vld [vmem:[%s93 + $0x18] sm:$0xff]
    %v98 = vld [vmem:[%s93 + $0x20] sm:$0xff]
    %v99 = vld [vmem:[%s93 + $0x28] sm:$0xff]
    %v100 = vld [vmem:[%s93 + $0x30] sm:$0xff]
    %v101 = vld [vmem:[%s93 + $0x38] sm:$0xff]
    %v102 = vld [vmem:[%s93 + $0x40] sm:$0xff]
    %v103 = vld [vmem:[%s93 + $0x48] sm:$0xff]
    %v104 = vld [vmem:[%s93 + $0x50] sm:$0xff]
    %v105 = vld [vmem:[%s93 + $0x58] sm:$0xff]
    %v106 = vld [vmem:[%s93 + $0x60] sm:$0xf]
    %v107 = vld [vmem:[%s93 + $0x68] sm:$0xf]
    %v108 = vld [vmem:[%s93 + $0x70] sm:$0xf]
    %v109 = vld [vmem:[%s93 + $0x78] sm:$0xf]
    %s110 = scalar_lea.vmem [#allocation2], 256
    %v111 = vld [vmem:[%s110] sm:$0xff]
    %v112 = vld [vmem:[%s110 + $0x8] sm:$0xff]
    %v113 = vld [vmem:[%s110 + $0x10] sm:$0xff]
    %v114 = vld [vmem:[%s110 + $0x18] sm:$0xff]
    %v115 = vld [vmem:[%s110 + $0x20] sm:$0xff]
    %v116 = vld [vmem:[%s110 + $0x28] sm:$0xff]
    %v117 = vld [vmem:[%s110 + $0x30] sm:$0xff]
    %v118 = vld [vmem:[%s110 + $0x38] sm:$0xff]
    %v119 = vld [vmem:[%s110 + $0x40] sm:$0xff]
    %v120 = vld [vmem:[%s110 + $0x48] sm:$0xff]
    %v121 = vld [vmem:[%s110 + $0x50] sm:$0xff]
    %v122 = vld [vmem:[%s110 + $0x58] sm:$0xff]
    %v123 = vld [vmem:[%s110 + $0x60] sm:$0xf]
    %v124 = vld [vmem:[%s110 + $0x68] sm:$0xf]
    %v125 = vld [vmem:[%s110 + $0x70] sm:$0xf]
    %v126 = vld [vmem:[%s110 + $0x78] sm:$0xf]
    %v127 = vld [vmem:[#allocation5] sm:$0xff]
    %v128 = vld [vmem:[#allocation5 + $0x8] sm:$0xff]
    %v129 = vld [vmem:[#allocation5 + $0x10] sm:$0xff]
    %v130 = vld [vmem:[#allocation5 + $0x18] sm:$0xff]
    %v131 = vld [vmem:[#allocation5 + $0x20] sm:$0xff]
    %v132 = vld [vmem:[#allocation5 + $0x28] sm:$0xff]
    %v133 = vld [vmem:[#allocation5 + $0x30] sm:$0xff]
    %v134 = vld [vmem:[#allocation5 + $0x38] sm:$0xff]
    %v135 = vld [vmem:[#allocation5 + $0x40] sm:$0xff]
    %v136 = vld [vmem:[#allocation5 + $0x48] sm:$0xff]
    %v137 = vld [vmem:[#allocation5 + $0x50] sm:$0xff]
    %v138 = vld [vmem:[#allocation5 + $0x58] sm:$0xff]
    %v139 = vld [vmem:[#allocation5 + $0x60] sm:$0xff]
    %v140 = vld [vmem:[#allocation5 + $0x68] sm:$0xff]
    %v141 = vld [vmem:[#allocation5 + $0x70] sm:$0xff]
    %v142 = vld [vmem:[#allocation5 + $0x78] sm:$0xff]
    %v143 = vld [vmem:[#allocation5 + $0x80] sm:$0xff]
    %v144 = vld [vmem:[#allocation5 + $0x88] sm:$0xff]
    %v145 = vld [vmem:[#allocation5 + $0x90] sm:$0xff]
    %v146 = vld [vmem:[#allocation5 + $0x98] sm:$0xff]
    %v147 = vld [vmem:[#allocation5 + $0xa0] sm:$0xff]
    %v148 = vld [vmem:[#allocation5 + $0xa8] sm:$0xff]
    %v149 = vld [vmem:[#allocation5 + $0xb0] sm:$0xff]
    %v150 = vld [vmem:[#allocation5 + $0xb8] sm:$0xff]
    %v151 = vld [vmem:[#allocation5 + $0xc0] sm:$0xff]
    %v152 = vld [vmem:[#allocation5 + $0xc8] sm:$0xff]
    %v153 = vld [vmem:[#allocation5 + $0xd0] sm:$0xff]
    %v154 = vld [vmem:[#allocation5 + $0xd8] sm:$0xff]
    %v155 = vld [vmem:[#allocation5 + $0xe0] sm:$0xff]
    %v156 = vld [vmem:[#allocation5 + $0xe8] sm:$0xff]
    %v157 = vld [vmem:[#allocation5 + $0xf0] sm:$0xff]
    %v158 = vld [vmem:[#allocation5 + $0xf8] sm:$0xff]
    %v159 = vld [vmem:[#allocation5 + $0x100] sm:$0xff]
    %v160 = vld [vmem:[#allocation5 + $0x108] sm:$0xff]
    %v161 = vld [vmem:[#allocation5 + $0x110] sm:$0xff]
    %v162 = vld [vmem:[#allocation5 + $0x118] sm:$0xff]
    %v163 = vld [vmem:[#allocation5 + $0x120] sm:$0xff]
    %v164 = vld [vmem:[#allocation5 + $0x128] sm:$0xff]
    %v165 = vld [vmem:[#allocation5 + $0x130] sm:$0xff]
    %v166 = vld [vmem:[#allocation5 + $0x138] sm:$0xff]
    %v167 = vld [vmem:[#allocation5 + $0x140] sm:$0xff]
    %v168 = vld [vmem:[#allocation5 + $0x148] sm:$0xff]
    %v169 = vld [vmem:[#allocation5 + $0x150] sm:$0xff]
    %v170 = vld [vmem:[#allocation5 + $0x158] sm:$0xff]
    %v171 = vld [vmem:[#allocation5 + $0x160] sm:$0xff]
    %v172 = vld [vmem:[#allocation5 + $0x168] sm:$0xff]
    %v173 = vld [vmem:[#allocation5 + $0x170] sm:$0xff]
    %v174 = vld [vmem:[#allocation5 + $0x178] sm:$0xff]
    %v175 = vld [vmem:[#allocation5 + $0x180] sm:$0xff]
    %v176 = vld [vmem:[#allocation5 + $0x188] sm:$0xff]
    %s177 = scalar_lea.vmem [#allocation5], 400
    %v178 = vld [vmem:[%s177] sm:$0xff]
    %v179 = vld [vmem:[%s177 + $0x8] sm:$0xff]
    %v180 = vld [vmem:[%s177 + $0x10] sm:$0xff]
    %v181 = vld [vmem:[%s177 + $0x18] sm:$0xff]
    %v182 = vld [vmem:[%s177 + $0x20] sm:$0xff]
    %v183 = vld [vmem:[%s177 + $0x28] sm:$0xff]
    %v184 = vld [vmem:[%s177 + $0x30] sm:$0xff]
    %v185 = vld [vmem:[%s177 + $0x38] sm:$0xff]
    %v186 = vld [vmem:[%s177 + $0x40] sm:$0xff]
    %v187 = vld [vmem:[%s177 + $0x48] sm:$0xff]
    %v188 = vld [vmem:[%s177 + $0x50] sm:$0xff]
    %v189 = vld [vmem:[%s177 + $0x58] sm:$0xff]
    %v190 = vld [vmem:[%s177 + $0x60] sm:$0xff]
    %v191 = vld [vmem:[%s177 + $0x68] sm:$0xff]
    %v192 = vld [vmem:[%s177 + $0x70] sm:$0xff]
    %v193 = vld [vmem:[%s177 + $0x78] sm:$0xff]
    %v194 = vld [vmem:[%s177 + $0x80] sm:$0xff]
    %v195 = vld [vmem:[%s177 + $0x88] sm:$0xff]
    %v196 = vld [vmem:[%s177 + $0x90] sm:$0xff]
    %v197 = vld [vmem:[%s177 + $0x98] sm:$0xff]
    %v198 = vld [vmem:[%s177 + $0xa0] sm:$0xff]
    %v199 = vld [vmem:[%s177 + $0xa8] sm:$0xff]
    %v200 = vld [vmem:[%s177 + $0xb0] sm:$0xff]
    %v201 = vld [vmem:[%s177 + $0xb8] sm:$0xff]
    %v202 = vld [vmem:[%s177 + $0xc0] sm:$0xff]
    %v203 = vld [vmem:[%s177 + $0xc8] sm:$0xff]
    %v204 = vld [vmem:[%s177 + $0xd0] sm:$0xff]
    %v205 = vld [vmem:[%s177 + $0xd8] sm:$0xff]
    %v206 = vld [vmem:[%s177 + $0xe0] sm:$0xff]
    %v207 = vld [vmem:[%s177 + $0xe8] sm:$0xff]
    %v208 = vld [vmem:[%s177 + $0xf0] sm:$0xff]
    %v209 = vld [vmem:[%s177 + $0xf8] sm:$0xff]
    %v210 = vld [vmem:[%s177 + $0x100] sm:$0xff]
    %v211 = vld [vmem:[%s177 + $0x108] sm:$0xff]
    %v212 = vld [vmem:[%s177 + $0x110] sm:$0xff]
    %v213 = vld [vmem:[%s177 + $0x118] sm:$0xff]
    %v214 = vld [vmem:[%s177 + $0x120] sm:$0xff]
    %v215 = vld [vmem:[%s177 + $0x128] sm:$0xff]
    %v216 = vld [vmem:[%s177 + $0x130] sm:$0xff]
    %v217 = vld [vmem:[%s177 + $0x138] sm:$0xff]
    %v218 = vld [vmem:[%s177 + $0x140] sm:$0xff]
    %v219 = vld [vmem:[%s177 + $0x148] sm:$0xff]
    %v220 = vld [vmem:[%s177 + $0x150] sm:$0xff]
    %v221 = vld [vmem:[%s177 + $0x158] sm:$0xff]
    %v222 = vld [vmem:[%s177 + $0x160] sm:$0xff]
    %v223 = vld [vmem:[%s177 + $0x168] sm:$0xff]
    %v224 = vld [vmem:[%s177 + $0x170] sm:$0xff]
    %v225 = vld [vmem:[%s177 + $0x178] sm:$0xff]
    %v226 = vld [vmem:[%s177 + $0x180] sm:$0xff]
    %v227 = vld [vmem:[%s177 + $0x188] sm:$0xff]
    %s228 = scalar_lea.vmem [#allocation5], 800
    %v229 = vld [vmem:[%s228] sm:$0xff]
    %v230 = vld [vmem:[%s228 + $0x8] sm:$0xff]
    %v231 = vld [vmem:[%s228 + $0x10] sm:$0xff]
    %v232 = vld [vmem:[%s228 + $0x18] sm:$0xff]
    %v233 = vld [vmem:[%s228 + $0x20] sm:$0xff]
    %v234 = vld [vmem:[%s228 + $0x28] sm:$0xff]
    %v235 = vld [vmem:[%s228 + $0x30] sm:$0xff]
    %v236 = vld [vmem:[%s228 + $0x38] sm:$0xff]
    %v237 = vld [vmem:[%s228 + $0x40] sm:$0xff]
    %v238 = vld [vmem:[%s228 + $0x48] sm:$0xff]
    %v239 = vld [vmem:[%s228 + $0x50] sm:$0xff]
    %v240 = vld [vmem:[%s228 + $0x58] sm:$0xff]
    %v241 = vld [vmem:[%s228 + $0x60] sm:$0xff]
    %v242 = vld [vmem:[%s228 + $0x68] sm:$0xff]
    %v243 = vld [vmem:[%s228 + $0x70] sm:$0xff]
    %v244 = vld [vmem:[%s228 + $0x78] sm:$0xff]
    %v245 = vld [vmem:[%s228 + $0x80] sm:$0xff]
    %v246 = vld [vmem:[%s228 + $0x88] sm:$0xff]
    %v247 = vld [vmem:[%s228 + $0x90] sm:$0xff]
    %v248 = vld [vmem:[%s228 + $0x98] sm:$0xff]
    %v249 = vld [vmem:[%s228 + $0xa0] sm:$0xff]
    %v250 = vld [vmem:[%s228 + $0xa8] sm:$0xff]
    %v251 = vld [vmem:[%s228 + $0xb0] sm:$0xff]
    %v252 = vld [vmem:[%s228 + $0xb8] sm:$0xff]
    %v253 = vld [vmem:[%s228 + $0xc0] sm:$0xff]
    %v254 = vld [vmem:[%s228 + $0xc8] sm:$0xff]
    %v255 = vld [vmem:[%s228 + $0xd0] sm:$0xff]
    %v256 = vld [vmem:[%s228 + $0xd8] sm:$0xff]
    %v257 = vld [vmem:[%s228 + $0xe0] sm:$0xff]
    %v258 = vld [vmem:[%s228 + $0xe8] sm:$0xff]
    %v259 = vld [vmem:[%s228 + $0xf0] sm:$0xff]
    %v260 = vld [vmem:[%s228 + $0xf8] sm:$0xff]
    %v261 = vld [vmem:[%s228 + $0x100] sm:$0xff]
    %v262 = vld [vmem:[%s228 + $0x108] sm:$0xff]
    %v263 = vld [vmem:[%s228 + $0x110] sm:$0xff]
    %v264 = vld [vmem:[%s228 + $0x118] sm:$0xff]
    %v265 = vld [vmem:[%s228 + $0x120] sm:$0xff]
    %v266 = vld [vmem:[%s228 + $0x128] sm:$0xff]
    %v267 = vld [vmem:[%s228 + $0x130] sm:$0xff]
    %v268 = vld [vmem:[%s228 + $0x138] sm:$0xff]
    %v269 = vld [vmem:[%s228 + $0x140] sm:$0xff]
    %v270 = vld [vmem:[%s228 + $0x148] sm:$0xff]
    %v271 = vld [vmem:[%s228 + $0x150] sm:$0xff]
    %v272 = vld [vmem:[%s228 + $0x158] sm:$0xff]
    %v273 = vld [vmem:[%s228 + $0x160] sm:$0xff]
    %v274 = vld [vmem:[%s228 + $0x168] sm:$0xff]
    %v275 = vld [vmem:[%s228 + $0x170] sm:$0xff]
    %v276 = vld [vmem:[%s228 + $0x178] sm:$0xff]
    %v277 = vld [vmem:[%s228 + $0x180] sm:$0xff]
    %v278 = vld [vmem:[%s228 + $0x188] sm:$0xff]
    %v279 = vld [vmem:[%s5] sm:$0xff]
    %v280 = vld [vmem:[%s5 + $0x8] sm:$0xff]
    %v281 = vld [vmem:[%s5 + $0x10] sm:$0xff]
    %v282 = vld [vmem:[%s5 + $0x18] sm:$0xff]
    %v283 = vld [vmem:[%s5 + $0x20] sm:$0xff]
    %v284 = vld [vmem:[%s5 + $0x28] sm:$0xff]
    %v285 = vld [vmem:[%s5 + $0x30] sm:$0xff]
    %v286 = vld [vmem:[%s5 + $0x38] sm:$0xff]
    %v287 = vld [vmem:[%s5 + $0x40] sm:$0xff]
    %v288 = vld [vmem:[%s5 + $0x48] sm:$0xff]
    %s289 = scalar_lea.vmem %s5, 80
    %v290 = vld [vmem:[%s289] sm:$0xff]
    %v291 = vld [vmem:[%s289 + $0x8] sm:$0xff]
    %v292 = vld [vmem:[%s289 + $0x10] sm:$0xff]
    %v293 = vld [vmem:[%s289 + $0x18] sm:$0xff]
    %v294 = vld [vmem:[%s289 + $0x20] sm:$0xff]
    %v295 = vld [vmem:[%s289 + $0x28] sm:$0xff]
    %v296 = vld [vmem:[%s289 + $0x30] sm:$0xff]
    %v297 = vld [vmem:[%s289 + $0x38] sm:$0xff]
    %v298 = vld [vmem:[%s289 + $0x40] sm:$0xff]
    %v299 = vld [vmem:[%s289 + $0x48] sm:$0xff]
    %s300 = scalar_lea.vmem %s5, 160
    %v301 = vld [vmem:[%s300] sm:$0xff]
    %v302 = vld [vmem:[%s300 + $0x8] sm:$0xff]
    %v303 = vld [vmem:[%s300 + $0x10] sm:$0xff]
    %v304 = vld [vmem:[%s300 + $0x18] sm:$0xff]
    %v305 = vld [vmem:[%s300 + $0x20] sm:$0xff]
    %v306 = vld [vmem:[%s300 + $0x28] sm:$0xff]
    %v307 = vld [vmem:[%s300 + $0x30] sm:$0xff]
    %v308 = vld [vmem:[%s300 + $0x38] sm:$0xff]
    %v309 = vld [vmem:[%s300 + $0x40] sm:$0xff]
    %v310 = vld [vmem:[%s300 + $0x48] sm:$0xff]
    %v311 = vld [vmem:[#allocation7] sm:$0xff]
    %v312 = vld [vmem:[#allocation7 + $0x8] sm:$0xf]
    %s313 = scalar_lea.vmem [#allocation7], 16
    %v314 = vld [vmem:[%s313] sm:$0xff]
    %v315 = vld [vmem:[%s313 + $0x8] sm:$0xf]
    %s316 = scalar_lea.vmem [#allocation7], 32
    %v317 = vld [vmem:[%s316] sm:$0xff]
    %v318 = vld [vmem:[%s316 + $0x8] sm:$0xf]
    %v319 = vld [vmem:[%s8] sm:$0x1]
    %v320 = vld [vmem:[%s0] sm:$0xff]
    %v321 = vld [vmem:[%s0 + $0x8] sm:$0xff]
    %v322 = vld [vmem:[%s0 + $0x10] sm:$0xff]
    %v323 = vld [vmem:[%s0 + $0x18] sm:$0xf]
    %vm328 = vcmask 1046528
    %v329 = vrot.slane %v320, 1
    %v330 = vrot.slane %v321, 1
    %v331 = vsel %vm328, %v329, %v330
    %v332 = vrot.slane %v322, 1
    %v333 = vsel %vm328, %v330, %v332
    %v334 = vrot.slane %v323, 1
    %v335 = vsel %vm328, %v332, %v334
    %vm336 = vcmask 228352
    %v337 = vsel %vm336, %v331, 0
    %v339 = vsel %vm336, %v333, 0
    %v341 = vsel %vm336, %v335, 0
    %v343 = vsel %vm336, %v334, 0
    %vm345 = vcmask 1043456
    %v347 = vsel %vm345, %v106, 0
    %v350 = vsel %vm345, %v107, 0
    %v353 = vsel %vm345, %v108, 0
    %v356 = vsel %vm345, %v109, 0
    %358 = vmatprep.subr.mxu0 %v95
    %359 = vmatpush1.msra.mxu0 %v94
    %360 = vmatprep.subr.mxu0 %v99
    %361 = vmatpush1.msra.mxu0 %v98
    %362 = vmatprep.subr.mxu0 %v103
    %363 = vmatpush1.msra.mxu0 %v102
    %364 = vmatprep.subr.mxu0 %v350
    %365 = vmatpush1.msra.mxu0 %v347
    %366 = vmatprep.subr.mxu0 0.0
    %367 = vmatpush1.msra.mxu0 0.0
    %368 = vmatprep.subr.mxu0 0.0
    %369 = vmatpush1.msra.mxu0 0.0
    %370 = vmatprep.subr.mxu0 0.0
    %371 = vmatpush1.msra.mxu0 0.0
    %372 = vmatprep.subr.mxu0 0.0
    %373 = vmatpush1.msra.mxu0 0.0
    %374 = vmatprep.subr.mxu0 0.0
    %375 = vmatpush1.msra.mxu0 0.0
    %376 = vmatprep.subr.mxu0 0.0
    %377 = vmatpush1.msra.mxu0 0.0
    %378 = vmatprep.subr.mxu0 0.0
    %379 = vmatpush1.msra.mxu0 0.0
    %380 = vmatprep.subr.mxu0 0.0
    %381 = vmatpush1.msra.mxu0 0.0
    %382 = vmatprep.subr.mxu0 0.0
    %383 = vmatpush1.msra.mxu0 0.0
    %384 = vmatprep.subr.mxu0 0.0
    %385 = vmatpush1.msra.mxu0 0.0
    %386 = vmatprep.subr.mxu0 0.0
    %387 = vmatpush1.msra.mxu0 0.0
    %388 = vmatprep.subr.mxu0 0.0
    %389 = vmatpush1.msra.mxu0 0.0
    %390 = vmatprep.subr.mxu0 0.0
    %391 = vmatpush1.msra.mxu0 0.0
    %392 = vmatprep.subr.mxu0 0.0
    %393 = vmatpush1.msra.mxu0 0.0
    %394 = vmatprep.subr.mxu0 0.0
    %395 = vmatpush1.msra.mxu0 0.0
    %396 = vmatprep.subr.mxu0 0.0
    %397 = vmatpush1.msra.mxu0 0.0
    %398 = vmatprep.subr.mxu0 0.0
    %399 = vmatpush1.msra.mxu0 0.0
    %400 = vmatprep.subr.mxu0 0.0
    %401 = vmatpush1.msra.mxu0 0.0
    %402 = vmatprep.subr.mxu0 0.0
    %403 = vmatpush1.msra.mxu0 0.0
    %404 = vmatprep.subr.mxu0 0.0
    %405 = vmatpush1.msra.mxu0 0.0
    %406 = vmatprep.subr.mxu0 0.0
    %407 = vmatpush1.msra.mxu0 0.0
    %408 = vmatprep.subr.mxu0 0.0
    %409 = vmatpush1.msra.mxu0 0.0
    %410 = vmatprep.subr.mxu0 0.0
    %411 = vmatpush1.msra.mxu0 0.0
    %412 = vmatprep.subr.mxu0 0.0
    %413 = vmatpush1.msra.mxu0 0.0
    %414 = vmatprep.subr.mxu0 0.0
    %415 = vmatpush1.msra.mxu0 0.0
    %416 = vmatprep.subr.mxu0 0.0
    %417 = vmatpush1.msra.mxu0 0.0
    %418 = vmatprep.subr.mxu0 0.0
    %419 = vmatpush1.msra.mxu0 0.0
    %420 = vmatprep.subr.mxu0 0.0
    %421 = vmatpush1.msra.mxu0 0.0
    %422 = vmatprep.mubr.f32.mxu0 0.0
    %423 = vmatmul.mubr.f32.gmra.mrb[0].mxu0 %v337
    %v424 = vpop.f32.mrb[0].mxu0
    %v425 = vadd.f32 0.0, %v424
    %v426 = vpop.f32.mrb[0].mxu0
    %v427 = vadd.f32 0.0, %v426
    %428 = vmatprep.mubr.f32.mxu0 0.0
    %429 = vmatmul.mubr.f32.gmra.mrb[0].mxu0 %v339
    %v430 = vpop.f32.mrb[0].mxu0
    %v431 = vadd.f32 0.0, %v430
    %v432 = vpop.f32.mrb[0].mxu0
    %v433 = vadd.f32 0.0, %v432
    %434 = vmatprep.mubr.f32.mxu0 0.0
    %435 = vmatmul.mubr.f32.gmra.mrb[0].mxu0 %v341
    %v436 = vpop.f32.mrb[0].mxu0
    %v437 = vadd.f32 0.0, %v436
    %v438 = vpop.f32.mrb[0].mxu0
    %v439 = vadd.f32 0.0, %v438
    %440 = vmatprep.mubr.f32.mxu0 0.0
    %441 = vmatmul.mubr.f32.gmra.mrb[0].mxu0 %v343
    %v442 = vpop.f32.mrb[0].mxu0
    %v443 = vadd.f32 0.0, %v442
    %v444 = vpop.f32.mrb[0].mxu0
    %v445 = vadd.f32 0.0, %v444
    %446 = vdwg.mxu0
    %447 = vmatprep.subr.mxu0 %v97
    %448 = vmatpush1.msra.mxu0 %v96
    %449 = vmatprep.subr.mxu0 %v101
    %450 = vmatpush1.msra.mxu0 %v100
    %451 = vmatprep.subr.mxu0 %v105
    %452 = vmatpush1.msra.mxu0 %v104
    %453 = vmatprep.subr.mxu0 %v356
    %454 = vmatpush1.msra.mxu0 %v353
    %455 = vmatprep.subr.mxu0 0.0
    %456 = vmatpush1.msra.mxu0 0.0
    %457 = vmatprep.subr.mxu0 0.0
    %458 = vmatpush1.msra.mxu0 0.0
    %459 = vmatprep.subr.mxu0 0.0
    %460 = vmatpush1.msra.mxu0 0.0
    %461 = vmatprep.subr.mxu0 0.0
    %462 = vmatpush1.msra.mxu0 0.0
    %463 = vmatprep.subr.mxu0 0.0
    %464 = vmatpush1.msra.mxu0 0.0
    %465 = vmatprep.subr.mxu0 0.0
    %466 = vmatpush1.msra.mxu0 0.0
    %467 = vmatprep.subr.mxu0 0.0
    %468 = vmatpush1.msra.mxu0 0.0
    %469 = vmatprep.subr.mxu0 0.0
    %470 = vmatpush1.msra.mxu0 0.0
    %471 = vmatprep.subr.mxu0 0.0
    %472 = vmatpush1.msra.mxu0 0.0
    %473 = vmatprep.subr.mxu0 0.0
    %474 = vmatpush1.msra.mxu0 0.0
    %475 = vmatprep.subr.mxu0 0.0
    %476 = vmatpush1.msra.mxu0 0.0
    %477 = vmatprep.subr.mxu0 0.0
    %478 = vmatpush1.msra.mxu0 0.0
    %479 = vmatprep.subr.mxu0 0.0
    %480 = vmatpush1.msra.mxu0 0.0
    %481 = vmatprep.subr.mxu0 0.0
    %482 = vmatpush1.msra.mxu0 0.0
    %483 = vmatprep.subr.mxu0 0.0
    %484 = vmatpush1.msra.mxu0 0.0
    %485 = vmatprep.subr.mxu0 0.0
    %486 = vmatpush1.msra.mxu0 0.0
    %487 = vmatprep.subr.mxu0 0.0
    %488 = vmatpush1.msra.mxu0 0.0
    %489 = vmatprep.subr.mxu0 0.0
    %490 = vmatpush1.msra.mxu0 0.0
    %491 = vmatprep.subr.mxu0 0.0
    %492 = vmatpush1.msra.mxu0 0.0
    %493 = vmatprep.subr.mxu0 0.0
    %494 = vmatpush1.msra.mxu0 0.0
    %495 = vmatprep.subr.mxu0 0.0
    %496 = vmatpush1.msra.mxu0 0.0
    %497 = vmatprep.subr.mxu0 0.0
    %498 = vmatpush1.msra.mxu0 0.0
    %499 = vmatprep.subr.mxu0 0.0
    %500 = vmatpush1.msra.mxu0 0.0
    %501 = vmatprep.subr.mxu0 0.0
    %502 = vmatpush1.msra.mxu0 0.0
    %503 = vmatprep.subr.mxu0 0.0
    %504 = vmatpush1.msra.mxu0 0.0
    %505 = vmatprep.subr.mxu0 0.0
    %506 = vmatpush1.msra.mxu0 0.0
    %507 = vmatprep.subr.mxu0 0.0
    %508 = vmatpush1.msra.mxu0 0.0
    %509 = vmatprep.subr.mxu0 0.0
    %510 = vmatpush1.msra.mxu0 0.0
    %511 = vmatprep.mubr.f32.mxu0 0.0
    %512 = vmatmul.mubr.f32.gmra.mrb[0].mxu0 %v337
    %v513 = vpop.f32.mrb[0].mxu0
    %v514 = vadd.f32 0.0, %v513
    %v515 = vpop.f32.mrb[0].mxu0
    %v516 = vadd.f32 0.0, %v515
    %517 = vmatprep.mubr.f32.mxu0 0.0
    %518 = vmatmul.mubr.f32.gmra.mrb[0].mxu0 %v339
    %v519 = vpop.f32.mrb[0].mxu0
    %v520 = vadd.f32 0.0, %v519
    %v521 = vpop.f32.mrb[0].mxu0
    %v522 = vadd.f32 0.0, %v521
    %523 = vmatprep.mubr.f32.mxu0 0.0
    %524 = vmatmul.mubr.f32.gmra.mrb[0].mxu0 %v341
    %v525 = vpop.f32.mrb[0].mxu0
    %v526 = vadd.f32 0.0, %v525
    %v527 = vpop.f32.mrb[0].mxu0
    %v528 = vadd.f32 0.0, %v527
    %529 = vmatprep.mubr.f32.mxu0 0.0
    %530 = vmatmul.mubr.f32.gmra.mrb[0].mxu0 %v343
    %v531 = vpop.f32.mrb[0].mxu0
    %v532 = vadd.f32 0.0, %v531
    %v533 = vpop.f32.mrb[0].mxu0
    %v534 = vadd.f32 0.0, %v533
    %535 = vdwg.mxu0
    %v536 = vsel %vm336, %v320, 0
    %v538 = vsel %vm336, %v321, 0
    %v540 = vsel %vm336, %v322, 0
    %v542 = vsel %vm336, %v323, 0
    %v545 = vsel %vm345, %v89, 0
    %v548 = vsel %vm345, %v90, 0
    %v551 = vsel %vm345, %v91, 0
    %v554 = vsel %vm345, %v92, 0
    %556 = vmatprep.subr.mxu0 %v78
    %557 = vmatpush1.msra.mxu0 %v77
    %558 = vmatprep.subr.mxu0 %v82
    %559 = vmatpush1.msra.mxu0 %v81
    %560 = vmatprep.subr.mxu0 %v86
    %561 = vmatpush1.msra.mxu0 %v85
    %562 = vmatprep.subr.mxu0 %v548
    %563 = vmatpush1.msra.mxu0 %v545
    %564 = vmatprep.subr.mxu0 0.0
    %565 = vmatpush1.msra.mxu0 0.0
    %566 = vmatprep.subr.mxu0 0.0
    %567 = vmatpush1.msra.mxu0 0.0
    %568 = vmatprep.subr.mxu0 0.0
    %569 = vmatpush1.msra.mxu0 0.0
    %570 = vmatprep.subr.mxu0 0.0
    %571 = vmatpush1.msra.mxu0 0.0
    %572 = vmatprep.subr.mxu0 0.0
    %573 = vmatpush1.msra.mxu0 0.0
    %574 = vmatprep.subr.mxu0 0.0
    %575 = vmatpush1.msra.mxu0 0.0
    %576 = vmatprep.subr.mxu0 0.0
    %577 = vmatpush1.msra.mxu0 0.0
    %578 = vmatprep.subr.mxu0 0.0
    %579 = vmatpush1.msra.mxu0 0.0
    %580 = vmatprep.subr.mxu0 0.0
    %581 = vmatpush1.msra.mxu0 0.0
    %582 = vmatprep.subr.mxu0 0.0
    %583 = vmatpush1.msra.mxu0 0.0
    %584 = vmatprep.subr.mxu0 0.0
    %585 = vmatpush1.msra.mxu0 0.0
    %586 = vmatprep.subr.mxu0 0.0
    %587 = vmatpush1.msra.mxu0 0.0
    %588 = vmatprep.subr.mxu0 0.0
    %589 = vmatpush1.msra.mxu0 0.0
    %590 = vmatprep.subr.mxu0 0.0
    %591 = vmatpush1.msra.mxu0 0.0
    %592 = vmatprep.subr.mxu0 0.0
    %593 = vmatpush1.msra.mxu0 0.0
    %594 = vmatprep.subr.mxu0 0.0
    %595 = vmatpush1.msra.mxu0 0.0
    %596 = vmatprep.subr.mxu0 0.0
    %597 = vmatpush1.msra.mxu0 0.0
    %598 = vmatprep.subr.mxu0 0.0
    %599 = vmatpush1.msra.mxu0 0.0
    %600 = vmatprep.subr.mxu0 0.0
    %601 = vmatpush1.msra.mxu0 0.0
    %602 = vmatprep.subr.mxu0 0.0
    %603 = vmatpush1.msra.mxu0 0.0
    %604 = vmatprep.subr.mxu0 0.0
    %605 = vmatpush1.msra.mxu0 0.0
    %606 = vmatprep.subr.mxu0 0.0
    %607 = vmatpush1.msra.mxu0 0.0
    %608 = vmatprep.subr.mxu0 0.0
    %609 = vmatpush1.msra.mxu0 0.0
    %610 = vmatprep.subr.mxu0 0.0
    %611 = vmatpush1.msra.mxu0 0.0
    %612 = vmatprep.subr.mxu0 0.0
    %613 = vmatpush1.msra.mxu0 0.0
    %614 = vmatprep.subr.mxu0 0.0
    %615 = vmatpush1.msra.mxu0 0.0
    %616 = vmatprep.subr.mxu0 0.0
    %617 = vmatpush1.msra.mxu0 0.0
    %618 = vmatprep.subr.mxu0 0.0
    %619 = vmatpush1.msra.mxu0 0.0
    %620 = vmatprep.mubr.f32.mxu0 0.0
    %621 = vmatmul.mubr.f32.gmra.mrb[0].mxu0 %v536
    %v622 = vpop.f32.mrb[0].mxu0
    %v623 = vadd.f32 %v425, %v622
    %v624 = vpop.f32.mrb[0].mxu0
    %v625 = vadd.f32 %v427, %v624
    %626 = vmatprep.mubr.f32.mxu0 0.0
    %627 = vmatmul.mubr.f32.gmra.mrb[0].mxu0 %v538
    %v628 = vpop.f32.mrb[0].mxu0
    %v629 = vadd.f32 %v431, %v628
    %v630 = vpop.f32.mrb[0].mxu0
    %v631 = vadd.f32 %v433, %v630
    %632 = vmatprep.mubr.f32.mxu0 0.0
    %633 = vmatmul.mubr.f32.gmra.mrb[0].mxu0 %v540
    %v634 = vpop.f32.mrb[0].mxu0
    %v635 = vadd.f32 %v437, %v634
    %v636 = vpop.f32.mrb[0].mxu0
    %v637 = vadd.f32 %v439, %v636
    %638 = vmatprep.mubr.f32.mxu0 0.0
    %639 = vmatmul.mubr.f32.gmra.mrb[0].mxu0 %v542
    %v640 = vpop.f32.mrb[0].mxu0
    %v641 = vadd.f32 %v443, %v640
    %v642 = vpop.f32.mrb[0].mxu0
    %v643 = vadd.f32 %v445, %v642
    %644 = vdwg.mxu0
    %645 = vmatprep.subr.mxu0 %v80
    %646 = vmatpush1.msra.mxu0 %v79
    %647 = vmatprep.subr.mxu0 %v84
    %648 = vmatpush1.msra.mxu0 %v83
    %649 = vmatprep.subr.mxu0 %v88
    %650 = vmatpush1.msra.mxu0 %v87
    %651 = vmatprep.subr.mxu0 %v554
    %652 = vmatpush1.msra.mxu0 %v551
    %653 = vmatprep.subr.mxu0 0.0
    %654 = vmatpush1.msra.mxu0 0.0
    %655 = vmatprep.subr.mxu0 0.0
    %656 = vmatpush1.msra.mxu0 0.0
    %657 = vmatprep.subr.mxu0 0.0
    %658 = vmatpush1.msra.mxu0 0.0
    %659 = vmatprep.subr.mxu0 0.0
    %660 = vmatpush1.msra.mxu0 0.0
    %661 = vmatprep.subr.mxu0 0.0
    %662 = vmatpush1.msra.mxu0 0.0
    %663 = vmatprep.subr.mxu0 0.0
    %664 = vmatpush1.msra.mxu0 0.0
    %665 = vmatprep.subr.mxu0 0.0
    %666 = vmatpush1.msra.mxu0 0.0
    %667 = vmatprep.subr.mxu0 0.0
    %668 = vmatpush1.msra.mxu0 0.0
    %669 = vmatprep.subr.mxu0 0.0
    %670 = vmatpush1.msra.mxu0 0.0
    %671 = vmatprep.subr.mxu0 0.0
    %672 = vmatpush1.msra.mxu0 0.0
    %673 = vmatprep.subr.mxu0 0.0
    %674 = vmatpush1.msra.mxu0 0.0
    %675 = vmatprep.subr.mxu0 0.0
    %676 = vmatpush1.msra.mxu0 0.0
    %677 = vmatprep.subr.mxu0 0.0
    %678 = vmatpush1.msra.mxu0 0.0
    %679 = vmatprep.subr.mxu0 0.0
    %680 = vmatpush1.msra.mxu0 0.0
    %681 = vmatprep.subr.mxu0 0.0
    %682 = vmatpush1.msra.mxu0 0.0
    %683 = vmatprep.subr.mxu0 0.0
    %684 = vmatpush1.msra.mxu0 0.0
    %685 = vmatprep.subr.mxu0 0.0
    %686 = vmatpush1.msra.mxu0 0.0
    %687 = vmatprep.subr.mxu0 0.0
    %688 = vmatpush1.msra.mxu0 0.0
    %689 = vmatprep.subr.mxu0 0.0
    %690 = vmatpush1.msra.mxu0 0.0
    %691 = vmatprep.subr.mxu0 0.0
    %692 = vmatpush1.msra.mxu0 0.0
    %693 = vmatprep.subr.mxu0 0.0
    %694 = vmatpush1.msra.mxu0 0.0
    %695 = vmatprep.subr.mxu0 0.0
    %696 = vmatpush1.msra.mxu0 0.0
    %697 = vmatprep.subr.mxu0 0.0
    %698 = vmatpush1.msra.mxu0 0.0
    %699 = vmatprep.subr.mxu0 0.0
    %700 = vmatpush1.msra.mxu0 0.0
    %701 = vmatprep.subr.mxu0 0.0
    %702 = vmatpush1.msra.mxu0 0.0
    %703 = vmatprep.subr.mxu0 0.0
    %704 = vmatpush1.msra.mxu0 0.0
    %705 = vmatprep.subr.mxu0 0.0
    %706 = vmatpush1.msra.mxu0 0.0
    %707 = vmatprep.subr.mxu0 0.0
    %708 = vmatpush1.msra.mxu0 0.0
    %709 = vmatprep.mubr.f32.mxu0 0.0
    %710 = vmatmul.mubr.f32.gmra.mrb[0].mxu0 %v536
    %v711 = vpop.f32.mrb[0].mxu0
    %v712 = vadd.f32 %v514, %v711
    %v713 = vpop.f32.mrb[0].mxu0
    %v714 = vadd.f32 %v516, %v713
    %715 = vmatprep.mubr.f32.mxu0 0.0
    %716 = vmatmul.mubr.f32.gmra.mrb[0].mxu0 %v538
    %v717 = vpop.f32.mrb[0].mxu0
    %v718 = vadd.f32 %v520, %v717
    %v719 = vpop.f32.mrb[0].mxu0
    %v720 = vadd.f32 %v522, %v719
    %721 = vmatprep.mubr.f32.mxu0 0.0
    %722 = vmatmul.mubr.f32.gmra.mrb[0].mxu0 %v540
    %v723 = vpop.f32.mrb[0].mxu0
    %v724 = vadd.f32 %v526, %v723
    %v725 = vpop.f32.mrb[0].mxu0
    %v726 = vadd.f32 %v528, %v725
    %727 = vmatprep.mubr.f32.mxu0 0.0
    %728 = vmatmul.mubr.f32.gmra.mrb[0].mxu0 %v542
    %v729 = vpop.f32.mrb[0].mxu0
    %v730 = vadd.f32 %v532, %v729
    %v731 = vpop.f32.mrb[0].mxu0
    %v732 = vadd.f32 %v534, %v731
    %733 = vdwg.mxu0
    %vm734 = vcmask 1045504
    %v735 = vrot.slane %v320, 2
    %v736 = vrot.slane %v321, 2
    %v737 = vsel %vm734, %v735, %v736
    %v738 = vrot.slane %v322, 2
    %v739 = vsel %vm734, %v736, %v738
    %v740 = vrot.slane %v323, 2
    %v741 = vsel %vm734, %v738, %v740
    %v742 = vsel %vm336, %v737, 0
    %v744 = vsel %vm336, %v739, 0
    %v746 = vsel %vm336, %v741, 0
    %v748 = vsel %vm336, %v740, 0
    %v751 = vsel %vm345, %v123, 0
    %v754 = vsel %vm345, %v124, 0
    %v757 = vsel %vm345, %v125, 0
    %v760 = vsel %vm345, %v126, 0
    %762 = vmatprep.subr.mxu0 %v112
    %763 = vmatpush1.msra.mxu0 %v111
    %764 = vmatprep.subr.mxu0 %v116
    %765 = vmatpush1.msra.mxu0 %v115
    %766 = vmatprep.subr.mxu0 %v120
    %767 = vmatpush1.msra.mxu0 %v119
    %768 = vmatprep.subr.mxu0 %v754
    %769 = vmatpush1.msra.mxu0 %v751
    %770 = vmatprep.subr.mxu0 0.0
    %771 = vmatpush1.msra.mxu0 0.0
    %772 = vmatprep.subr.mxu0 0.0
    %773 = vmatpush1.msra.mxu0 0.0
    %774 = vmatprep.subr.mxu0 0.0
    %775 = vmatpush1.msra.mxu0 0.0
    %776 = vmatprep.subr.mxu0 0.0
    %777 = vmatpush1.msra.mxu0 0.0
    %778 = vmatprep.subr.mxu0 0.0
    %779 = vmatpush1.msra.mxu0 0.0
    %780 = vmatprep.subr.mxu0 0.0
    %781 = vmatpush1.msra.mxu0 0.0
    %782 = vmatprep.subr.mxu0 0.0
    %783 = vmatpush1.msra.mxu0 0.0
    %784 = vmatprep.subr.mxu0 0.0
    %785 = vmatpush1.msra.mxu0 0.0
    %786 = vmatprep.subr.mxu0 0.0
    %787 = vmatpush1.msra.mxu0 0.0
    %788 = vmatprep.subr.mxu0 0.0
    %789 = vmatpush1.msra.mxu0 0.0
    %790 = vmatprep.subr.mxu0 0.0
    %791 = vmatpush1.msra.mxu0 0.0
    %792 = vmatprep.subr.mxu0 0.0
    %793 = vmatpush1.msra.mxu0 0.0
    %794 = vmatprep.subr.mxu0 0.0
    %795 = vmatpush1.msra.mxu0 0.0
    %796 = vmatprep.subr.mxu0 0.0
    %797 = vmatpush1.msra.mxu0 0.0
    %798 = vmatprep.subr.mxu0 0.0
    %799 = vmatpush1.msra.mxu0 0.0
    %800 = vmatprep.subr.mxu0 0.0
    %801 = vmatpush1.msra.mxu0 0.0
    %802 = vmatprep.subr.mxu0 0.0
    %803 = vmatpush1.msra.mxu0 0.0
    %804 = vmatprep.subr.mxu0 0.0
    %805 = vmatpush1.msra.mxu0 0.0
    %806 = vmatprep.subr.mxu0 0.0
    %807 = vmatpush1.msra.mxu0 0.0
    %808 = vmatprep.subr.mxu0 0.0
    %809 = vmatpush1.msra.mxu0 0.0
    %810 = vmatprep.subr.mxu0 0.0
    %811 = vmatpush1.msra.mxu0 0.0
    %812 = vmatprep.subr.mxu0 0.0
    %813 = vmatpush1.msra.mxu0 0.0
    %814 = vmatprep.subr.mxu0 0.0
    %815 = vmatpush1.msra.mxu0 0.0
    %816 = vmatprep.subr.mxu0 0.0
    %817 = vmatpush1.msra.mxu0 0.0
    %818 = vmatprep.subr.mxu0 0.0
    %819 = vmatpush1.msra.mxu0 0.0
    %820 = vmatprep.subr.mxu0 0.0
    %821 = vmatpush1.msra.mxu0 0.0
    %822 = vmatprep.subr.mxu0 0.0
    %823 = vmatpush1.msra.mxu0 0.0
    %824 = vmatprep.subr.mxu0 0.0
    %825 = vmatpush1.msra.mxu0 0.0
    %826 = vmatprep.mubr.f32.mxu0 0.0
    %827 = vmatmul.mubr.f32.gmra.mrb[0].mxu0 %v742
    %v828 = vpop.f32.mrb[0].mxu0
    %v829 = vadd.f32 0.0, %v828
    %v830 = vpop.f32.mrb[0].mxu0
    %v831 = vadd.f32 0.0, %v830
    %832 = vmatprep.mubr.f32.mxu0 0.0
    %833 = vmatmul.mubr.f32.gmra.mrb[0].mxu0 %v744
    %v834 = vpop.f32.mrb[0].mxu0
    %v835 = vadd.f32 0.0, %v834
    %v836 = vpop.f32.mrb[0].mxu0
    %v837 = vadd.f32 0.0, %v836
    %838 = vmatprep.mubr.f32.mxu0 0.0
    %839 = vmatmul.mubr.f32.gmra.mrb[0].mxu0 %v746
    %v840 = vpop.f32.mrb[0].mxu0
    %v841 = vadd.f32 0.0, %v840
    %v842 = vpop.f32.mrb[0].mxu0
    %v843 = vadd.f32 0.0, %v842
    %844 = vmatprep.mubr.f32.mxu0 0.0
    %845 = vmatmul.mubr.f32.gmra.mrb[0].mxu0 %v748
    %v846 = vpop.f32.mrb[0].mxu0
    %v847 = vadd.f32 0.0, %v846
    %v848 = vpop.f32.mrb[0].mxu0
    %v849 = vadd.f32 0.0, %v848
    %850 = vdwg.mxu0
    %851 = vmatprep.subr.mxu0 %v114
    %852 = vmatpush1.msra.mxu0 %v113
    %853 = vmatprep.subr.mxu0 %v118
    %854 = vmatpush1.msra.mxu0 %v117
    %855 = vmatprep.subr.mxu0 %v122
    %856 = vmatpush1.msra.mxu0 %v121
    %857 = vmatprep.subr.mxu0 %v760
    %858 = vmatpush1.msra.mxu0 %v757
    %859 = vmatprep.subr.mxu0 0.0
    %860 = vmatpush1.msra.mxu0 0.0
    %861 = vmatprep.subr.mxu0 0.0
    %862 = vmatpush1.msra.mxu0 0.0
    %863 = vmatprep.subr.mxu0 0.0
    %864 = vmatpush1.msra.mxu0 0.0
    %865 = vmatprep.subr.mxu0 0.0
    %866 = vmatpush1.msra.mxu0 0.0
    %867 = vmatprep.subr.mxu0 0.0
    %868 = vmatpush1.msra.mxu0 0.0
    %869 = vmatprep.subr.mxu0 0.0
    %870 = vmatpush1.msra.mxu0 0.0
    %871 = vmatprep.subr.mxu0 0.0
    %872 = vmatpush1.msra.mxu0 0.0
    %873 = vmatprep.subr.mxu0 0.0
    %874 = vmatpush1.msra.mxu0 0.0
    %875 = vmatprep.subr.mxu0 0.0
    %876 = vmatpush1.msra.mxu0 0.0
    %877 = vmatprep.subr.mxu0 0.0
    %878 = vmatpush1.msra.mxu0 0.0
    %879 = vmatprep.subr.mxu0 0.0
    %880 = vmatpush1.msra.mxu0 0.0
    %881 = vmatprep.subr.mxu0 0.0
    %882 = vmatpush1.msra.mxu0 0.0
    %883 = vmatprep.subr.mxu0 0.0
    %884 = vmatpush1.msra.mxu0 0.0
    %885 = vmatprep.subr.mxu0 0.0
    %886 = vmatpush1.msra.mxu0 0.0
    %887 = vmatprep.subr.mxu0 0.0
    %888 = vmatpush1.msra.mxu0 0.0
    %889 = vmatprep.subr.mxu0 0.0
    %890 = vmatpush1.msra.mxu0 0.0
    %891 = vmatprep.subr.mxu0 0.0
    %892 = vmatpush1.msra.mxu0 0.0
    %893 = vmatprep.subr.mxu0 0.0
    %894 = vmatpush1.msra.mxu0 0.0
    %895 = vmatprep.subr.mxu0 0.0
    %896 = vmatpush1.msra.mxu0 0.0
    %897 = vmatprep.subr.mxu0 0.0
    %898 = vmatpush1.msra.mxu0 0.0
    %899 = vmatprep.subr.mxu0 0.0
    %900 = vmatpush1.msra.mxu0 0.0
    %901 = vmatprep.subr.mxu0 0.0
    %902 = vmatpush1.msra.mxu0 0.0
    %903 = vmatprep.subr.mxu0 0.0
    %904 = vmatpush1.msra.mxu0 0.0
    %905 = vmatprep.subr.mxu0 0.0
    %906 = vmatpush1.msra.mxu0 0.0
    %907 = vmatprep.subr.mxu0 0.0
    %908 = vmatpush1.msra.mxu0 0.0
    %909 = vmatprep.subr.mxu0 0.0
    %910 = vmatpush1.msra.mxu0 0.0
    %911 = vmatprep.subr.mxu0 0.0
    %912 = vmatpush1.msra.mxu0 0.0
    %913 = vmatprep.subr.mxu0 0.0
    %914 = vmatpush1.msra.mxu0 0.0
    %915 = vmatprep.mubr.f32.mxu0 0.0
    %916 = vmatmul.mubr.f32.gmra.mrb[0].mxu0 %v742
    %v917 = vpop.f32.mrb[0].mxu0
    %v918 = vadd.f32 0.0, %v917
    %v919 = vpop.f32.mrb[0].mxu0
    %v920 = vadd.f32 0.0, %v919
    %921 = vmatprep.mubr.f32.mxu0 0.0
    %922 = vmatmul.mubr.f32.gmra.mrb[0].mxu0 %v744
    %v923 = vpop.f32.mrb[0].mxu0
    %v924 = vadd.f32 0.0, %v923
    %v925 = vpop.f32.mrb[0].mxu0
    %v926 = vadd.f32 0.0, %v925
    %927 = vmatprep.mubr.f32.mxu0 0.0
    %928 = vmatmul.mubr.f32.gmra.mrb[0].mxu0 %v746
    %v929 = vpop.f32.mrb[0].mxu0
    %v930 = vadd.f32 0.0, %v929
    %v931 = vpop.f32.mrb[0].mxu0
    %v932 = vadd.f32 0.0, %v931
    %933 = vmatprep.mubr.f32.mxu0 0.0
    %934 = vmatmul.mubr.f32.gmra.mrb[0].mxu0 %v748
    %v935 = vpop.f32.mrb[0].mxu0
    %v936 = vadd.f32 0.0, %v935
    %v937 = vpop.f32.mrb[0].mxu0
    %v938 = vadd.f32 0.0, %v937
    %939 = vdwg.mxu0
    %v940 = vadd.f32 %v623, %v829
    %v941 = vadd.f32 %v625, %v831
    %v942 = vadd.f32 %v712, %v918
    %v943 = vadd.f32 %v714, %v920
    %v944 = vadd.f32 %v629, %v835
    %v945 = vadd.f32 %v631, %v837
    %v946 = vadd.f32 %v718, %v924
    %v947 = vadd.f32 %v720, %v926
    %v948 = vadd.f32 %v635, %v841
    %v949 = vadd.f32 %v637, %v843
    %v950 = vadd.f32 %v724, %v930
    %v951 = vadd.f32 %v726, %v932
    %v952 = vadd.f32 %v641, %v847
    %v953 = vadd.f32 %v643, %v849
    %v954 = vadd.f32 %v730, %v936
    %v955 = vadd.f32 %v732, %v938
    %v957 = vlaneseq
    %v958 = vshrl.u32 %v957, 7
    %v959 = vsub.s32 0, %v958
    %v960 = vrot.slane %v74, %v959
    %v961 = vlaneseq
    %v962 = vshrl.u32 %v961, 7
    %v963 = vsub.s32 1, %v962
    %v964 = vrot.slane %v74, %v963
    %v965 = vlaneseq
    %v966 = vshrl.u32 %v965, 7
    %v967 = vsub.s32 2, %v966
    %v968 = vrot.slane %v74, %v967
    %v969 = vlaneseq
    %v970 = vshrl.u32 %v969, 7
    %v971 = vsub.s32 3, %v970
    %v972 = vrot.slane %v74, %v971
    %v977 = vadd.f32 %v940, %v960
    %v978 = vadd.f32 %v941, %v964
    %v979 = vadd.f32 %v942, %v968
    %v980 = vadd.f32 %v943, %v972
    %v981 = vadd.f32 %v944, %v960
    %v982 = vadd.f32 %v945, %v964
    %v983 = vadd.f32 %v946, %v968
    %v984 = vadd.f32 %v947, %v972
    %v985 = vadd.f32 %v948, %v960
    %v986 = vadd.f32 %v949, %v964
    %v987 = vadd.f32 %v950, %v968
    %v988 = vadd.f32 %v951, %v972
    %v989 = vadd.f32 %v952, %v960
    %v990 = vadd.f32 %v953, %v964
    %v991 = vadd.f32 %v954, %v968
    %v992 = vadd.f32 %v955, %v972
    %vm993 = vcmp.ge.f32.partialorder %v977, 0.0
    %vm994 = vcmp.ge.f32.partialorder %v978, 0.0
    %vm995 = vcmp.ge.f32.partialorder %v979, 0.0
    %vm996 = vcmp.ge.f32.partialorder %v980, 0.0
    %vm997 = vcmp.ge.f32.partialorder %v981, 0.0
    %vm998 = vcmp.ge.f32.partialorder %v982, 0.0
    %vm999 = vcmp.ge.f32.partialorder %v983, 0.0
    %vm1000 = vcmp.ge.f32.partialorder %v984, 0.0
    %vm1001 = vcmp.ge.f32.partialorder %v985, 0.0
    %vm1002 = vcmp.ge.f32.partialorder %v986, 0.0
    %vm1003 = vcmp.ge.f32.partialorder %v987, 0.0
    %vm1004 = vcmp.ge.f32.partialorder %v988, 0.0
    %vm1005 = vcmp.ge.f32.partialorder %v989, 0.0
    %vm1006 = vcmp.ge.f32.partialorder %v990, 0.0
    %vm1007 = vcmp.ge.f32.partialorder %v991, 0.0
    %vm1008 = vcmp.ge.f32.partialorder %v992, 0.0
    %v1009 = vmul.f32 %v977, 0.1
    %v1010 = vmul.f32 %v978, 0.1
    %v1011 = vmul.f32 %v979, 0.1
    %v1012 = vmul.f32 %v980, 0.1
    %v1013 = vmul.f32 %v981, 0.1
    %v1014 = vmul.f32 %v982, 0.1
    %v1015 = vmul.f32 %v983, 0.1
    %v1016 = vmul.f32 %v984, 0.1
    %v1017 = vmul.f32 %v985, 0.1
    %v1018 = vmul.f32 %v986, 0.1
    %v1019 = vmul.f32 %v987, 0.1
    %v1020 = vmul.f32 %v988, 0.1
    %v1021 = vmul.f32 %v989, 0.1
    %v1022 = vmul.f32 %v990, 0.1
    %v1023 = vmul.f32 %v991, 0.1
    %v1024 = vmul.f32 %v992, 0.1
    %v1025 = vsel %vm993, %v977, %v1009
    %v1026 = vsel %vm994, %v978, %v1010
    %v1027 = vsel %vm995, %v979, %v1011
    %v1028 = vsel %vm996, %v980, %v1012
    %v1029 = vsel %vm997, %v981, %v1013
    %v1030 = vsel %vm998, %v982, %v1014
    %v1031 = vsel %vm999, %v983, %v1015
    %v1032 = vsel %vm1000, %v984, %v1016
    %v1033 = vsel %vm1001, %v985, %v1017
    %v1034 = vsel %vm1002, %v986, %v1018
    %v1035 = vsel %vm1003, %v987, %v1019
    %v1036 = vsel %vm1004, %v988, %v1020
    %v1037 = vsel %vm1005, %v989, %v1021
    %v1038 = vsel %vm1006, %v990, %v1022
    %v1039 = vsel %vm1007, %v991, %v1023
    %v1040 = vsel %vm1008, %v992, %v1024
    %v1057 = vrot.slane %v1025, 1
    %v1058 = vrot.slane %v1029, 1
    %v1059 = vsel %vm328, %v1057, %v1058
    %v1060 = vrot.slane %v1026, 1
    %v1061 = vrot.slane %v1030, 1
    %v1062 = vsel %vm328, %v1060, %v1061
    %v1063 = vrot.slane %v1027, 1
    %v1064 = vrot.slane %v1031, 1
    %v1065 = vsel %vm328, %v1063, %v1064
    %v1066 = vrot.slane %v1028, 1
    %v1067 = vrot.slane %v1032, 1
    %v1068 = vsel %vm328, %v1066, %v1067
    %v1069 = vrot.slane %v1033, 1
    %v1070 = vsel %vm328, %v1058, %v1069
    %v1071 = vrot.slane %v1034, 1
    %v1072 = vsel %vm328, %v1061, %v1071
    %v1073 = vrot.slane %v1035, 1
    %v1074 = vsel %vm328, %v1064, %v1073
    %v1075 = vrot.slane %v1036, 1
    %v1076 = vsel %vm328, %v1067, %v1075
    %v1077 = vrot.slane %v1037, 1
    %v1078 = vsel %vm328, %v1069, %v1077
    %v1079 = vrot.slane %v1038, 1
    %v1080 = vsel %vm328, %v1071, %v1079
    %v1081 = vrot.slane %v1039, 1
    %v1082 = vsel %vm328, %v1073, %v1081
    %v1083 = vrot.slane %v1040, 1
    %v1084 = vsel %vm328, %v1075, %v1083
    %v1101 = vmax.f32 %v1025, %v1059
    %v1102 = vmax.f32 %v1026, %v1062
    %v1103 = vmax.f32 %v1027, %v1065
    %v1104 = vmax.f32 %v1028, %v1068
    %v1105 = vmax.f32 %v1029, %v1070
    %v1106 = vmax.f32 %v1030, %v1072
    %v1107 = vmax.f32 %v1031, %v1074
    %v1108 = vmax.f32 %v1032, %v1076
    %v1109 = vmax.f32 %v1033, %v1078
    %v1110 = vmax.f32 %v1034, %v1080
    %v1111 = vmax.f32 %v1035, %v1082
    %v1112 = vmax.f32 %v1036, %v1084
    %v1113 = vmax.f32 %v1037, %v1077
    %v1114 = vmax.f32 %v1038, %v1079
    %v1115 = vmax.f32 %v1039, %v1081
    %v1116 = vmax.f32 %v1040, %v1083
    %1133 = vrot.lane.b32.xlu0 %v1101, 112
    %v1134 = vpop.permute.xlu0 %1133
    %1135 = vrot.lane.b32.xlu0 %v1102, 112
    %v1136 = vpop.permute.xlu0 %1135
    %1137 = vrot.lane.b32.xlu0 %v1103, 112
    %v1138 = vpop.permute.xlu0 %1137
    %1139 = vrot.lane.b32.xlu0 %v1104, 112
    %v1140 = vpop.permute.xlu0 %1139
    %1141 = vrot.lane.b32.xlu0 %v1105, 112
    %v1142 = vpop.permute.xlu0 %1141
    %1143 = vrot.lane.b32.xlu0 %v1106, 112
    %v1144 = vpop.permute.xlu0 %1143
    %1145 = vrot.lane.b32.xlu0 %v1107, 112
    %v1146 = vpop.permute.xlu0 %1145
    %1147 = vrot.lane.b32.xlu0 %v1108, 112
    %v1148 = vpop.permute.xlu0 %1147
    %1149 = vrot.lane.b32.xlu0 %v1109, 112
    %v1150 = vpop.permute.xlu0 %1149
    %1151 = vrot.lane.b32.xlu0 %v1110, 112
    %v1152 = vpop.permute.xlu0 %1151
    %1153 = vrot.lane.b32.xlu0 %v1111, 112
    %v1154 = vpop.permute.xlu0 %1153
    %1155 = vrot.lane.b32.xlu0 %v1112, 112
    %v1156 = vpop.permute.xlu0 %1155
    %1157 = vrot.lane.b32.xlu0 %v1113, 112
    %v1158 = vpop.permute.xlu0 %1157
    %1159 = vrot.lane.b32.xlu0 %v1114, 112
    %v1160 = vpop.permute.xlu0 %1159
    %1161 = vrot.lane.b32.xlu0 %v1115, 112
    %v1162 = vpop.permute.xlu0 %1161
    %1163 = vrot.lane.b32.xlu0 %v1116, 112
    %v1164 = vpop.permute.xlu0 %1163
    %vm1165 = vcmask 916480
    %v1166 = vsel %vm1165, %v1134, %v1136
    %v1167 = vsel %vm1165, %v1136, %v1138
    %v1168 = vsel %vm1165, %v1138, %v1140
    %v1169 = vsel %vm1165, %v1142, %v1144
    %v1170 = vsel %vm1165, %v1144, %v1146
    %v1171 = vsel %vm1165, %v1146, %v1148
    %v1172 = vsel %vm1165, %v1150, %v1152
    %v1173 = vsel %vm1165, %v1152, %v1154
    %v1174 = vsel %vm1165, %v1154, %v1156
    %v1175 = vsel %vm1165, %v1158, %v1160
    %v1176 = vsel %vm1165, %v1160, %v1162
    %v1177 = vsel %vm1165, %v1162, %v1164
    %v1194 = vmax.f32 %v1101, %v1166
    %v1195 = vmax.f32 %v1102, %v1167
    %v1196 = vmax.f32 %v1103, %v1168
    %v1197 = vmax.f32 %v1104, %v1140
    %v1198 = vmax.f32 %v1105, %v1169
    %v1199 = vmax.f32 %v1106, %v1170
    %v1200 = vmax.f32 %v1107, %v1171
    %v1201 = vmax.f32 %v1108, %v1148
    %v1202 = vmax.f32 %v1109, %v1172
    %v1203 = vmax.f32 %v1110, %v1173
    %v1204 = vmax.f32 %v1111, %v1174
    %v1205 = vmax.f32 %v1112, %v1156
    %v1206 = vmax.f32 %v1113, %v1175
    %v1207 = vmax.f32 %v1114, %v1176
    %v1208 = vmax.f32 %v1115, %v1177
    %v1209 = vmax.f32 %v1116, %v1164
    %v1222 = vrot.slane %v1194, 2
    %v1223 = vrot.slane %v1198, 2
    %v1224 = vsel %vm734, %v1222, %v1223
    %v1225 = vrot.slane %v1195, 2
    %v1226 = vrot.slane %v1199, 2
    %v1227 = vsel %vm734, %v1225, %v1226
    %v1228 = vrot.slane %v1196, 2
    %v1229 = vrot.slane %v1200, 2
    %v1230 = vsel %vm734, %v1228, %v1229
    %v1231 = vrot.slane %v1197, 2
    %v1232 = vrot.slane %v1201, 2
    %v1233 = vsel %vm734, %v1231, %v1232
    %v1234 = vrot.slane %v1202, 2
    %v1235 = vsel %vm734, %v1223, %v1234
    %v1236 = vrot.slane %v1203, 2
    %v1237 = vsel %vm734, %v1226, %v1236
    %v1238 = vrot.slane %v1204, 2
    %v1239 = vsel %vm734, %v1229, %v1238
    %v1240 = vrot.slane %v1205, 2
    %v1241 = vsel %vm734, %v1232, %v1240
    %vm1251 = vcmask 130048
    %v1252 = vsel %vm1251, %v1233, 0
    %v1254 = vsel %vm1251, %v1241, 0
    %v1256 = vsel %vm1251, %v1240, 0
    %1258 = vmatprep.subr.mxu0 0.0
    %1259 = vmatpush1.msra.mxu0 %v178
    %1260 = vmatprep.subr.mxu0 0.0
    %1261 = vmatpush1.msra.mxu0 %v179
    %1262 = vmatprep.subr.mxu0 0.0
    %1263 = vmatpush1.msra.mxu0 %v180
    %1264 = vmatprep.subr.mxu0 0.0
    %1265 = vmatpush1.msra.mxu0 %v181
    %1266 = vmatprep.subr.mxu0 0.0
    %1267 = vmatpush1.msra.mxu0 %v182
    %1268 = vmatprep.subr.mxu0 0.0
    %1269 = vmatpush1.msra.mxu0 %v183
    %1270 = vmatprep.subr.mxu0 0.0
    %1271 = vmatpush1.msra.mxu0 %v184
    %1272 = vmatprep.subr.mxu0 0.0
    %1273 = vmatpush1.msra.mxu0 %v185
    %1274 = vmatprep.subr.mxu0 0.0
    %1275 = vmatpush1.msra.mxu0 %v186
    %1276 = vmatprep.subr.mxu0 0.0
    %1277 = vmatpush1.msra.mxu0 %v187
    %1278 = vmatprep.subr.mxu0 0.0
    %1279 = vmatpush1.msra.mxu0 %v188
    %1280 = vmatprep.subr.mxu0 0.0
    %1281 = vmatpush1.msra.mxu0 %v189
    %1282 = vmatprep.subr.mxu0 0.0
    %1283 = vmatpush1.msra.mxu0 %v190
    %1284 = vmatprep.subr.mxu0 0.0
    %1285 = vmatpush1.msra.mxu0 %v191
    %1286 = vmatprep.subr.mxu0 0.0
    %1287 = vmatpush1.msra.mxu0 %v192
    %1288 = vmatprep.subr.mxu0 0.0
    %1289 = vmatpush1.msra.mxu0 %v193
    %1290 = vmatprep.subr.mxu0 0.0
    %1291 = vmatpush1.msra.mxu0 %v194
    %1292 = vmatprep.subr.mxu0 0.0
    %1293 = vmatpush1.msra.mxu0 %v195
    %1294 = vmatprep.subr.mxu0 0.0
    %1295 = vmatpush1.msra.mxu0 %v196
    %1296 = vmatprep.subr.mxu0 0.0
    %1297 = vmatpush1.msra.mxu0 %v197
    %1298 = vmatprep.subr.mxu0 0.0
    %1299 = vmatpush1.msra.mxu0 %v198
    %1300 = vmatprep.subr.mxu0 0.0
    %1301 = vmatpush1.msra.mxu0 %v199
    %1302 = vmatprep.subr.mxu0 0.0
    %1303 = vmatpush1.msra.mxu0 %v200
    %1304 = vmatprep.subr.mxu0 0.0
    %1305 = vmatpush1.msra.mxu0 %v201
    %1306 = vmatprep.subr.mxu0 0.0
    %1307 = vmatpush1.msra.mxu0 %v202
    %1308 = vmatprep.subr.mxu0 0.0
    %1309 = vmatpush1.msra.mxu0 %v203
    %1310 = vmatprep.subr.mxu0 0.0
    %1311 = vmatpush1.msra.mxu0 %v204
    %1312 = vmatprep.subr.mxu0 0.0
    %1313 = vmatpush1.msra.mxu0 %v205
    %1314 = vmatprep.subr.mxu0 0.0
    %1315 = vmatpush1.msra.mxu0 %v206
    %1316 = vmatprep.subr.mxu0 0.0
    %1317 = vmatpush1.msra.mxu0 %v207
    %1318 = vmatprep.subr.mxu0 0.0
    %1319 = vmatpush1.msra.mxu0 %v208
    %1320 = vmatprep.subr.mxu0 0.0
    %1321 = vmatpush1.msra.mxu0 %v209
    %1322 = vmatprep.mubr.f32.mxu0 %v1227
    %1323 = vmatmul.mubr.f32.gmra.mrb[0].mxu0 %v1224
    %v1324 = vpop.f32.mrb[0].mxu0
    %v1325 = vadd.f32 0.0, %v1324
    %v1326 = vpop.f32.mrb[0].mxu0
    %1327 = vmatprep.mubr.f32.mxu0 %v1237
    %1328 = vmatmul.mubr.f32.gmra.mrb[0].mxu0 %v1235
    %v1329 = vpop.f32.mrb[0].mxu0
    %v1330 = vadd.f32 0.0, %v1329
    %v1331 = vpop.f32.mrb[0].mxu0
    %1332 = vmatprep.mubr.f32.mxu0 %v1236
    %1333 = vmatmul.mubr.f32.gmra.mrb[0].mxu0 %v1234
    %v1334 = vpop.f32.mrb[0].mxu0
    %v1335 = vadd.f32 0.0, %v1334
    %v1336 = vpop.f32.mrb[0].mxu0
    %1337 = vdwg.mxu0
    %1338 = vmatprep.subr.mxu0 0.0
    %1339 = vmatpush1.msra.mxu0 %v210
    %1340 = vmatprep.subr.mxu0 0.0
    %1341 = vmatpush1.msra.mxu0 %v211
    %1342 = vmatprep.subr.mxu0 0.0
    %1343 = vmatpush1.msra.mxu0 %v212
    %1344 = vmatprep.subr.mxu0 0.0
    %1345 = vmatpush1.msra.mxu0 %v213
    %1346 = vmatprep.subr.mxu0 0.0
    %1347 = vmatpush1.msra.mxu0 %v214
    %1348 = vmatprep.subr.mxu0 0.0
    %1349 = vmatpush1.msra.mxu0 %v215
    %1350 = vmatprep.subr.mxu0 0.0
    %1351 = vmatpush1.msra.mxu0 %v216
    %1352 = vmatprep.subr.mxu0 0.0
    %1353 = vmatpush1.msra.mxu0 %v217
    %1354 = vmatprep.subr.mxu0 0.0
    %1355 = vmatpush1.msra.mxu0 %v218
    %1356 = vmatprep.subr.mxu0 0.0
    %1357 = vmatpush1.msra.mxu0 %v219
    %1358 = vmatprep.subr.mxu0 0.0
    %1359 = vmatpush1.msra.mxu0 %v220
    %1360 = vmatprep.subr.mxu0 0.0
    %1361 = vmatpush1.msra.mxu0 %v221
    %1362 = vmatprep.subr.mxu0 0.0
    %1363 = vmatpush1.msra.mxu0 %v222
    %1364 = vmatprep.subr.mxu0 0.0
    %1365 = vmatpush1.msra.mxu0 %v223
    %1366 = vmatprep.subr.mxu0 0.0
    %1367 = vmatpush1.msra.mxu0 %v224
    %1368 = vmatprep.subr.mxu0 0.0
    %1369 = vmatpush1.msra.mxu0 %v225
    %1370 = vmatprep.subr.mxu0 0.0
    %1371 = vmatpush1.msra.mxu0 %v226
    %1372 = vmatprep.subr.mxu0 0.0
    %1373 = vmatpush1.msra.mxu0 %v227
    %1374 = vmatprep.subr.mxu0 0.0
    %1375 = vmatpush1.msra.mxu0 0.0
    %1376 = vmatprep.subr.mxu0 0.0
    %1377 = vmatpush1.msra.mxu0 0.0
    %1378 = vmatprep.subr.mxu0 0.0
    %1379 = vmatpush1.msra.mxu0 0.0
    %1380 = vmatprep.subr.mxu0 0.0
    %1381 = vmatpush1.msra.mxu0 0.0
    %1382 = vmatprep.subr.mxu0 0.0
    %1383 = vmatpush1.msra.mxu0 0.0
    %1384 = vmatprep.subr.mxu0 0.0
    %1385 = vmatpush1.msra.mxu0 0.0
    %1386 = vmatprep.subr.mxu0 0.0
    %1387 = vmatpush1.msra.mxu0 0.0
    %1388 = vmatprep.subr.mxu0 0.0
    %1389 = vmatpush1.msra.mxu0 0.0
    %1390 = vmatprep.subr.mxu0 0.0
    %1391 = vmatpush1.msra.mxu0 0.0
    %1392 = vmatprep.subr.mxu0 0.0
    %1393 = vmatpush1.msra.mxu0 0.0
    %1394 = vmatprep.subr.mxu0 0.0
    %1395 = vmatpush1.msra.mxu0 0.0
    %1396 = vmatprep.subr.mxu0 0.0
    %1397 = vmatpush1.msra.mxu0 0.0
    %1398 = vmatprep.subr.mxu0 0.0
    %1399 = vmatpush1.msra.mxu0 0.0
    %1400 = vmatprep.subr.mxu0 0.0
    %1401 = vmatpush1.msra.mxu0 0.0
    %1402 = vmatprep.mubr.f32.mxu0 %v1252
    %1403 = vmatmul.mubr.f32.gmra.mrb[0].mxu0 %v1230
    %v1404 = vpop.f32.mrb[0].mxu0
    %v1405 = vadd.f32 %v1325, %v1404
    %v1406 = vpop.f32.mrb[0].mxu0
    %1407 = vmatprep.mubr.f32.mxu0 %v1254
    %1408 = vmatmul.mubr.f32.gmra.mrb[0].mxu0 %v1239
    %v1409 = vpop.f32.mrb[0].mxu0
    %v1410 = vadd.f32 %v1330, %v1409
    %v1411 = vpop.f32.mrb[0].mxu0
    %1412 = vmatprep.mubr.f32.mxu0 %v1256
    %1413 = vmatmul.mubr.f32.gmra.mrb[0].mxu0 %v1238
    %v1414 = vpop.f32.mrb[0].mxu0
    %v1415 = vadd.f32 %v1335, %v1414
    %v1416 = vpop.f32.mrb[0].mxu0
    %1417 = vdwg.mxu0
    %v1418 = vsel %vm1251, %v1197, 0
    %v1420 = vsel %vm1251, %v1201, 0
    %v1422 = vsel %vm1251, %v1205, 0
    %1424 = vmatprep.subr.mxu0 0.0
    %1425 = vmatpush1.msra.mxu0 %v127
    %1426 = vmatprep.subr.mxu0 0.0
    %1427 = vmatpush1.msra.mxu0 %v128
    %1428 = vmatprep.subr.mxu0 0.0
    %1429 = vmatpush1.msra.mxu0 %v129
    %1430 = vmatprep.subr.mxu0 0.0
    %1431 = vmatpush1.msra.mxu0 %v130
    %1432 = vmatprep.subr.mxu0 0.0
    %1433 = vmatpush1.msra.mxu0 %v131
    %1434 = vmatprep.subr.mxu0 0.0
    %1435 = vmatpush1.msra.mxu0 %v132
    %1436 = vmatprep.subr.mxu0 0.0
    %1437 = vmatpush1.msra.mxu0 %v133
    %1438 = vmatprep.subr.mxu0 0.0
    %1439 = vmatpush1.msra.mxu0 %v134
    %1440 = vmatprep.subr.mxu0 0.0
    %1441 = vmatpush1.msra.mxu0 %v135
    %1442 = vmatprep.subr.mxu0 0.0
    %1443 = vmatpush1.msra.mxu0 %v136
    %1444 = vmatprep.subr.mxu0 0.0
    %1445 = vmatpush1.msra.mxu0 %v137
    %1446 = vmatprep.subr.mxu0 0.0
    %1447 = vmatpush1.msra.mxu0 %v138
    %1448 = vmatprep.subr.mxu0 0.0
    %1449 = vmatpush1.msra.mxu0 %v139
    %1450 = vmatprep.subr.mxu0 0.0
    %1451 = vmatpush1.msra.mxu0 %v140
    %1452 = vmatprep.subr.mxu0 0.0
    %1453 = vmatpush1.msra.mxu0 %v141
    %1454 = vmatprep.subr.mxu0 0.0
    %1455 = vmatpush1.msra.mxu0 %v142
    %1456 = vmatprep.subr.mxu0 0.0
    %1457 = vmatpush1.msra.mxu0 %v143
    %1458 = vmatprep.subr.mxu0 0.0
    %1459 = vmatpush1.msra.mxu0 %v144
    %1460 = vmatprep.subr.mxu0 0.0
    %1461 = vmatpush1.msra.mxu0 %v145
    %1462 = vmatprep.subr.mxu0 0.0
    %1463 = vmatpush1.msra.mxu0 %v146
    %1464 = vmatprep.subr.mxu0 0.0
    %1465 = vmatpush1.msra.mxu0 %v147
    %1466 = vmatprep.subr.mxu0 0.0
    %1467 = vmatpush1.msra.mxu0 %v148
    %1468 = vmatprep.subr.mxu0 0.0
    %1469 = vmatpush1.msra.mxu0 %v149
    %1470 = vmatprep.subr.mxu0 0.0
    %1471 = vmatpush1.msra.mxu0 %v150
    %1472 = vmatprep.subr.mxu0 0.0
    %1473 = vmatpush1.msra.mxu0 %v151
    %1474 = vmatprep.subr.mxu0 0.0
    %1475 = vmatpush1.msra.mxu0 %v152
    %1476 = vmatprep.subr.mxu0 0.0
    %1477 = vmatpush1.msra.mxu0 %v153
    %1478 = vmatprep.subr.mxu0 0.0
    %1479 = vmatpush1.msra.mxu0 %v154
    %1480 = vmatprep.subr.mxu0 0.0
    %1481 = vmatpush1.msra.mxu0 %v155
    %1482 = vmatprep.subr.mxu0 0.0
    %1483 = vmatpush1.msra.mxu0 %v156
    %1484 = vmatprep.subr.mxu0 0.0
    %1485 = vmatpush1.msra.mxu0 %v157
    %1486 = vmatprep.subr.mxu0 0.0
    %1487 = vmatpush1.msra.mxu0 %v158
    %1488 = vmatprep.mubr.f32.mxu0 %v1195
    %1489 = vmatmul.mubr.f32.gmra.mrb[0].mxu0 %v1194
    %v1490 = vpop.f32.mrb[0].mxu0
    %v1491 = vadd.f32 %v1405, %v1490
    %v1492 = vpop.f32.mrb[0].mxu0
    %1493 = vmatprep.mubr.f32.mxu0 %v1199
    %1494 = vmatmul.mubr.f32.gmra.mrb[0].mxu0 %v1198
    %v1495 = vpop.f32.mrb[0].mxu0
    %v1496 = vadd.f32 %v1410, %v1495
    %v1497 = vpop.f32.mrb[0].mxu0
    %1498 = vmatprep.mubr.f32.mxu0 %v1203
    %1499 = vmatmul.mubr.f32.gmra.mrb[0].mxu0 %v1202
    %v1500 = vpop.f32.mrb[0].mxu0
    %v1501 = vadd.f32 %v1415, %v1500
    %v1502 = vpop.f32.mrb[0].mxu0
    %1503 = vdwg.mxu0
    %1504 = vmatprep.subr.mxu0 0.0
    %1505 = vmatpush1.msra.mxu0 %v159
    %1506 = vmatprep.subr.mxu0 0.0
    %1507 = vmatpush1.msra.mxu0 %v160
    %1508 = vmatprep.subr.mxu0 0.0
    %1509 = vmatpush1.msra.mxu0 %v161
    %1510 = vmatprep.subr.mxu0 0.0
    %1511 = vmatpush1.msra.mxu0 %v162
    %1512 = vmatprep.subr.mxu0 0.0
    %1513 = vmatpush1.msra.mxu0 %v163
    %1514 = vmatprep.subr.mxu0 0.0
    %1515 = vmatpush1.msra.mxu0 %v164
    %1516 = vmatprep.subr.mxu0 0.0
    %1517 = vmatpush1.msra.mxu0 %v165
    %1518 = vmatprep.subr.mxu0 0.0
    %1519 = vmatpush1.msra.mxu0 %v166
    %1520 = vmatprep.subr.mxu0 0.0
    %1521 = vmatpush1.msra.mxu0 %v167
    %1522 = vmatprep.subr.mxu0 0.0
    %1523 = vmatpush1.msra.mxu0 %v168
    %1524 = vmatprep.subr.mxu0 0.0
    %1525 = vmatpush1.msra.mxu0 %v169
    %1526 = vmatprep.subr.mxu0 0.0
    %1527 = vmatpush1.msra.mxu0 %v170
    %1528 = vmatprep.subr.mxu0 0.0
    %1529 = vmatpush1.msra.mxu0 %v171
    %1530 = vmatprep.subr.mxu0 0.0
    %1531 = vmatpush1.msra.mxu0 %v172
    %1532 = vmatprep.subr.mxu0 0.0
    %1533 = vmatpush1.msra.mxu0 %v173
    %1534 = vmatprep.subr.mxu0 0.0
    %1535 = vmatpush1.msra.mxu0 %v174
    %1536 = vmatprep.subr.mxu0 0.0
    %1537 = vmatpush1.msra.mxu0 %v175
    %1538 = vmatprep.subr.mxu0 0.0
    %1539 = vmatpush1.msra.mxu0 %v176
    %1540 = vmatprep.subr.mxu0 0.0
    %1541 = vmatpush1.msra.mxu0 0.0
    %1542 = vmatprep.subr.mxu0 0.0
    %1543 = vmatpush1.msra.mxu0 0.0
    %1544 = vmatprep.subr.mxu0 0.0
    %1545 = vmatpush1.msra.mxu0 0.0
    %1546 = vmatprep.subr.mxu0 0.0
    %1547 = vmatpush1.msra.mxu0 0.0
    %1548 = vmatprep.subr.mxu0 0.0
    %1549 = vmatpush1.msra.mxu0 0.0
    %1550 = vmatprep.subr.mxu0 0.0
    %1551 = vmatpush1.msra.mxu0 0.0
    %1552 = vmatprep.subr.mxu0 0.0
    %1553 = vmatpush1.msra.mxu0 0.0
    %1554 = vmatprep.subr.mxu0 0.0
    %1555 = vmatpush1.msra.mxu0 0.0
    %1556 = vmatprep.subr.mxu0 0.0
    %1557 = vmatpush1.msra.mxu0 0.0
    %1558 = vmatprep.subr.mxu0 0.0
    %1559 = vmatpush1.msra.mxu0 0.0
    %1560 = vmatprep.subr.mxu0 0.0
    %1561 = vmatpush1.msra.mxu0 0.0
    %1562 = vmatprep.subr.mxu0 0.0
    %1563 = vmatpush1.msra.mxu0 0.0
    %1564 = vmatprep.subr.mxu0 0.0
    %1565 = vmatpush1.msra.mxu0 0.0
    %1566 = vmatprep.subr.mxu0 0.0
    %1567 = vmatpush1.msra.mxu0 0.0
    %1568 = vmatprep.mubr.f32.mxu0 %v1418
    %1569 = vmatmul.mubr.f32.gmra.mrb[0].mxu0 %v1196
    %v1570 = vpop.f32.mrb[0].mxu0
    %v1571 = vadd.f32 %v1491, %v1570
    %v1572 = vpop.f32.mrb[0].mxu0
    %1573 = vmatprep.mubr.f32.mxu0 %v1420
    %1574 = vmatmul.mubr.f32.gmra.mrb[0].mxu0 %v1200
    %v1575 = vpop.f32.mrb[0].mxu0
    %v1576 = vadd.f32 %v1496, %v1575
    %v1577 = vpop.f32.mrb[0].mxu0
    %1578 = vmatprep.mubr.f32.mxu0 %v1422
    %1579 = vmatmul.mubr.f32.gmra.mrb[0].mxu0 %v1204
    %v1580 = vpop.f32.mrb[0].mxu0
    %v1581 = vadd.f32 %v1501, %v1580
    %v1582 = vpop.f32.mrb[0].mxu0
    %1583 = vdwg.mxu0
    %v1588 = vrot.slane %v1194, 4
    %v1589 = vrot.slane %v1198, 4
    %v1590 = vsel %vm345, %v1588, %v1589
    %v1591 = vrot.slane %v1195, 4
    %v1592 = vrot.slane %v1199, 4
    %v1593 = vsel %vm345, %v1591, %v1592
    %v1594 = vrot.slane %v1196, 4
    %v1595 = vrot.slane %v1200, 4
    %v1596 = vsel %vm345, %v1594, %v1595
    %v1597 = vrot.slane %v1197, 4
    %v1598 = vrot.slane %v1201, 4
    %v1599 = vsel %vm345, %v1597, %v1598
    %v1600 = vrot.slane %v1202, 4
    %v1601 = vsel %vm345, %v1589, %v1600
    %v1602 = vrot.slane %v1203, 4
    %v1603 = vsel %vm345, %v1592, %v1602
    %v1604 = vrot.slane %v1204, 4
    %v1605 = vsel %vm345, %v1595, %v1604
    %v1606 = vrot.slane %v1205, 4
    %v1607 = vsel %vm345, %v1598, %v1606
    %v1608 = vrot.slane %v1206, 4
    %v1609 = vsel %vm345, %v1600, %v1608
    %v1610 = vrot.slane %v1207, 4
    %v1611 = vsel %vm345, %v1602, %v1610
    %v1612 = vrot.slane %v1208, 4
    %v1613 = vsel %vm345, %v1604, %v1612
    %v1614 = vrot.slane %v1209, 4
    %v1615 = vsel %vm345, %v1606, %v1614
    %v1625 = vsel %vm1251, %v1599, 0
    %v1627 = vsel %vm1251, %v1607, 0
    %v1629 = vsel %vm1251, %v1615, 0
    %1631 = vmatprep.subr.mxu0 0.0
    %1632 = vmatpush1.msra.mxu0 %v229
    %1633 = vmatprep.subr.mxu0 0.0
    %1634 = vmatpush1.msra.mxu0 %v230
    %1635 = vmatprep.subr.mxu0 0.0
    %1636 = vmatpush1.msra.mxu0 %v231
    %1637 = vmatprep.subr.mxu0 0.0
    %1638 = vmatpush1.msra.mxu0 %v232
    %1639 = vmatprep.subr.mxu0 0.0
    %1640 = vmatpush1.msra.mxu0 %v233
    %1641 = vmatprep.subr.mxu0 0.0
    %1642 = vmatpush1.msra.mxu0 %v234
    %1643 = vmatprep.subr.mxu0 0.0
    %1644 = vmatpush1.msra.mxu0 %v235
    %1645 = vmatprep.subr.mxu0 0.0
    %1646 = vmatpush1.msra.mxu0 %v236
    %1647 = vmatprep.subr.mxu0 0.0
    %1648 = vmatpush1.msra.mxu0 %v237
    %1649 = vmatprep.subr.mxu0 0.0
    %1650 = vmatpush1.msra.mxu0 %v238
    %1651 = vmatprep.subr.mxu0 0.0
    %1652 = vmatpush1.msra.mxu0 %v239
    %1653 = vmatprep.subr.mxu0 0.0
    %1654 = vmatpush1.msra.mxu0 %v240
    %1655 = vmatprep.subr.mxu0 0.0
    %1656 = vmatpush1.msra.mxu0 %v241
    %1657 = vmatprep.subr.mxu0 0.0
    %1658 = vmatpush1.msra.mxu0 %v242
    %1659 = vmatprep.subr.mxu0 0.0
    %1660 = vmatpush1.msra.mxu0 %v243
    %1661 = vmatprep.subr.mxu0 0.0
    %1662 = vmatpush1.msra.mxu0 %v244
    %1663 = vmatprep.subr.mxu0 0.0
    %1664 = vmatpush1.msra.mxu0 %v245
    %1665 = vmatprep.subr.mxu0 0.0
    %1666 = vmatpush1.msra.mxu0 %v246
    %1667 = vmatprep.subr.mxu0 0.0
    %1668 = vmatpush1.msra.mxu0 %v247
    %1669 = vmatprep.subr.mxu0 0.0
    %1670 = vmatpush1.msra.mxu0 %v248
    %1671 = vmatprep.subr.mxu0 0.0
    %1672 = vmatpush1.msra.mxu0 %v249
    %1673 = vmatprep.subr.mxu0 0.0
    %1674 = vmatpush1.msra.mxu0 %v250
    %1675 = vmatprep.subr.mxu0 0.0
    %1676 = vmatpush1.msra.mxu0 %v251
    %1677 = vmatprep.subr.mxu0 0.0
    %1678 = vmatpush1.msra.mxu0 %v252
    %1679 = vmatprep.subr.mxu0 0.0
    %1680 = vmatpush1.msra.mxu0 %v253
    %1681 = vmatprep.subr.mxu0 0.0
    %1682 = vmatpush1.msra.mxu0 %v254
    %1683 = vmatprep.subr.mxu0 0.0
    %1684 = vmatpush1.msra.mxu0 %v255
    %1685 = vmatprep.subr.mxu0 0.0
    %1686 = vmatpush1.msra.mxu0 %v256
    %1687 = vmatprep.subr.mxu0 0.0
    %1688 = vmatpush1.msra.mxu0 %v257
    %1689 = vmatprep.subr.mxu0 0.0
    %1690 = vmatpush1.msra.mxu0 %v258
    %1691 = vmatprep.subr.mxu0 0.0
    %1692 = vmatpush1.msra.mxu0 %v259
    %1693 = vmatprep.subr.mxu0 0.0
    %1694 = vmatpush1.msra.mxu0 %v260
    %1695 = vmatprep.mubr.f32.mxu0 %v1593
    %1696 = vmatmul.mubr.f32.gmra.mrb[0].mxu0 %v1590
    %v1697 = vpop.f32.mrb[0].mxu0
    %v1698 = vadd.f32 0.0, %v1697
    %v1699 = vpop.f32.mrb[0].mxu0
    %1700 = vmatprep.mubr.f32.mxu0 %v1603
    %1701 = vmatmul.mubr.f32.gmra.mrb[0].mxu0 %v1601
    %v1702 = vpop.f32.mrb[0].mxu0
    %v1703 = vadd.f32 0.0, %v1702
    %v1704 = vpop.f32.mrb[0].mxu0
    %1705 = vmatprep.mubr.f32.mxu0 %v1611
    %1706 = vmatmul.mubr.f32.gmra.mrb[0].mxu0 %v1609
    %v1707 = vpop.f32.mrb[0].mxu0
    %v1708 = vadd.f32 0.0, %v1707
    %v1709 = vpop.f32.mrb[0].mxu0
    %1710 = vdwg.mxu0
    %1711 = vmatprep.subr.mxu0 0.0
    %1712 = vmatpush1.msra.mxu0 %v261
    %1713 = vmatprep.subr.mxu0 0.0
    %1714 = vmatpush1.msra.mxu0 %v262
    %1715 = vmatprep.subr.mxu0 0.0
    %1716 = vmatpush1.msra.mxu0 %v263
    %1717 = vmatprep.subr.mxu0 0.0
    %1718 = vmatpush1.msra.mxu0 %v264
    %1719 = vmatprep.subr.mxu0 0.0
    %1720 = vmatpush1.msra.mxu0 %v265
    %1721 = vmatprep.subr.mxu0 0.0
    %1722 = vmatpush1.msra.mxu0 %v266
    %1723 = vmatprep.subr.mxu0 0.0
    %1724 = vmatpush1.msra.mxu0 %v267
    %1725 = vmatprep.subr.mxu0 0.0
    %1726 = vmatpush1.msra.mxu0 %v268
    %1727 = vmatprep.subr.mxu0 0.0
    %1728 = vmatpush1.msra.mxu0 %v269
    %1729 = vmatprep.subr.mxu0 0.0
    %1730 = vmatpush1.msra.mxu0 %v270
    %1731 = vmatprep.subr.mxu0 0.0
    %1732 = vmatpush1.msra.mxu0 %v271
    %1733 = vmatprep.subr.mxu0 0.0
    %1734 = vmatpush1.msra.mxu0 %v272
    %1735 = vmatprep.subr.mxu0 0.0
    %1736 = vmatpush1.msra.mxu0 %v273
    %1737 = vmatprep.subr.mxu0 0.0
    %1738 = vmatpush1.msra.mxu0 %v274
    %1739 = vmatprep.subr.mxu0 0.0
    %1740 = vmatpush1.msra.mxu0 %v275
    %1741 = vmatprep.subr.mxu0 0.0
    %1742 = vmatpush1.msra.mxu0 %v276
    %1743 = vmatprep.subr.mxu0 0.0
    %1744 = vmatpush1.msra.mxu0 %v277
    %1745 = vmatprep.subr.mxu0 0.0
    %1746 = vmatpush1.msra.mxu0 %v278
    %1747 = vmatprep.subr.mxu0 0.0
    %1748 = vmatpush1.msra.mxu0 0.0
    %1749 = vmatprep.subr.mxu0 0.0
    %1750 = vmatpush1.msra.mxu0 0.0
    %1751 = vmatprep.subr.mxu0 0.0
    %1752 = vmatpush1.msra.mxu0 0.0
    %1753 = vmatprep.subr.mxu0 0.0
    %1754 = vmatpush1.msra.mxu0 0.0
    %1755 = vmatprep.subr.mxu0 0.0
    %1756 = vmatpush1.msra.mxu0 0.0
    %1757 = vmatprep.subr.mxu0 0.0
    %1758 = vmatpush1.msra.mxu0 0.0
    %1759 = vmatprep.subr.mxu0 0.0
    %1760 = vmatpush1.msra.mxu0 0.0
    %1761 = vmatprep.subr.mxu0 0.0
    %1762 = vmatpush1.msra.mxu0 0.0
    %1763 = vmatprep.subr.mxu0 0.0
    %1764 = vmatpush1.msra.mxu0 0.0
    %1765 = vmatprep.subr.mxu0 0.0
    %1766 = vmatpush1.msra.mxu0 0.0
    %1767 = vmatprep.subr.mxu0 0.0
    %1768 = vmatpush1.msra.mxu0 0.0
    %1769 = vmatprep.subr.mxu0 0.0
    %1770 = vmatpush1.msra.mxu0 0.0
    %1771 = vmatprep.subr.mxu0 0.0
    %1772 = vmatpush1.msra.mxu0 0.0
    %1773 = vmatprep.subr.mxu0 0.0
    %1774 = vmatpush1.msra.mxu0 0.0
    %1775 = vmatprep.mubr.f32.mxu0 %v1625
    %1776 = vmatmul.mubr.f32.gmra.mrb[0].mxu0 %v1596
    %v1777 = vpop.f32.mrb[0].mxu0
    %v1778 = vadd.f32 %v1698, %v1777
    %v1779 = vpop.f32.mrb[0].mxu0
    %1780 = vmatprep.mubr.f32.mxu0 %v1627
    %1781 = vmatmul.mubr.f32.gmra.mrb[0].mxu0 %v1605
    %v1782 = vpop.f32.mrb[0].mxu0
    %v1783 = vadd.f32 %v1703, %v1782
    %v1784 = vpop.f32.mrb[0].mxu0
    %1785 = vmatprep.mubr.f32.mxu0 %v1629
    %1786 = vmatmul.mubr.f32.gmra.mrb[0].mxu0 %v1613
    %v1787 = vpop.f32.mrb[0].mxu0
    %v1788 = vadd.f32 %v1708, %v1787
    %v1789 = vpop.f32.mrb[0].mxu0
    %1790 = vdwg.mxu0
    %v1791 = vadd.f32 %v1571, %v1778
    %v1792 = vadd.f32 %v1576, %v1783
    %v1793 = vadd.f32 %v1581, %v1788
    %v1795 = vlaneseq
    %v1796 = vshrl.u32 %v1795, 7
    %v1797 = vsub.s32 0, %v1796
    %v1798 = vrot.slane %v75, %v1797
    %v1800 = vadd.f32 %v1791, %v1798
    %v1801 = vadd.f32 %v1792, %v1798
    %v1802 = vadd.f32 %v1793, %v1798
    %vm1803 = vcmp.ge.f32.partialorder %v1800, 0.0
    %vm1804 = vcmp.ge.f32.partialorder %v1801, 0.0
    %vm1805 = vcmp.ge.f32.partialorder %v1802, 0.0
    %v1806 = vmul.f32 %v1800, 0.1
    %v1807 = vmul.f32 %v1801, 0.1
    %v1808 = vmul.f32 %v1802, 0.1
    %v1809 = vsel %vm1803, %v1800, %v1806
    %v1810 = vsel %vm1804, %v1801, %v1807
    %v1811 = vsel %vm1805, %v1802, %v1808
    %v1815 = vrot.slane %v1809, 2
    %v1816 = vrot.slane %v1810, 2
    %v1817 = vsel %vm734, %v1815, %v1816
    %v1818 = vrot.slane %v1811, 2
    %v1819 = vsel %vm734, %v1816, %v1818
    %v1823 = vmax.f32 %v1809, %v1817
    %v1824 = vmax.f32 %v1810, %v1819
    %v1825 = vmax.f32 %v1811, %v1818
    %1829 = vrot.lane.b32.xlu0 %v1823, 120
    %v1830 = vpop.permute.xlu0 %1829
    %1831 = vrot.lane.b32.xlu0 %v1824, 120
    %v1832 = vpop.permute.xlu0 %1831
    %1833 = vrot.lane.b32.xlu0 %v1825, 120
    %v1834 = vpop.permute.xlu0 %1833
    %v1838 = vmax.f32 %v1823, %v1830
    %v1839 = vmax.f32 %v1824, %v1832
    %v1840 = vmax.f32 %v1825, %v1834
    %v1843 = vrot.slane %v1838, 4
    %v1844 = vrot.slane %v1839, 4
    %v1845 = vsel %vm345, %v1843, %v1844
    %vm1846 = vcmask 654336
    %v1847 = vsel %vm1846, %v1845, 0
    %v1849 = vsel %vm1846, %v1844, 0
    %1851 = vmatprep.subr.mxu0 0.0
    %1852 = vmatpush1.msra.mxu0 %v290
    %1853 = vmatprep.subr.mxu0 0.0
    %1854 = vmatpush1.msra.mxu0 %v291
    %1855 = vmatprep.subr.mxu0 0.0
    %1856 = vmatpush1.msra.mxu0 %v292
    %1857 = vmatprep.subr.mxu0 0.0
    %1858 = vmatpush1.msra.mxu0 %v293
    %1859 = vmatprep.subr.mxu0 0.0
    %1860 = vmatpush1.msra.mxu0 %v294
    %1861 = vmatprep.subr.mxu0 0.0
    %1862 = vmatpush1.msra.mxu0 %v295
    %1863 = vmatprep.subr.mxu0 0.0
    %1864 = vmatpush1.msra.mxu0 %v296
    %1865 = vmatprep.subr.mxu0 0.0
    %1866 = vmatpush1.msra.mxu0 %v297
    %1867 = vmatprep.subr.mxu0 0.0
    %1868 = vmatpush1.msra.mxu0 %v298
    %1869 = vmatprep.subr.mxu0 0.0
    %1870 = vmatpush1.msra.mxu0 %v299
    %1871 = vmatprep.subr.mxu0 0.0
    %1872 = vmatpush1.msra.mxu0 0.0
    %1873 = vmatprep.subr.mxu0 0.0
    %1874 = vmatpush1.msra.mxu0 0.0
    %1875 = vmatprep.subr.mxu0 0.0
    %1876 = vmatpush1.msra.mxu0 0.0
    %1877 = vmatprep.subr.mxu0 0.0
    %1878 = vmatpush1.msra.mxu0 0.0
    %1879 = vmatprep.subr.mxu0 0.0
    %1880 = vmatpush1.msra.mxu0 0.0
    %1881 = vmatprep.subr.mxu0 0.0
    %1882 = vmatpush1.msra.mxu0 0.0
    %1883 = vmatprep.subr.mxu0 0.0
    %1884 = vmatpush1.msra.mxu0 0.0
    %1885 = vmatprep.subr.mxu0 0.0
    %1886 = vmatpush1.msra.mxu0 0.0
    %1887 = vmatprep.subr.mxu0 0.0
    %1888 = vmatpush1.msra.mxu0 0.0
    %1889 = vmatprep.subr.mxu0 0.0
    %1890 = vmatpush1.msra.mxu0 0.0
    %1891 = vmatprep.subr.mxu0 0.0
    %1892 = vmatpush1.msra.mxu0 0.0
    %1893 = vmatprep.subr.mxu0 0.0
    %1894 = vmatpush1.msra.mxu0 0.0
    %1895 = vmatprep.subr.mxu0 0.0
    %1896 = vmatpush1.msra.mxu0 0.0
    %1897 = vmatprep.subr.mxu0 0.0
    %1898 = vmatpush1.msra.mxu0 0.0
    %1899 = vmatprep.subr.mxu0 0.0
    %1900 = vmatpush1.msra.mxu0 0.0
    %1901 = vmatprep.subr.mxu0 0.0
    %1902 = vmatpush1.msra.mxu0 0.0
    %1903 = vmatprep.subr.mxu0 0.0
    %1904 = vmatpush1.msra.mxu0 0.0
    %1905 = vmatprep.subr.mxu0 0.0
    %1906 = vmatpush1.msra.mxu0 0.0
    %1907 = vmatprep.subr.mxu0 0.0
    %1908 = vmatpush1.msra.mxu0 0.0
    %1909 = vmatprep.subr.mxu0 0.0
    %1910 = vmatpush1.msra.mxu0 0.0
    %1911 = vmatprep.subr.mxu0 0.0
    %1912 = vmatpush1.msra.mxu0 0.0
    %1913 = vmatprep.subr.mxu0 0.0
    %1914 = vmatpush1.msra.mxu0 0.0
    %1915 = vmatprep.mubr.f32.mxu0 0.0
    %1916 = vmatmul.mubr.f32.gmra.mrb[0].mxu0 %v1847
    %v1917 = vpop.f32.mrb[0].mxu0
    %v1918 = vadd.f32 0.0, %v1917
    %v1919 = vpop.f32.mrb[0].mxu0
    %1920 = vmatprep.mubr.f32.mxu0 0.0
    %1921 = vmatmul.mubr.f32.gmra.mrb[0].mxu0 %v1849
    %v1922 = vpop.f32.mrb[0].mxu0
    %v1923 = vadd.f32 0.0, %v1922
    %v1924 = vpop.f32.mrb[0].mxu0
    %1925 = vdwg.mxu0
    %v1926 = vsel %vm1846, %v1838, 0
    %v1928 = vsel %vm1846, %v1839, 0
    %1930 = vmatprep.subr.mxu0 0.0
    %1931 = vmatpush1.msra.mxu0 %v279
    %1932 = vmatprep.subr.mxu0 0.0
    %1933 = vmatpush1.msra.mxu0 %v280
    %1934 = vmatprep.subr.mxu0 0.0
    %1935 = vmatpush1.msra.mxu0 %v281
    %1936 = vmatprep.subr.mxu0 0.0
    %1937 = vmatpush1.msra.mxu0 %v282
    %1938 = vmatprep.subr.mxu0 0.0
    %1939 = vmatpush1.msra.mxu0 %v283
    %1940 = vmatprep.subr.mxu0 0.0
    %1941 = vmatpush1.msra.mxu0 %v284
    %1942 = vmatprep.subr.mxu0 0.0
    %1943 = vmatpush1.msra.mxu0 %v285
    %1944 = vmatprep.subr.mxu0 0.0
    %1945 = vmatpush1.msra.mxu0 %v286
    %1946 = vmatprep.subr.mxu0 0.0
    %1947 = vmatpush1.msra.mxu0 %v287
    %1948 = vmatprep.subr.mxu0 0.0
    %1949 = vmatpush1.msra.mxu0 %v288
    %1950 = vmatprep.subr.mxu0 0.0
    %1951 = vmatpush1.msra.mxu0 0.0
    %1952 = vmatprep.subr.mxu0 0.0
    %1953 = vmatpush1.msra.mxu0 0.0
    %1954 = vmatprep.subr.mxu0 0.0
    %1955 = vmatpush1.msra.mxu0 0.0
    %1956 = vmatprep.subr.mxu0 0.0
    %1957 = vmatpush1.msra.mxu0 0.0
    %1958 = vmatprep.subr.mxu0 0.0
    %1959 = vmatpush1.msra.mxu0 0.0
    %1960 = vmatprep.subr.mxu0 0.0
    %1961 = vmatpush1.msra.mxu0 0.0
    %1962 = vmatprep.subr.mxu0 0.0
    %1963 = vmatpush1.msra.mxu0 0.0
    %1964 = vmatprep.subr.mxu0 0.0
    %1965 = vmatpush1.msra.mxu0 0.0
    %1966 = vmatprep.subr.mxu0 0.0
    %1967 = vmatpush1.msra.mxu0 0.0
    %1968 = vmatprep.subr.mxu0 0.0
    %1969 = vmatpush1.msra.mxu0 0.0
    %1970 = vmatprep.subr.mxu0 0.0
    %1971 = vmatpush1.msra.mxu0 0.0
    %1972 = vmatprep.subr.mxu0 0.0
    %1973 = vmatpush1.msra.mxu0 0.0
    %1974 = vmatprep.subr.mxu0 0.0
    %1975 = vmatpush1.msra.mxu0 0.0
    %1976 = vmatprep.subr.mxu0 0.0
    %1977 = vmatpush1.msra.mxu0 0.0
    %1978 = vmatprep.subr.mxu0 0.0
    %1979 = vmatpush1.msra.mxu0 0.0
    %1980 = vmatprep.subr.mxu0 0.0
    %1981 = vmatpush1.msra.mxu0 0.0
    %1982 = vmatprep.subr.mxu0 0.0
    %1983 = vmatpush1.msra.mxu0 0.0
    %1984 = vmatprep.subr.mxu0 0.0
    %1985 = vmatpush1.msra.mxu0 0.0
    %1986 = vmatprep.subr.mxu0 0.0
    %1987 = vmatpush1.msra.mxu0 0.0
    %1988 = vmatprep.subr.mxu0 0.0
    %1989 = vmatpush1.msra.mxu0 0.0
    %1990 = vmatprep.subr.mxu0 0.0
    %1991 = vmatpush1.msra.mxu0 0.0
    %1992 = vmatprep.subr.mxu0 0.0
    %1993 = vmatpush1.msra.mxu0 0.0
    %1994 = vmatprep.mubr.f32.mxu0 0.0
    %1995 = vmatmul.mubr.f32.gmra.mrb[0].mxu0 %v1926
    %v1996 = vpop.f32.mrb[0].mxu0
    %v1997 = vadd.f32 %v1918, %v1996
    %v1998 = vpop.f32.mrb[0].mxu0
    %1999 = vmatprep.mubr.f32.mxu0 0.0
    %2000 = vmatmul.mubr.f32.gmra.mrb[0].mxu0 %v1928
    %v2001 = vpop.f32.mrb[0].mxu0
    %v2002 = vadd.f32 %v1923, %v2001
    %v2003 = vpop.f32.mrb[0].mxu0
    %2004 = vdwg.mxu0
    %v2006 = vsel %vm1846, %v1840, 0
    %2008 = vmatprep.subr.mxu0 0.0
    %2009 = vmatpush1.msra.mxu0 %v301
    %2010 = vmatprep.subr.mxu0 0.0
    %2011 = vmatpush1.msra.mxu0 %v302
    %2012 = vmatprep.subr.mxu0 0.0
    %2013 = vmatpush1.msra.mxu0 %v303
    %2014 = vmatprep.subr.mxu0 0.0
    %2015 = vmatpush1.msra.mxu0 %v304
    %2016 = vmatprep.subr.mxu0 0.0
    %2017 = vmatpush1.msra.mxu0 %v305
    %2018 = vmatprep.subr.mxu0 0.0
    %2019 = vmatpush1.msra.mxu0 %v306
    %2020 = vmatprep.subr.mxu0 0.0
    %2021 = vmatpush1.msra.mxu0 %v307
    %2022 = vmatprep.subr.mxu0 0.0
    %2023 = vmatpush1.msra.mxu0 %v308
    %2024 = vmatprep.subr.mxu0 0.0
    %2025 = vmatpush1.msra.mxu0 %v309
    %2026 = vmatprep.subr.mxu0 0.0
    %2027 = vmatpush1.msra.mxu0 %v310
    %2028 = vmatprep.subr.mxu0 0.0
    %2029 = vmatpush1.msra.mxu0 0.0
    %2030 = vmatprep.subr.mxu0 0.0
    %2031 = vmatpush1.msra.mxu0 0.0
    %2032 = vmatprep.subr.mxu0 0.0
    %2033 = vmatpush1.msra.mxu0 0.0
    %2034 = vmatprep.subr.mxu0 0.0
    %2035 = vmatpush1.msra.mxu0 0.0
    %2036 = vmatprep.subr.mxu0 0.0
    %2037 = vmatpush1.msra.mxu0 0.0
    %2038 = vmatprep.subr.mxu0 0.0
    %2039 = vmatpush1.msra.mxu0 0.0
    %2040 = vmatprep.subr.mxu0 0.0
    %2041 = vmatpush1.msra.mxu0 0.0
    %2042 = vmatprep.subr.mxu0 0.0
    %2043 = vmatpush1.msra.mxu0 0.0
    %2044 = vmatprep.subr.mxu0 0.0
    %2045 = vmatpush1.msra.mxu0 0.0
    %2046 = vmatprep.subr.mxu0 0.0
    %2047 = vmatpush1.msra.mxu0 0.0
    %2048 = vmatprep.subr.mxu0 0.0
    %2049 = vmatpush1.msra.mxu0 0.0
    %2050 = vmatprep.subr.mxu0 0.0
    %2051 = vmatpush1.msra.mxu0 0.0
    %2052 = vmatprep.subr.mxu0 0.0
    %2053 = vmatpush1.msra.mxu0 0.0
    %2054 = vmatprep.subr.mxu0 0.0
    %2055 = vmatpush1.msra.mxu0 0.0
    %2056 = vmatprep.subr.mxu0 0.0
    %2057 = vmatpush1.msra.mxu0 0.0
    %2058 = vmatprep.subr.mxu0 0.0
    %2059 = vmatpush1.msra.mxu0 0.0
    %2060 = vmatprep.subr.mxu0 0.0
    %2061 = vmatpush1.msra.mxu0 0.0
    %2062 = vmatprep.subr.mxu0 0.0
    %2063 = vmatpush1.msra.mxu0 0.0
    %2064 = vmatprep.subr.mxu0 0.0
    %2065 = vmatpush1.msra.mxu0 0.0
    %2066 = vmatprep.subr.mxu0 0.0
    %2067 = vmatpush1.msra.mxu0 0.0
    %2068 = vmatprep.subr.mxu0 0.0
    %2069 = vmatpush1.msra.mxu0 0.0
    %2070 = vmatprep.subr.mxu0 0.0
    %2071 = vmatpush1.msra.mxu0 0.0
    %2072 = vmatprep.mubr.f32.mxu0 0.0
    %2073 = vmatmul.mubr.f32.gmra.mrb[0].mxu0 %v1928
    %v2074 = vpop.f32.mrb[0].mxu0
    %v2075 = vadd.f32 0.0, %v2074
    %v2076 = vpop.f32.mrb[0].mxu0
    %2077 = vmatprep.mubr.f32.mxu0 0.0
    %2078 = vmatmul.mubr.f32.gmra.mrb[0].mxu0 %v2006
    %v2079 = vpop.f32.mrb[0].mxu0
    %v2080 = vadd.f32 0.0, %v2079
    %v2081 = vpop.f32.mrb[0].mxu0
    %2082 = vdwg.mxu0
    %v2083 = vadd.f32 %v1997, %v2075
    %v2084 = vadd.f32 %v2002, %v2080
    %v2086 = vlaneseq
    %v2087 = vshrl.u32 %v2086, 7
    %v2088 = vsub.s32 0, %v2087
    %v2089 = vrot.slane %v76, %v2088
    %v2091 = vadd.f32 %v2083, %v2089
    %v2092 = vadd.f32 %v2084, %v2089
    %vm2093 = vcmp.ge.f32.partialorder %v2091, 0.0
    %vm2094 = vcmp.ge.f32.partialorder %v2092, 0.0
    %v2095 = vmul.f32 %v2091, 0.1
    %v2096 = vmul.f32 %v2092, 0.1
    %v2097 = vsel %vm2093, %v2091, %v2095
    %v2098 = vsel %vm2094, %v2092, %v2096
    %vm2099 = vcmask 97280
    %v2101 = vsel %vm2099, %v2097, 0
    %v2104 = vsel %vm345, %v312, 0
    %2106 = vmatprep.subr.mxu0 0.0
    %2107 = vmatpush1.msra.mxu0 %v311
    %2108 = vmatprep.subr.mxu0 0.0
    %2109 = vmatpush1.msra.mxu0 %v2104
    %2110 = vmatprep.subr.mxu0 0.0
    %2111 = vmatpush1.msra.mxu0 0.0
    %2112 = vmatprep.subr.mxu0 0.0
    %2113 = vmatpush1.msra.mxu0 0.0
    %2114 = vmatprep.subr.mxu0 0.0
    %2115 = vmatpush1.msra.mxu0 0.0
    %2116 = vmatprep.subr.mxu0 0.0
    %2117 = vmatpush1.msra.mxu0 0.0
    %2118 = vmatprep.subr.mxu0 0.0
    %2119 = vmatpush1.msra.mxu0 0.0
    %2120 = vmatprep.subr.mxu0 0.0
    %2121 = vmatpush1.msra.mxu0 0.0
    %2122 = vmatprep.subr.mxu0 0.0
    %2123 = vmatpush1.msra.mxu0 0.0
    %2124 = vmatprep.subr.mxu0 0.0
    %2125 = vmatpush1.msra.mxu0 0.0
    %2126 = vmatprep.subr.mxu0 0.0
    %2127 = vmatpush1.msra.mxu0 0.0
    %2128 = vmatprep.subr.mxu0 0.0
    %2129 = vmatpush1.msra.mxu0 0.0
    %2130 = vmatprep.subr.mxu0 0.0
    %2131 = vmatpush1.msra.mxu0 0.0
    %2132 = vmatprep.subr.mxu0 0.0
    %2133 = vmatpush1.msra.mxu0 0.0
    %2134 = vmatprep.subr.mxu0 0.0
    %2135 = vmatpush1.msra.mxu0 0.0
    %2136 = vmatprep.subr.mxu0 0.0
    %2137 = vmatpush1.msra.mxu0 0.0
    %2138 = vmatprep.subr.mxu0 0.0
    %2139 = vmatpush1.msra.mxu0 0.0
    %2140 = vmatprep.subr.mxu0 0.0
    %2141 = vmatpush1.msra.mxu0 0.0
    %2142 = vmatprep.subr.mxu0 0.0
    %2143 = vmatpush1.msra.mxu0 0.0
    %2144 = vmatprep.subr.mxu0 0.0
    %2145 = vmatpush1.msra.mxu0 0.0
    %2146 = vmatprep.subr.mxu0 0.0
    %2147 = vmatpush1.msra.mxu0 0.0
    %2148 = vmatprep.subr.mxu0 0.0
    %2149 = vmatpush1.msra.mxu0 0.0
    %2150 = vmatprep.subr.mxu0 0.0
    %2151 = vmatpush1.msra.mxu0 0.0
    %2152 = vmatprep.subr.mxu0 0.0
    %2153 = vmatpush1.msra.mxu0 0.0
    %2154 = vmatprep.subr.mxu0 0.0
    %2155 = vmatpush1.msra.mxu0 0.0
    %2156 = vmatprep.subr.mxu0 0.0
    %2157 = vmatpush1.msra.mxu0 0.0
    %2158 = vmatprep.subr.mxu0 0.0
    %2159 = vmatpush1.msra.mxu0 0.0
    %2160 = vmatprep.subr.mxu0 0.0
    %2161 = vmatpush1.msra.mxu0 0.0
    %2162 = vmatprep.subr.mxu0 0.0
    %2163 = vmatpush1.msra.mxu0 0.0
    %2164 = vmatprep.subr.mxu0 0.0
    %2165 = vmatpush1.msra.mxu0 0.0
    %2166 = vmatprep.subr.mxu0 0.0
    %2167 = vmatpush1.msra.mxu0 0.0
    %2168 = vmatprep.subr.mxu0 0.0
    %2169 = vmatpush1.msra.mxu0 0.0
    %2170 = vmatprep.mubr.f32.mxu0 0.0
    %2171 = vmatmul.mubr.f32.gmra.mrb[0].mxu0 %v2101
    %v2172 = vpop.f32.mrb[0].mxu0
    %v2173 = vadd.f32 0.0, %v2172
    %v2174 = vpop.f32.mrb[0].mxu0
    %2175 = vdwg.mxu0
    %v2176 = vadd.f32 %v319, %v2173
    %v2177 = vrot.slane %v2097, 4
    %v2178 = vsel %vm2099, %v2177, 0
    %v2181 = vsel %vm345, %v315, 0
    %2183 = vmatprep.subr.mxu0 0.0
    %2184 = vmatpush1.msra.mxu0 %v314
    %2185 = vmatprep.subr.mxu0 0.0
    %2186 = vmatpush1.msra.mxu0 %v2181
    %2187 = vmatprep.subr.mxu0 0.0
    %2188 = vmatpush1.msra.mxu0 0.0
    %2189 = vmatprep.subr.mxu0 0.0
    %2190 = vmatpush1.msra.mxu0 0.0
    %2191 = vmatprep.subr.mxu0 0.0
    %2192 = vmatpush1.msra.mxu0 0.0
    %2193 = vmatprep.subr.mxu0 0.0
    %2194 = vmatpush1.msra.mxu0 0.0
    %2195 = vmatprep.subr.mxu0 0.0
    %2196 = vmatpush1.msra.mxu0 0.0
    %2197 = vmatprep.subr.mxu0 0.0
    %2198 = vmatpush1.msra.mxu0 0.0
    %2199 = vmatprep.subr.mxu0 0.0
    %2200 = vmatpush1.msra.mxu0 0.0
    %2201 = vmatprep.subr.mxu0 0.0
    %2202 = vmatpush1.msra.mxu0 0.0
    %2203 = vmatprep.subr.mxu0 0.0
    %2204 = vmatpush1.msra.mxu0 0.0
    %2205 = vmatprep.subr.mxu0 0.0
    %2206 = vmatpush1.msra.mxu0 0.0
    %2207 = vmatprep.subr.mxu0 0.0
    %2208 = vmatpush1.msra.mxu0 0.0
    %2209 = vmatprep.subr.mxu0 0.0
    %2210 = vmatpush1.msra.mxu0 0.0
    %2211 = vmatprep.subr.mxu0 0.0
    %2212 = vmatpush1.msra.mxu0 0.0
    %2213 = vmatprep.subr.mxu0 0.0
    %2214 = vmatpush1.msra.mxu0 0.0
    %2215 = vmatprep.subr.mxu0 0.0
    %2216 = vmatpush1.msra.mxu0 0.0
    %2217 = vmatprep.subr.mxu0 0.0
    %2218 = vmatpush1.msra.mxu0 0.0
    %2219 = vmatprep.subr.mxu0 0.0
    %2220 = vmatpush1.msra.mxu0 0.0
    %2221 = vmatprep.subr.mxu0 0.0
    %2222 = vmatpush1.msra.mxu0 0.0
    %2223 = vmatprep.subr.mxu0 0.0
    %2224 = vmatpush1.msra.mxu0 0.0
    %2225 = vmatprep.subr.mxu0 0.0
    %2226 = vmatpush1.msra.mxu0 0.0
    %2227 = vmatprep.subr.mxu0 0.0
    %2228 = vmatpush1.msra.mxu0 0.0
    %2229 = vmatprep.subr.mxu0 0.0
    %2230 = vmatpush1.msra.mxu0 0.0
    %2231 = vmatprep.subr.mxu0 0.0
    %2232 = vmatpush1.msra.mxu0 0.0
    %2233 = vmatprep.subr.mxu0 0.0
    %2234 = vmatpush1.msra.mxu0 0.0
    %2235 = vmatprep.subr.mxu0 0.0
    %2236 = vmatpush1.msra.mxu0 0.0
    %2237 = vmatprep.subr.mxu0 0.0
    %2238 = vmatpush1.msra.mxu0 0.0
    %2239 = vmatprep.subr.mxu0 0.0
    %2240 = vmatpush1.msra.mxu0 0.0
    %2241 = vmatprep.subr.mxu0 0.0
    %2242 = vmatpush1.msra.mxu0 0.0
    %2243 = vmatprep.subr.mxu0 0.0
    %2244 = vmatpush1.msra.mxu0 0.0
    %2245 = vmatprep.subr.mxu0 0.0
    %2246 = vmatpush1.msra.mxu0 0.0
    %2247 = vmatprep.mubr.f32.mxu0 0.0
    %2248 = vmatmul.mubr.f32.gmra.mrb[0].mxu0 %v2178
    %v2249 = vpop.f32.mrb[0].mxu0
    %v2250 = vadd.f32 0.0, %v2249
    %v2251 = vpop.f32.mrb[0].mxu0
    %2252 = vdwg.mxu0
    %v2253 = vadd.f32 %v2176, %v2250
    %v2255 = vsel %vm2099, %v2098, 0
    %v2258 = vsel %vm345, %v318, 0
    %2260 = vmatprep.subr.mxu0 0.0
    %2261 = vmatpush1.msra.mxu0 %v317
    %2262 = vmatprep.subr.mxu0 0.0
    %2263 = vmatpush1.msra.mxu0 %v2258
    %2264 = vmatprep.subr.mxu0 0.0
    %2265 = vmatpush1.msra.mxu0 0.0
    %2266 = vmatprep.subr.mxu0 0.0
    %2267 = vmatpush1.msra.mxu0 0.0
    %2268 = vmatprep.subr.mxu0 0.0
    %2269 = vmatpush1.msra.mxu0 0.0
    %2270 = vmatprep.subr.mxu0 0.0
    %2271 = vmatpush1.msra.mxu0 0.0
    %2272 = vmatprep.subr.mxu0 0.0
    %2273 = vmatpush1.msra.mxu0 0.0
    %2274 = vmatprep.subr.mxu0 0.0
    %2275 = vmatpush1.msra.mxu0 0.0
    %2276 = vmatprep.subr.mxu0 0.0
    %2277 = vmatpush1.msra.mxu0 0.0
    %2278 = vmatprep.subr.mxu0 0.0
    %2279 = vmatpush1.msra.mxu0 0.0
    %2280 = vmatprep.subr.mxu0 0.0
    %2281 = vmatpush1.msra.mxu0 0.0
    %2282 = vmatprep.subr.mxu0 0.0
    %2283 = vmatpush1.msra.mxu0 0.0
    %2284 = vmatprep.subr.mxu0 0.0
    %2285 = vmatpush1.msra.mxu0 0.0
    %2286 = vmatprep.subr.mxu0 0.0
    %2287 = vmatpush1.msra.mxu0 0.0
    %2288 = vmatprep.subr.mxu0 0.0
    %2289 = vmatpush1.msra.mxu0 0.0
    %2290 = vmatprep.subr.mxu0 0.0
    %2291 = vmatpush1.msra.mxu0 0.0
    %2292 = vmatprep.subr.mxu0 0.0
    %2293 = vmatpush1.msra.mxu0 0.0
    %2294 = vmatprep.subr.mxu0 0.0
    %2295 = vmatpush1.msra.mxu0 0.0
    %2296 = vmatprep.subr.mxu0 0.0
    %2297 = vmatpush1.msra.mxu0 0.0
    %2298 = vmatprep.subr.mxu0 0.0
    %2299 = vmatpush1.msra.mxu0 0.0
    %2300 = vmatprep.subr.mxu0 0.0
    %2301 = vmatpush1.msra.mxu0 0.0
    %2302 = vmatprep.subr.mxu0 0.0
    %2303 = vmatpush1.msra.mxu0 0.0
    %2304 = vmatprep.subr.mxu0 0.0
    %2305 = vmatpush1.msra.mxu0 0.0
    %2306 = vmatprep.subr.mxu0 0.0
    %2307 = vmatpush1.msra.mxu0 0.0
    %2308 = vmatprep.subr.mxu0 0.0
    %2309 = vmatpush1.msra.mxu0 0.0
    %2310 = vmatprep.subr.mxu0 0.0
    %2311 = vmatpush1.msra.mxu0 0.0
    %2312 = vmatprep.subr.mxu0 0.0
    %2313 = vmatpush1.msra.mxu0 0.0
    %2314 = vmatprep.subr.mxu0 0.0
    %2315 = vmatpush1.msra.mxu0 0.0
    %2316 = vmatprep.subr.mxu0 0.0
    %2317 = vmatpush1.msra.mxu0 0.0
    %2318 = vmatprep.subr.mxu0 0.0
    %2319 = vmatpush1.msra.mxu0 0.0
    %2320 = vmatprep.subr.mxu0 0.0
    %2321 = vmatpush1.msra.mxu0 0.0
    %2322 = vmatprep.subr.mxu0 0.0
    %2323 = vmatpush1.msra.mxu0 0.0
    %2324 = vmatprep.mubr.f32.mxu0 0.0
    %2325 = vmatmul.mubr.f32.gmra.mrb[0].mxu0 %v2255
    %v2326 = vpop.f32.mrb[0].mxu0
    %v2327 = vadd.f32 0.0, %v2326
    %v2328 = vpop.f32.mrb[0].mxu0
    %2329 = vdwg.mxu0
    %v2330 = vadd.f32 %v2253, %v2327
    %vm2331 = vcmask 73728
    %2332 = vst.msk [vmem:[#allocation8] sm:$0x1] %vm2331, %v2330
    %s2333 = scalar_lea.vmem %s0, 32
    %v2334 = vld [vmem:[%s2333] sm:$0xff]
    %v2335 = vld [vmem:[%s2333 + $0x8] sm:$0xff]
    %v2336 = vld [vmem:[%s2333 + $0x10] sm:$0xff]
    %v2337 = vld [vmem:[%s2333 + $0x18] sm:$0xf]
    %v2342 = vrot.slane %v2334, 1
    %v2343 = vrot.slane %v2335, 1
    %v2344 = vsel %vm328, %v2342, %v2343
    %v2345 = vrot.slane %v2336, 1
    %v2346 = vsel %vm328, %v2343, %v2345
    %v2347 = vrot.slane %v2337, 1
    %v2348 = vsel %vm328, %v2345, %v2347
    %v2349 = vsel %vm336, %v2344, 0
    %v2351 = vsel %vm336, %v2346, 0
    %v2353 = vsel %vm336, %v2348, 0
    %v2355 = vsel %vm336, %v2347, 0
    %2357 = vmatprep.subr.mxu0 %v95
    %2358 = vmatpush1.msra.mxu0 %v94
    %2359 = vmatprep.subr.mxu0 %v99
    %2360 = vmatpush1.msra.mxu0 %v98
    %2361 = vmatprep.subr.mxu0 %v103
    %2362 = vmatpush1.msra.mxu0 %v102
    %2363 = vmatprep.subr.mxu0 %v350
    %2364 = vmatpush1.msra.mxu0 %v347
    %2365 = vmatprep.subr.mxu0 0.0
    %2366 = vmatpush1.msra.mxu0 0.0
    %2367 = vmatprep.subr.mxu0 0.0
    %2368 = vmatpush1.msra.mxu0 0.0
    %2369 = vmatprep.subr.mxu0 0.0
    %2370 = vmatpush1.msra.mxu0 0.0
    %2371 = vmatprep.subr.mxu0 0.0
    %2372 = vmatpush1.msra.mxu0 0.0
    %2373 = vmatprep.subr.mxu0 0.0
    %2374 = vmatpush1.msra.mxu0 0.0
    %2375 = vmatprep.subr.mxu0 0.0
    %2376 = vmatpush1.msra.mxu0 0.0
    %2377 = vmatprep.subr.mxu0 0.0
    %2378 = vmatpush1.msra.mxu0 0.0
    %2379 = vmatprep.subr.mxu0 0.0
    %2380 = vmatpush1.msra.mxu0 0.0
    %2381 = vmatprep.subr.mxu0 0.0
    %2382 = vmatpush1.msra.mxu0 0.0
    %2383 = vmatprep.subr.mxu0 0.0
    %2384 = vmatpush1.msra.mxu0 0.0
    %2385 = vmatprep.subr.mxu0 0.0
    %2386 = vmatpush1.msra.mxu0 0.0
    %2387 = vmatprep.subr.mxu0 0.0
    %2388 = vmatpush1.msra.mxu0 0.0
    %2389 = vmatprep.subr.mxu0 0.0
    %2390 = vmatpush1.msra.mxu0 0.0
    %2391 = vmatprep.subr.mxu0 0.0
    %2392 = vmatpush1.msra.mxu0 0.0
    %2393 = vmatprep.subr.mxu0 0.0
    %2394 = vmatpush1.msra.mxu0 0.0
    %2395 = vmatprep.subr.mxu0 0.0
    %2396 = vmatpush1.msra.mxu0 0.0
    %2397 = vmatprep.subr.mxu0 0.0
    %2398 = vmatpush1.msra.mxu0 0.0
    %2399 = vmatprep.subr.mxu0 0.0
    %2400 = vmatpush1.msra.mxu0 0.0
    %2401 = vmatprep.subr.mxu0 0.0
    %2402 = vmatpush1.msra.mxu0 0.0
    %2403 = vmatprep.subr.mxu0 0.0
    %2404 = vmatpush1.msra.mxu0 0.0
    %2405 = vmatprep.subr.mxu0 0.0
    %2406 = vmatpush1.msra.mxu0 0.0
    %2407 = vmatprep.subr.mxu0 0.0
    %2408 = vmatpush1.msra.mxu0 0.0
    %2409 = vmatprep.subr.mxu0 0.0
    %2410 = vmatpush1.msra.mxu0 0.0
    %2411 = vmatprep.subr.mxu0 0.0
    %2412 = vmatpush1.msra.mxu0 0.0
    %2413 = vmatprep.subr.mxu0 0.0
    %2414 = vmatpush1.msra.mxu0 0.0
    %2415 = vmatprep.subr.mxu0 0.0
    %2416 = vmatpush1.msra.mxu0 0.0
    %2417 = vmatprep.subr.mxu0 0.0
    %2418 = vmatpush1.msra.mxu0 0.0
    %2419 = vmatprep.subr.mxu0 0.0
    %2420 = vmatpush1.msra.mxu0 0.0
    %2421 = vmatprep.mubr.f32.mxu0 0.0
    %2422 = vmatmul.mubr.f32.gmra.mrb[0].mxu0 %v2349
    %v2423 = vpop.f32.mrb[0].mxu0
    %v2424 = vadd.f32 0.0, %v2423
    %v2425 = vpop.f32.mrb[0].mxu0
    %v2426 = vadd.f32 0.0, %v2425
    %2427 = vmatprep.mubr.f32.mxu0 0.0
    %2428 = vmatmul.mubr.f32.gmra.mrb[0].mxu0 %v2351
    %v2429 = vpop.f32.mrb[0].mxu0
    %v2430 = vadd.f32 0.0, %v2429
    %v2431 = vpop.f32.mrb[0].mxu0
    %v2432 = vadd.f32 0.0, %v2431
    %2433 = vmatprep.mubr.f32.mxu0 0.0
    %2434 = vmatmul.mubr.f32.gmra.mrb[0].mxu0 %v2353
    %v2435 = vpop.f32.mrb[0].mxu0
    %v2436 = vadd.f32 0.0, %v2435
    %v2437 = vpop.f32.mrb[0].mxu0
    %v2438 = vadd.f32 0.0, %v2437
    %2439 = vmatprep.mubr.f32.mxu0 0.0
    %2440 = vmatmul.mubr.f32.gmra.mrb[0].mxu0 %v2355
    %v2441 = vpop.f32.mrb[0].mxu0
    %v2442 = vadd.f32 0.0, %v2441
    %v2443 = vpop.f32.mrb[0].mxu0
    %v2444 = vadd.f32 0.0, %v2443
    %2445 = vdwg.mxu0
    %2446 = vmatprep.subr.mxu0 %v97
    %2447 = vmatpush1.msra.mxu0 %v96
    %2448 = vmatprep.subr.mxu0 %v101
    %2449 = vmatpush1.msra.mxu0 %v100
    %2450 = vmatprep.subr.mxu0 %v105
    %2451 = vmatpush1.msra.mxu0 %v104
    %2452 = vmatprep.subr.mxu0 %v356
    %2453 = vmatpush1.msra.mxu0 %v353
    %2454 = vmatprep.subr.mxu0 0.0
    %2455 = vmatpush1.msra.mxu0 0.0
    %2456 = vmatprep.subr.mxu0 0.0
    %2457 = vmatpush1.msra.mxu0 0.0
    %2458 = vmatprep.subr.mxu0 0.0
    %2459 = vmatpush1.msra.mxu0 0.0
    %2460 = vmatprep.subr.mxu0 0.0
    %2461 = vmatpush1.msra.mxu0 0.0
    %2462 = vmatprep.subr.mxu0 0.0
    %2463 = vmatpush1.msra.mxu0 0.0
    %2464 = vmatprep.subr.mxu0 0.0
    %2465 = vmatpush1.msra.mxu0 0.0
    %2466 = vmatprep.subr.mxu0 0.0
    %2467 = vmatpush1.msra.mxu0 0.0
    %2468 = vmatprep.subr.mxu0 0.0
    %2469 = vmatpush1.msra.mxu0 0.0
    %2470 = vmatprep.subr.mxu0 0.0
    %2471 = vmatpush1.msra.mxu0 0.0
    %2472 = vmatprep.subr.mxu0 0.0
    %2473 = vmatpush1.msra.mxu0 0.0
    %2474 = vmatprep.subr.mxu0 0.0
    %2475 = vmatpush1.msra.mxu0 0.0
    %2476 = vmatprep.subr.mxu0 0.0
    %2477 = vmatpush1.msra.mxu0 0.0
    %2478 = vmatprep.subr.mxu0 0.0
    %2479 = vmatpush1.msra.mxu0 0.0
    %2480 = vmatprep.subr.mxu0 0.0
    %2481 = vmatpush1.msra.mxu0 0.0
    %2482 = vmatprep.subr.mxu0 0.0
    %2483 = vmatpush1.msra.mxu0 0.0
    %2484 = vmatprep.subr.mxu0 0.0
    %2485 = vmatpush1.msra.mxu0 0.0
    %2486 = vmatprep.subr.mxu0 0.0
    %2487 = vmatpush1.msra.mxu0 0.0
    %2488 = vmatprep.subr.mxu0 0.0
    %2489 = vmatpush1.msra.mxu0 0.0
    %2490 = vmatprep.subr.mxu0 0.0
    %2491 = vmatpush1.msra.mxu0 0.0
    %2492 = vmatprep.subr.mxu0 0.0
    %2493 = vmatpush1.msra.mxu0 0.0
    %2494 = vmatprep.subr.mxu0 0.0
    %2495 = vmatpush1.msra.mxu0 0.0
    %2496 = vmatprep.subr.mxu0 0.0
    %2497 = vmatpush1.msra.mxu0 0.0
    %2498 = vmatprep.subr.mxu0 0.0
    %2499 = vmatpush1.msra.mxu0 0.0
    %2500 = vmatprep.subr.mxu0 0.0
    %2501 = vmatpush1.msra.mxu0 0.0
    %2502 = vmatprep.subr.mxu0 0.0
    %2503 = vmatpush1.msra.mxu0 0.0
    %2504 = vmatprep.subr.mxu0 0.0
    %2505 = vmatpush1.msra.mxu0 0.0
    %2506 = vmatprep.subr.mxu0 0.0
    %2507 = vmatpush1.msra.mxu0 0.0
    %2508 = vmatprep.subr.mxu0 0.0
    %2509 = vmatpush1.msra.mxu0 0.0
    %2510 = vmatprep.mubr.f32.mxu0 0.0
    %2511 = vmatmul.mubr.f32.gmra.mrb[0].mxu0 %v2349
    %v2512 = vpop.f32.mrb[0].mxu0
    %v2513 = vadd.f32 0.0, %v2512
    %v2514 = vpop.f32.mrb[0].mxu0
    %v2515 = vadd.f32 0.0, %v2514
    %2516 = vmatprep.mubr.f32.mxu0 0.0
    %2517 = vmatmul.mubr.f32.gmra.mrb[0].mxu0 %v2351
    %v2518 = vpop.f32.mrb[0].mxu0
    %v2519 = vadd.f32 0.0, %v2518
    %v2520 = vpop.f32.mrb[0].mxu0
    %v2521 = vadd.f32 0.0, %v2520
    %2522 = vmatprep.mubr.f32.mxu0 0.0
    %2523 = vmatmul.mubr.f32.gmra.mrb[0].mxu0 %v2353
    %v2524 = vpop.f32.mrb[0].mxu0
    %v2525 = vadd.f32 0.0, %v2524
    %v2526 = vpop.f32.mrb[0].mxu0
    %v2527 = vadd.f32 0.0, %v2526
    %2528 = vmatprep.mubr.f32.mxu0 0.0
    %2529 = vmatmul.mubr.f32.gmra.mrb[0].mxu0 %v2355
    %v2530 = vpop.f32.mrb[0].mxu0
    %v2531 = vadd.f32 0.0, %v2530
    %v2532 = vpop.f32.mrb[0].mxu0
    %v2533 = vadd.f32 0.0, %v2532
    %2534 = vdwg.mxu0
    %v2535 = vsel %vm336, %v2334, 0
    %v2537 = vsel %vm336, %v2335, 0
    %v2539 = vsel %vm336, %v2336, 0
    %v2541 = vsel %vm336, %v2337, 0
    %2543 = vmatprep.subr.mxu0 %v78
    %2544 = vmatpush1.msra.mxu0 %v77
    %2545 = vmatprep.subr.mxu0 %v82
    %2546 = vmatpush1.msra.mxu0 %v81
    %2547 = vmatprep.subr.mxu0 %v86
    %2548 = vmatpush1.msra.mxu0 %v85
    %2549 = vmatprep.subr.mxu0 %v548
    %2550 = vmatpush1.msra.mxu0 %v545
    %2551 = vmatprep.subr.mxu0 0.0
    %2552 = vmatpush1.msra.mxu0 0.0
    %2553 = vmatprep.subr.mxu0 0.0
    %2554 = vmatpush1.msra.mxu0 0.0
    %2555 = vmatprep.subr.mxu0 0.0
    %2556 = vmatpush1.msra.mxu0 0.0
    %2557 = vmatprep.subr.mxu0 0.0
    %2558 = vmatpush1.msra.mxu0 0.0
    %2559 = vmatprep.subr.mxu0 0.0
    %2560 = vmatpush1.msra.mxu0 0.0
    %2561 = vmatprep.subr.mxu0 0.0
    %2562 = vmatpush1.msra.mxu0 0.0
    %2563 = vmatprep.subr.mxu0 0.0
    %2564 = vmatpush1.msra.mxu0 0.0
    %2565 = vmatprep.subr.mxu0 0.0
    %2566 = vmatpush1.msra.mxu0 0.0
    %2567 = vmatprep.subr.mxu0 0.0
    %2568 = vmatpush1.msra.mxu0 0.0
    %2569 = vmatprep.subr.mxu0 0.0
    %2570 = vmatpush1.msra.mxu0 0.0
    %2571 = vmatprep.subr.mxu0 0.0
    %2572 = vmatpush1.msra.mxu0 0.0
    %2573 = vmatprep.subr.mxu0 0.0
    %2574 = vmatpush1.msra.mxu0 0.0
    %2575 = vmatprep.subr.mxu0 0.0
    %2576 = vmatpush1.msra.mxu0 0.0
    %2577 = vmatprep.subr.mxu0 0.0
    %2578 = vmatpush1.msra.mxu0 0.0
    %2579 = vmatprep.subr.mxu0 0.0
    %2580 = vmatpush1.msra.mxu0 0.0
    %2581 = vmatprep.subr.mxu0 0.0
    %2582 = vmatpush1.msra.mxu0 0.0
    %2583 = vmatprep.subr.mxu0 0.0
    %2584 = vmatpush1.msra.mxu0 0.0
    %2585 = vmatprep.subr.mxu0 0.0
    %2586 = vmatpush1.msra.mxu0 0.0
    %2587 = vmatprep.subr.mxu0 0.0
    %2588 = vmatpush1.msra.mxu0 0.0
    %2589 = vmatprep.subr.mxu0 0.0
    %2590 = vmatpush1.msra.mxu0 0.0
    %2591 = vmatprep.subr.mxu0 0.0
    %2592 = vmatpush1.msra.mxu0 0.0
    %2593 = vmatprep.subr.mxu0 0.0
    %2594 = vmatpush1.msra.mxu0 0.0
    %2595 = vmatprep.subr.mxu0 0.0
    %2596 = vmatpush1.msra.mxu0 0.0
    %2597 = vmatprep.subr.mxu0 0.0
    %2598 = vmatpush1.msra.mxu0 0.0
    %2599 = vmatprep.subr.mxu0 0.0
    %2600 = vmatpush1.msra.mxu0 0.0
    %2601 = vmatprep.subr.mxu0 0.0
    %2602 = vmatpush1.msra.mxu0 0.0
    %2603 = vmatprep.subr.mxu0 0.0
    %2604 = vmatpush1.msra.mxu0 0.0
    %2605 = vmatprep.subr.mxu0 0.0
    %2606 = vmatpush1.msra.mxu0 0.0
    %2607 = vmatprep.mubr.f32.mxu0 0.0
    %2608 = vmatmul.mubr.f32.gmra.mrb[0].mxu0 %v2535
    %v2609 = vpop.f32.mrb[0].mxu0
    %v2610 = vadd.f32 %v2424, %v2609
    %v2611 = vpop.f32.mrb[0].mxu0
    %v2612 = vadd.f32 %v2426, %v2611
    %2613 = vmatprep.mubr.f32.mxu0 0.0
    %2614 = vmatmul.mubr.f32.gmra.mrb[0].mxu0 %v2537
    %v2615 = vpop.f32.mrb[0].mxu0
    %v2616 = vadd.f32 %v2430, %v2615
    %v2617 = vpop.f32.mrb[0].mxu0
    %v2618 = vadd.f32 %v2432, %v2617
    %2619 = vmatprep.mubr.f32.mxu0 0.0
    %2620 = vmatmul.mubr.f32.gmra.mrb[0].mxu0 %v2539
    %v2621 = vpop.f32.mrb[0].mxu0
    %v2622 = vadd.f32 %v2436, %v2621
    %v2623 = vpop.f32.mrb[0].mxu0
    %v2624 = vadd.f32 %v2438, %v2623
    %2625 = vmatprep.mubr.f32.mxu0 0.0
    %2626 = vmatmul.mubr.f32.gmra.mrb[0].mxu0 %v2541
    %v2627 = vpop.f32.mrb[0].mxu0
    %v2628 = vadd.f32 %v2442, %v2627
    %v2629 = vpop.f32.mrb[0].mxu0
    %v2630 = vadd.f32 %v2444, %v2629
    %2631 = vdwg.mxu0
    %2632 = vmatprep.subr.mxu0 %v80
    %2633 = vmatpush1.msra.mxu0 %v79
    %2634 = vmatprep.subr.mxu0 %v84
    %2635 = vmatpush1.msra.mxu0 %v83
    %2636 = vmatprep.subr.mxu0 %v88
    %2637 = vmatpush1.msra.mxu0 %v87
    %2638 = vmatprep.subr.mxu0 %v554
    %2639 = vmatpush1.msra.mxu0 %v551
    %2640 = vmatprep.subr.mxu0 0.0
    %2641 = vmatpush1.msra.mxu0 0.0
    %2642 = vmatprep.subr.mxu0 0.0
    %2643 = vmatpush1.msra.mxu0 0.0
    %2644 = vmatprep.subr.mxu0 0.0
    %2645 = vmatpush1.msra.mxu0 0.0
    %2646 = vmatprep.subr.mxu0 0.0
    %2647 = vmatpush1.msra.mxu0 0.0
    %2648 = vmatprep.subr.mxu0 0.0
    %2649 = vmatpush1.msra.mxu0 0.0
    %2650 = vmatprep.subr.mxu0 0.0
    %2651 = vmatpush1.msra.mxu0 0.0
    %2652 = vmatprep.subr.mxu0 0.0
    %2653 = vmatpush1.msra.mxu0 0.0
    %2654 = vmatprep.subr.mxu0 0.0
    %2655 = vmatpush1.msra.mxu0 0.0
    %2656 = vmatprep.subr.mxu0 0.0
    %2657 = vmatpush1.msra.mxu0 0.0
    %2658 = vmatprep.subr.mxu0 0.0
    %2659 = vmatpush1.msra.mxu0 0.0
    %2660 = vmatprep.subr.mxu0 0.0
    %2661 = vmatpush1.msra.mxu0 0.0
    %2662 = vmatprep.subr.mxu0 0.0
    %2663 = vmatpush1.msra.mxu0 0.0
    %2664 = vmatprep.subr.mxu0 0.0
    %2665 = vmatpush1.msra.mxu0 0.0
    %2666 = vmatprep.subr.mxu0 0.0
    %2667 = vmatpush1.msra.mxu0 0.0
    %2668 = vmatprep.subr.mxu0 0.0
    %2669 = vmatpush1.msra.mxu0 0.0
    %2670 = vmatprep.subr.mxu0 0.0
    %2671 = vmatpush1.msra.mxu0 0.0
    %2672 = vmatprep.subr.mxu0 0.0
    %2673 = vmatpush1.msra.mxu0 0.0
    %2674 = vmatprep.subr.mxu0 0.0
    %2675 = vmatpush1.msra.mxu0 0.0
    %2676 = vmatprep.subr.mxu0 0.0
    %2677 = vmatpush1.msra.mxu0 0.0
    %2678 = vmatprep.subr.mxu0 0.0
    %2679 = vmatpush1.msra.mxu0 0.0
    %2680 = vmatprep.subr.mxu0 0.0
    %2681 = vmatpush1.msra.mxu0 0.0
    %2682 = vmatprep.subr.mxu0 0.0
    %2683 = vmatpush1.msra.mxu0 0.0
    %2684 = vmatprep.subr.mxu0 0.0
    %2685 = vmatpush1.msra.mxu0 0.0
    %2686 = vmatprep.subr.mxu0 0.0
    %2687 = vmatpush1.msra.mxu0 0.0
    %2688 = vmatprep.subr.mxu0 0.0
    %2689 = vmatpush1.msra.mxu0 0.0
    %2690 = vmatprep.subr.mxu0 0.0
    %2691 = vmatpush1.msra.mxu0 0.0
    %2692 = vmatprep.subr.mxu0 0.0
    %2693 = vmatpush1.msra.mxu0 0.0
    %2694 = vmatprep.subr.mxu0 0.0
    %2695 = vmatpush1.msra.mxu0 0.0
    %2696 = vmatprep.mubr.f32.mxu0 0.0
    %2697 = vmatmul.mubr.f32.gmra.mrb[0].mxu0 %v2535
    %v2698 = vpop.f32.mrb[0].mxu0
    %v2699 = vadd.f32 %v2513, %v2698
    %v2700 = vpop.f32.mrb[0].mxu0
    %v2701 = vadd.f32 %v2515, %v2700
    %2702 = vmatprep.mubr.f32.mxu0 0.0
    %2703 = vmatmul.mubr.f32.gmra.mrb[0].mxu0 %v2537
    %v2704 = vpop.f32.mrb[0].mxu0
    %v2705 = vadd.f32 %v2519, %v2704
    %v2706 = vpop.f32.mrb[0].mxu0
    %v2707 = vadd.f32 %v2521, %v2706
    %2708 = vmatprep.mubr.f32.mxu0 0.0
    %2709 = vmatmul.mubr.f32.gmra.mrb[0].mxu0 %v2539
    %v2710 = vpop.f32.mrb[0].mxu0
    %v2711 = vadd.f32 %v2525, %v2710
    %v2712 = vpop.f32.mrb[0].mxu0
    %v2713 = vadd.f32 %v2527, %v2712
    %2714 = vmatprep.mubr.f32.mxu0 0.0
    %2715 = vmatmul.mubr.f32.gmra.mrb[0].mxu0 %v2541
    %v2716 = vpop.f32.mrb[0].mxu0
    %v2717 = vadd.f32 %v2531, %v2716
    %v2718 = vpop.f32.mrb[0].mxu0
    %v2719 = vadd.f32 %v2533, %v2718
    %2720 = vdwg.mxu0
    %v2721 = vrot.slane %v2334, 2
    %v2722 = vrot.slane %v2335, 2
    %v2723 = vsel %vm734, %v2721, %v2722
    %v2724 = vrot.slane %v2336, 2
    %v2725 = vsel %vm734, %v2722, %v2724
    %v2726 = vrot.slane %v2337, 2
    %v2727 = vsel %vm734, %v2724, %v2726
    %v2728 = vsel %vm336, %v2723, 0
    %v2730 = vsel %vm336, %v2725, 0
    %v2732 = vsel %vm336, %v2727, 0
    %v2734 = vsel %vm336, %v2726, 0
    %2736 = vmatprep.subr.mxu0 %v112
    %2737 = vmatpush1.msra.mxu0 %v111
    %2738 = vmatprep.subr.mxu0 %v116
    %2739 = vmatpush1.msra.mxu0 %v115
    %2740 = vmatprep.subr.mxu0 %v120
    %2741 = vmatpush1.msra.mxu0 %v119
    %2742 = vmatprep.subr.mxu0 %v754
    %2743 = vmatpush1.msra.mxu0 %v751
    %2744 = vmatprep.subr.mxu0 0.0
    %2745 = vmatpush1.msra.mxu0 0.0
    %2746 = vmatprep.subr.mxu0 0.0
    %2747 = vmatpush1.msra.mxu0 0.0
    %2748 = vmatprep.subr.mxu0 0.0
    %2749 = vmatpush1.msra.mxu0 0.0
    %2750 = vmatprep.subr.mxu0 0.0
    %2751 = vmatpush1.msra.mxu0 0.0
    %2752 = vmatprep.subr.mxu0 0.0
    %2753 = vmatpush1.msra.mxu0 0.0
    %2754 = vmatprep.subr.mxu0 0.0
    %2755 = vmatpush1.msra.mxu0 0.0
    %2756 = vmatprep.subr.mxu0 0.0
    %2757 = vmatpush1.msra.mxu0 0.0
    %2758 = vmatprep.subr.mxu0 0.0
    %2759 = vmatpush1.msra.mxu0 0.0
    %2760 = vmatprep.subr.mxu0 0.0
    %2761 = vmatpush1.msra.mxu0 0.0
    %2762 = vmatprep.subr.mxu0 0.0
    %2763 = vmatpush1.msra.mxu0 0.0
    %2764 = vmatprep.subr.mxu0 0.0
    %2765 = vmatpush1.msra.mxu0 0.0
    %2766 = vmatprep.subr.mxu0 0.0
    %2767 = vmatpush1.msra.mxu0 0.0
    %2768 = vmatprep.subr.mxu0 0.0
    %2769 = vmatpush1.msra.mxu0 0.0
    %2770 = vmatprep.subr.mxu0 0.0
    %2771 = vmatpush1.msra.mxu0 0.0
    %2772 = vmatprep.subr.mxu0 0.0
    %2773 = vmatpush1.msra.mxu0 0.0
    %2774 = vmatprep.subr.mxu0 0.0
    %2775 = vmatpush1.msra.mxu0 0.0
    %2776 = vmatprep.subr.mxu0 0.0
    %2777 = vmatpush1.msra.mxu0 0.0
    %2778 = vmatprep.subr.mxu0 0.0
    %2779 = vmatpush1.msra.mxu0 0.0
    %2780 = vmatprep.subr.mxu0 0.0
    %2781 = vmatpush1.msra.mxu0 0.0
    %2782 = vmatprep.subr.mxu0 0.0
    %2783 = vmatpush1.msra.mxu0 0.0
    %2784 = vmatprep.subr.mxu0 0.0
    %2785 = vmatpush1.msra.mxu0 0.0
    %2786 = vmatprep.subr.mxu0 0.0
    %2787 = vmatpush1.msra.mxu0 0.0
    %2788 = vmatprep.subr.mxu0 0.0
    %2789 = vmatpush1.msra.mxu0 0.0
    %2790 = vmatprep.subr.mxu0 0.0
    %2791 = vmatpush1.msra.mxu0 0.0
    %2792 = vmatprep.subr.mxu0 0.0
    %2793 = vmatpush1.msra.mxu0 0.0
    %2794 = vmatprep.subr.mxu0 0.0
    %2795 = vmatpush1.msra.mxu0 0.0
    %2796 = vmatprep.subr.mxu0 0.0
    %2797 = vmatpush1.msra.mxu0 0.0
    %2798 = vmatprep.subr.mxu0 0.0
    %2799 = vmatpush1.msra.mxu0 0.0
    %2800 = vmatprep.mubr.f32.mxu0 0.0
    %2801 = vmatmul.mubr.f32.gmra.mrb[0].mxu0 %v2728
    %v2802 = vpop.f32.mrb[0].mxu0
    %v2803 = vadd.f32 0.0, %v2802
    %v2804 = vpop.f32.mrb[0].mxu0
    %v2805 = vadd.f32 0.0, %v2804
    %2806 = vmatprep.mubr.f32.mxu0 0.0
    %2807 = vmatmul.mubr.f32.gmra.mrb[0].mxu0 %v2730
    %v2808 = vpop.f32.mrb[0].mxu0
    %v2809 = vadd.f32 0.0, %v2808
    %v2810 = vpop.f32.mrb[0].mxu0
    %v2811 = vadd.f32 0.0, %v2810
    %2812 = vmatprep.mubr.f32.mxu0 0.0
    %2813 = vmatmul.mubr.f32.gmra.mrb[0].mxu0 %v2732
    %v2814 = vpop.f32.mrb[0].mxu0
    %v2815 = vadd.f32 0.0, %v2814
    %v2816 = vpop.f32.mrb[0].mxu0
    %v2817 = vadd.f32 0.0, %v2816
    %2818 = vmatprep.mubr.f32.mxu0 0.0
    %2819 = vmatmul.mubr.f32.gmra.mrb[0].mxu0 %v2734
    %v2820 = vpop.f32.mrb[0].mxu0
    %v2821 = vadd.f32 0.0, %v2820
    %v2822 = vpop.f32.mrb[0].mxu0
    %v2823 = vadd.f32 0.0, %v2822
    %2824 = vdwg.mxu0
    %2825 = vmatprep.subr.mxu0 %v114
    %2826 = vmatpush1.msra.mxu0 %v113
    %2827 = vmatprep.subr.mxu0 %v118
    %2828 = vmatpush1.msra.mxu0 %v117
    %2829 = vmatprep.subr.mxu0 %v122
    %2830 = vmatpush1.msra.mxu0 %v121
    %2831 = vmatprep.subr.mxu0 %v760
    %2832 = vmatpush1.msra.mxu0 %v757
    %2833 = vmatprep.subr.mxu0 0.0
    %2834 = vmatpush1.msra.mxu0 0.0
    %2835 = vmatprep.subr.mxu0 0.0
    %2836 = vmatpush1.msra.mxu0 0.0
    %2837 = vmatprep.subr.mxu0 0.0
    %2838 = vmatpush1.msra.mxu0 0.0
    %2839 = vmatprep.subr.mxu0 0.0
    %2840 = vmatpush1.msra.mxu0 0.0
    %2841 = vmatprep.subr.mxu0 0.0
    %2842 = vmatpush1.msra.mxu0 0.0
    %2843 = vmatprep.subr.mxu0 0.0
    %2844 = vmatpush1.msra.mxu0 0.0
    %2845 = vmatprep.subr.mxu0 0.0
    %2846 = vmatpush1.msra.mxu0 0.0
    %2847 = vmatprep.subr.mxu0 0.0
    %2848 = vmatpush1.msra.mxu0 0.0
    %2849 = vmatprep.subr.mxu0 0.0
    %2850 = vmatpush1.msra.mxu0 0.0
    %2851 = vmatprep.subr.mxu0 0.0
    %2852 = vmatpush1.msra.mxu0 0.0
    %2853 = vmatprep.subr.mxu0 0.0
    %2854 = vmatpush1.msra.mxu0 0.0
    %2855 = vmatprep.subr.mxu0 0.0
    %2856 = vmatpush1.msra.mxu0 0.0
    %2857 = vmatprep.subr.mxu0 0.0
    %2858 = vmatpush1.msra.mxu0 0.0
    %2859 = vmatprep.subr.mxu0 0.0
    %2860 = vmatpush1.msra.mxu0 0.0
    %2861 = vmatprep.subr.mxu0 0.0
    %2862 = vmatpush1.msra.mxu0 0.0
    %2863 = vmatprep.subr.mxu0 0.0
    %2864 = vmatpush1.msra.mxu0 0.0
    %2865 = vmatprep.subr.mxu0 0.0
    %2866 = vmatpush1.msra.mxu0 0.0
    %2867 = vmatprep.subr.mxu0 0.0
    %2868 = vmatpush1.msra.mxu0 0.0
    %2869 = vmatprep.subr.mxu0 0.0
    %2870 = vmatpush1.msra.mxu0 0.0
    %2871 = vmatprep.subr.mxu0 0.0
    %2872 = vmatpush1.msra.mxu0 0.0
    %2873 = vmatprep.subr.mxu0 0.0
    %2874 = vmatpush1.msra.mxu0 0.0
    %2875 = vmatprep.subr.mxu0 0.0
    %2876 = vmatpush1.msra.mxu0 0.0
    %2877 = vmatprep.subr.mxu0 0.0
    %2878 = vmatpush1.msra.mxu0 0.0
    %2879 = vmatprep.subr.mxu0 0.0
    %2880 = vmatpush1.msra.mxu0 0.0
    %2881 = vmatprep.subr.mxu0 0.0
    %2882 = vmatpush1.msra.mxu0 0.0
    %2883 = vmatprep.subr.mxu0 0.0
    %2884 = vmatpush1.msra.mxu0 0.0
    %2885 = vmatprep.subr.mxu0 0.0
    %2886 = vmatpush1.msra.mxu0 0.0
    %2887 = vmatprep.subr.mxu0 0.0
    %2888 = vmatpush1.msra.mxu0 0.0
    %2889 = vmatprep.mubr.f32.mxu0 0.0
    %2890 = vmatmul.mubr.f32.gmra.mrb[0].mxu0 %v2728
    %v2891 = vpop.f32.mrb[0].mxu0
    %v2892 = vadd.f32 0.0, %v2891
    %v2893 = vpop.f32.mrb[0].mxu0
    %v2894 = vadd.f32 0.0, %v2893
    %2895 = vmatprep.mubr.f32.mxu0 0.0
    %2896 = vmatmul.mubr.f32.gmra.mrb[0].mxu0 %v2730
    %v2897 = vpop.f32.mrb[0].mxu0
    %v2898 = vadd.f32 0.0, %v2897
    %v2899 = vpop.f32.mrb[0].mxu0
    %v2900 = vadd.f32 0.0, %v2899
    %2901 = vmatprep.mubr.f32.mxu0 0.0
    %2902 = vmatmul.mubr.f32.gmra.mrb[0].mxu0 %v2732
    %v2903 = vpop.f32.mrb[0].mxu0
    %v2904 = vadd.f32 0.0, %v2903
    %v2905 = vpop.f32.mrb[0].mxu0
    %v2906 = vadd.f32 0.0, %v2905
    %2907 = vmatprep.mubr.f32.mxu0 0.0
    %2908 = vmatmul.mubr.f32.gmra.mrb[0].mxu0 %v2734
    %v2909 = vpop.f32.mrb[0].mxu0
    %v2910 = vadd.f32 0.0, %v2909
    %v2911 = vpop.f32.mrb[0].mxu0
    %v2912 = vadd.f32 0.0, %v2911
    %2913 = vdwg.mxu0
    %v2914 = vadd.f32 %v2610, %v2803
    %v2915 = vadd.f32 %v2612, %v2805
    %v2916 = vadd.f32 %v2699, %v2892
    %v2917 = vadd.f32 %v2701, %v2894
    %v2918 = vadd.f32 %v2616, %v2809
    %v2919 = vadd.f32 %v2618, %v2811
    %v2920 = vadd.f32 %v2705, %v2898
    %v2921 = vadd.f32 %v2707, %v2900
    %v2922 = vadd.f32 %v2622, %v2815
    %v2923 = vadd.f32 %v2624, %v2817
    %v2924 = vadd.f32 %v2711, %v2904
    %v2925 = vadd.f32 %v2713, %v2906
    %v2926 = vadd.f32 %v2628, %v2821
    %v2927 = vadd.f32 %v2630, %v2823
    %v2928 = vadd.f32 %v2717, %v2910
    %v2929 = vadd.f32 %v2719, %v2912
    %v2930 = vadd.f32 %v2914, %v960
    %v2931 = vadd.f32 %v2915, %v964
    %v2932 = vadd.f32 %v2916, %v968
    %v2933 = vadd.f32 %v2917, %v972
    %v2934 = vadd.f32 %v2918, %v960
    %v2935 = vadd.f32 %v2919, %v964
    %v2936 = vadd.f32 %v2920, %v968
    %v2937 = vadd.f32 %v2921, %v972
    %v2938 = vadd.f32 %v2922, %v960
    %v2939 = vadd.f32 %v2923, %v964
    %v2940 = vadd.f32 %v2924, %v968
    %v2941 = vadd.f32 %v2925, %v972
    %v2942 = vadd.f32 %v2926, %v960
    %v2943 = vadd.f32 %v2927, %v964
    %v2944 = vadd.f32 %v2928, %v968
    %v2945 = vadd.f32 %v2929, %v972
    %vm2946 = vcmp.ge.f32.partialorder %v2930, 0.0
    %vm2947 = vcmp.ge.f32.partialorder %v2931, 0.0
    %vm2948 = vcmp.ge.f32.partialorder %v2932, 0.0
    %vm2949 = vcmp.ge.f32.partialorder %v2933, 0.0
    %vm2950 = vcmp.ge.f32.partialorder %v2934, 0.0
    %vm2951 = vcmp.ge.f32.partialorder %v2935, 0.0
    %vm2952 = vcmp.ge.f32.partialorder %v2936, 0.0
    %vm2953 = vcmp.ge.f32.partialorder %v2937, 0.0
    %vm2954 = vcmp.ge.f32.partialorder %v2938, 0.0
    %vm2955 = vcmp.ge.f32.partialorder %v2939, 0.0
    %vm2956 = vcmp.ge.f32.partialorder %v2940, 0.0
    %vm2957 = vcmp.ge.f32.partialorder %v2941, 0.0
    %vm2958 = vcmp.ge.f32.partialorder %v2942, 0.0
    %vm2959 = vcmp.ge.f32.partialorder %v2943, 0.0
    %vm2960 = vcmp.ge.f32.partialorder %v2944, 0.0
    %vm2961 = vcmp.ge.f32.partialorder %v2945, 0.0
    %v2962 = vmul.f32 %v2930, 0.1
    %v2963 = vmul.f32 %v2931, 0.1
    %v2964 = vmul.f32 %v2932, 0.1
    %v2965 = vmul.f32 %v2933, 0.1
    %v2966 = vmul.f32 %v2934, 0.1
    %v2967 = vmul.f32 %v2935, 0.1
    %v2968 = vmul.f32 %v2936, 0.1
    %v2969 = vmul.f32 %v2937, 0.1
    %v2970 = vmul.f32 %v2938, 0.1
    %v2971 = vmul.f32 %v2939, 0.1
    %v2972 = vmul.f32 %v2940, 0.1
    %v2973 = vmul.f32 %v2941, 0.1
    %v2974 = vmul.f32 %v2942, 0.1
    %v2975 = vmul.f32 %v2943, 0.1
    %v2976 = vmul.f32 %v2944, 0.1
    %v2977 = vmul.f32 %v2945, 0.1
    %v2978 = vsel %vm2946, %v2930, %v2962
    %v2979 = vsel %vm2947, %v2931, %v2963
    %v2980 = vsel %vm2948, %v2932, %v2964
    %v2981 = vsel %vm2949, %v2933, %v2965
    %v2982 = vsel %vm2950, %v2934, %v2966
    %v2983 = vsel %vm2951, %v2935, %v2967
    %v2984 = vsel %vm2952, %v2936, %v2968
    %v2985 = vsel %vm2953, %v2937, %v2969
    %v2986 = vsel %vm2954, %v2938, %v2970
    %v2987 = vsel %vm2955, %v2939, %v2971
    %v2988 = vsel %vm2956, %v2940, %v2972
    %v2989 = vsel %vm2957, %v2941, %v2973
    %v2990 = vsel %vm2958, %v2942, %v2974
    %v2991 = vsel %vm2959, %v2943, %v2975
    %v2992 = vsel %vm2960, %v2944, %v2976
    %v2993 = vsel %vm2961, %v2945, %v2977
    %v3010 = vrot.slane %v2978, 1
    %v3011 = vrot.slane %v2982, 1
    %v3012 = vsel %vm328, %v3010, %v3011
    %v3013 = vrot.slane %v2979, 1
    %v3014 = vrot.slane %v2983, 1
    %v3015 = vsel %vm328, %v3013, %v3014
    %v3016 = vrot.slane %v2980, 1
    %v3017 = vrot.slane %v2984, 1
    %v3018 = vsel %vm328, %v3016, %v3017
    %v3019 = vrot.slane %v2981, 1
    %v3020 = vrot.slane %v2985, 1
    %v3021 = vsel %vm328, %v3019, %v3020
    %v3022 = vrot.slane %v2986, 1
    %v3023 = vsel %vm328, %v3011, %v3022
    %v3024 = vrot.slane %v2987, 1
    %v3025 = vsel %vm328, %v3014, %v3024
    %v3026 = vrot.slane %v2988, 1
    %v3027 = vsel %vm328, %v3017, %v3026
    %v3028 = vrot.slane %v2989, 1
    %v3029 = vsel %vm328, %v3020, %v3028
    %v3030 = vrot.slane %v2990, 1
    %v3031 = vsel %vm328, %v3022, %v3030
    %v3032 = vrot.slane %v2991, 1
    %v3033 = vsel %vm328, %v3024, %v3032
    %v3034 = vrot.slane %v2992, 1
    %v3035 = vsel %vm328, %v3026, %v3034
    %v3036 = vrot.slane %v2993, 1
    %v3037 = vsel %vm328, %v3028, %v3036
    %v3054 = vmax.f32 %v2978, %v3012
    %v3055 = vmax.f32 %v2979, %v3015
    %v3056 = vmax.f32 %v2980, %v3018
    %v3057 = vmax.f32 %v2981, %v3021
    %v3058 = vmax.f32 %v2982, %v3023
    %v3059 = vmax.f32 %v2983, %v3025
    %v3060 = vmax.f32 %v2984, %v3027
    %v3061 = vmax.f32 %v2985, %v3029
    %v3062 = vmax.f32 %v2986, %v3031
    %v3063 = vmax.f32 %v2987, %v3033
    %v3064 = vmax.f32 %v2988, %v3035
    %v3065 = vmax.f32 %v2989, %v3037
    %v3066 = vmax.f32 %v2990, %v3030
    %v3067 = vmax.f32 %v2991, %v3032
    %v3068 = vmax.f32 %v2992, %v3034
    %v3069 = vmax.f32 %v2993, %v3036
    %3086 = vrot.lane.b32.xlu0 %v3054, 112
    %v3087 = vpop.permute.xlu0 %3086
    %3088 = vrot.lane.b32.xlu0 %v3055, 112
    %v3089 = vpop.permute.xlu0 %3088
    %3090 = vrot.lane.b32.xlu0 %v3056, 112
    %v3091 = vpop.permute.xlu0 %3090
    %3092 = vrot.lane.b32.xlu0 %v3057, 112
    %v3093 = vpop.permute.xlu0 %3092
    %3094 = vrot.lane.b32.xlu0 %v3058, 112
    %v3095 = vpop.permute.xlu0 %3094
    %3096 = vrot.lane.b32.xlu0 %v3059, 112
    %v3097 = vpop.permute.xlu0 %3096
    %3098 = vrot.lane.b32.xlu0 %v3060, 112
    %v3099 = vpop.permute.xlu0 %3098
    %3100 = vrot.lane.b32.xlu0 %v3061, 112
    %v3101 = vpop.permute.xlu0 %3100
    %3102 = vrot.lane.b32.xlu0 %v3062, 112
    %v3103 = vpop.permute.xlu0 %3102
    %3104 = vrot.lane.b32.xlu0 %v3063, 112
    %v3105 = vpop.permute.xlu0 %3104
    %3106 = vrot.lane.b32.xlu0 %v3064, 112
    %v3107 = vpop.permute.xlu0 %3106
    %3108 = vrot.lane.b32.xlu0 %v3065, 112
    %v3109 = vpop.permute.xlu0 %3108
    %3110 = vrot.lane.b32.xlu0 %v3066, 112
    %v3111 = vpop.permute.xlu0 %3110
    %3112 = vrot.lane.b32.xlu0 %v3067, 112
    %v3113 = vpop.permute.xlu0 %3112
    %3114 = vrot.lane.b32.xlu0 %v3068, 112
    %v3115 = vpop.permute.xlu0 %3114
    %3116 = vrot.lane.b32.xlu0 %v3069, 112
    %v3117 = vpop.permute.xlu0 %3116
    %v3118 = vsel %vm1165, %v3087, %v3089
    %v3119 = vsel %vm1165, %v3089, %v3091
    %v3120 = vsel %vm1165, %v3091, %v3093
    %v3121 = vsel %vm1165, %v3095, %v3097
    %v3122 = vsel %vm1165, %v3097, %v3099
    %v3123 = vsel %vm1165, %v3099, %v3101
    %v3124 = vsel %vm1165, %v3103, %v3105
    %v3125 = vsel %vm1165, %v3105, %v3107
    %v3126 = vsel %vm1165, %v3107, %v3109
    %v3127 = vsel %vm1165, %v3111, %v3113
    %v3128 = vsel %vm1165, %v3113, %v3115
    %v3129 = vsel %vm1165, %v3115, %v3117
    %v3146 = vmax.f32 %v3054, %v3118
    %v3147 = vmax.f32 %v3055, %v3119
    %v3148 = vmax.f32 %v3056, %v3120
    %v3149 = vmax.f32 %v3057, %v3093
    %v3150 = vmax.f32 %v3058, %v3121
    %v3151 = vmax.f32 %v3059, %v3122
    %v3152 = vmax.f32 %v3060, %v3123
    %v3153 = vmax.f32 %v3061, %v3101
    %v3154 = vmax.f32 %v3062, %v3124
    %v3155 = vmax.f32 %v3063, %v3125
    %v3156 = vmax.f32 %v3064, %v3126
    %v3157 = vmax.f32 %v3065, %v3109
    %v3158 = vmax.f32 %v3066, %v3127
    %v3159 = vmax.f32 %v3067, %v3128
    %v3160 = vmax.f32 %v3068, %v3129
    %v3161 = vmax.f32 %v3069, %v3117
    %v3174 = vrot.slane %v3146, 2
    %v3175 = vrot.slane %v3150, 2
    %v3176 = vsel %vm734, %v3174, %v3175
    %v3177 = vrot.slane %v3147, 2
    %v3178 = vrot.slane %v3151, 2
    %v3179 = vsel %vm734, %v3177, %v3178
    %v3180 = vrot.slane %v3148, 2
    %v3181 = vrot.slane %v3152, 2
    %v3182 = vsel %vm734, %v3180, %v3181
    %v3183 = vrot.slane %v3149, 2
    %v3184 = vrot.slane %v3153, 2
    %v3185 = vsel %vm734, %v3183, %v3184
    %v3186 = vrot.slane %v3154, 2
    %v3187 = vsel %vm734, %v3175, %v3186
    %v3188 = vrot.slane %v3155, 2
    %v3189 = vsel %vm734, %v3178, %v3188
    %v3190 = vrot.slane %v3156, 2
    %v3191 = vsel %vm734, %v3181, %v3190
    %v3192 = vrot.slane %v3157, 2
    %v3193 = vsel %vm734, %v3184, %v3192
    %v3203 = vsel %vm1251, %v3185, 0
    %v3205 = vsel %vm1251, %v3193, 0
    %v3207 = vsel %vm1251, %v3192, 0
    %3209 = vmatprep.subr.mxu0 0.0
    %3210 = vmatpush1.msra.mxu0 %v178
    %3211 = vmatprep.subr.mxu0 0.0
    %3212 = vmatpush1.msra.mxu0 %v179
    %3213 = vmatprep.subr.mxu0 0.0
    %3214 = vmatpush1.msra.mxu0 %v180
    %3215 = vmatprep.subr.mxu0 0.0
    %3216 = vmatpush1.msra.mxu0 %v181
    %3217 = vmatprep.subr.mxu0 0.0
    %3218 = vmatpush1.msra.mxu0 %v182
    %3219 = vmatprep.subr.mxu0 0.0
    %3220 = vmatpush1.msra.mxu0 %v183
    %3221 = vmatprep.subr.mxu0 0.0
    %3222 = vmatpush1.msra.mxu0 %v184
    %3223 = vmatprep.subr.mxu0 0.0
    %3224 = vmatpush1.msra.mxu0 %v185
    %3225 = vmatprep.subr.mxu0 0.0
    %3226 = vmatpush1.msra.mxu0 %v186
    %3227 = vmatprep.subr.mxu0 0.0
    %3228 = vmatpush1.msra.mxu0 %v187
    %3229 = vmatprep.subr.mxu0 0.0
    %3230 = vmatpush1.msra.mxu0 %v188
    %3231 = vmatprep.subr.mxu0 0.0
    %3232 = vmatpush1.msra.mxu0 %v189
    %3233 = vmatprep.subr.mxu0 0.0
    %3234 = vmatpush1.msra.mxu0 %v190
    %3235 = vmatprep.subr.mxu0 0.0
    %3236 = vmatpush1.msra.mxu0 %v191
    %3237 = vmatprep.subr.mxu0 0.0
    %3238 = vmatpush1.msra.mxu0 %v192
    %3239 = vmatprep.subr.mxu0 0.0
    %3240 = vmatpush1.msra.mxu0 %v193
    %3241 = vmatprep.subr.mxu0 0.0
    %3242 = vmatpush1.msra.mxu0 %v194
    %3243 = vmatprep.subr.mxu0 0.0
    %3244 = vmatpush1.msra.mxu0 %v195
    %3245 = vmatprep.subr.mxu0 0.0
    %3246 = vmatpush1.msra.mxu0 %v196
    %3247 = vmatprep.subr.mxu0 0.0
    %3248 = vmatpush1.msra.mxu0 %v197
    %3249 = vmatprep.subr.mxu0 0.0
    %3250 = vmatpush1.msra.mxu0 %v198
    %3251 = vmatprep.subr.mxu0 0.0
    %3252 = vmatpush1.msra.mxu0 %v199
    %3253 = vmatprep.subr.mxu0 0.0
    %3254 = vmatpush1.msra.mxu0 %v200
    %3255 = vmatprep.subr.mxu0 0.0
    %3256 = vmatpush1.msra.mxu0 %v201
    %3257 = vmatprep.subr.mxu0 0.0
    %3258 = vmatpush1.msra.mxu0 %v202
    %3259 = vmatprep.subr.mxu0 0.0
    %3260 = vmatpush1.msra.mxu0 %v203
    %3261 = vmatprep.subr.mxu0 0.0
    %3262 = vmatpush1.msra.mxu0 %v204
    %3263 = vmatprep.subr.mxu0 0.0
    %3264 = vmatpush1.msra.mxu0 %v205
    %3265 = vmatprep.subr.mxu0 0.0
    %3266 = vmatpush1.msra.mxu0 %v206
    %3267 = vmatprep.subr.mxu0 0.0
    %3268 = vmatpush1.msra.mxu0 %v207
    %3269 = vmatprep.subr.mxu0 0.0
    %3270 = vmatpush1.msra.mxu0 %v208
    %3271 = vmatprep.subr.mxu0 0.0
    %3272 = vmatpush1.msra.mxu0 %v209
    %3273 = vmatprep.mubr.f32.mxu0 %v3179
    %3274 = vmatmul.mubr.f32.gmra.mrb[0].mxu0 %v3176
    %v3275 = vpop.f32.mrb[0].mxu0
    %v3276 = vadd.f32 0.0, %v3275
    %v3277 = vpop.f32.mrb[0].mxu0
    %3278 = vmatprep.mubr.f32.mxu0 %v3189
    %3279 = vmatmul.mubr.f32.gmra.mrb[0].mxu0 %v3187
    %v3280 = vpop.f32.mrb[0].mxu0
    %v3281 = vadd.f32 0.0, %v3280
    %v3282 = vpop.f32.mrb[0].mxu0
    %3283 = vmatprep.mubr.f32.mxu0 %v3188
    %3284 = vmatmul.mubr.f32.gmra.mrb[0].mxu0 %v3186
    %v3285 = vpop.f32.mrb[0].mxu0
    %v3286 = vadd.f32 0.0, %v3285
    %v3287 = vpop.f32.mrb[0].mxu0
    %3288 = vdwg.mxu0
    %3289 = vmatprep.subr.mxu0 0.0
    %3290 = vmatpush1.msra.mxu0 %v210
    %3291 = vmatprep.subr.mxu0 0.0
    %3292 = vmatpush1.msra.mxu0 %v211
    %3293 = vmatprep.subr.mxu0 0.0
    %3294 = vmatpush1.msra.mxu0 %v212
    %3295 = vmatprep.subr.mxu0 0.0
    %3296 = vmatpush1.msra.mxu0 %v213
    %3297 = vmatprep.subr.mxu0 0.0
    %3298 = vmatpush1.msra.mxu0 %v214
    %3299 = vmatprep.subr.mxu0 0.0
    %3300 = vmatpush1.msra.mxu0 %v215
    %3301 = vmatprep.subr.mxu0 0.0
    %3302 = vmatpush1.msra.mxu0 %v216
    %3303 = vmatprep.subr.mxu0 0.0
    %3304 = vmatpush1.msra.mxu0 %v217
    %3305 = vmatprep.subr.mxu0 0.0
    %3306 = vmatpush1.msra.mxu0 %v218
    %3307 = vmatprep.subr.mxu0 0.0
    %3308 = vmatpush1.msra.mxu0 %v219
    %3309 = vmatprep.subr.mxu0 0.0
    %3310 = vmatpush1.msra.mxu0 %v220
    %3311 = vmatprep.subr.mxu0 0.0
    %3312 = vmatpush1.msra.mxu0 %v221
    %3313 = vmatprep.subr.mxu0 0.0
    %3314 = vmatpush1.msra.mxu0 %v222
    %3315 = vmatprep.subr.mxu0 0.0
    %3316 = vmatpush1.msra.mxu0 %v223
    %3317 = vmatprep.subr.mxu0 0.0
    %3318 = vmatpush1.msra.mxu0 %v224
    %3319 = vmatprep.subr.mxu0 0.0
    %3320 = vmatpush1.msra.mxu0 %v225
    %3321 = vmatprep.subr.mxu0 0.0
    %3322 = vmatpush1.msra.mxu0 %v226
    %3323 = vmatprep.subr.mxu0 0.0
    %3324 = vmatpush1.msra.mxu0 %v227
    %3325 = vmatprep.subr.mxu0 0.0
    %3326 = vmatpush1.msra.mxu0 0.0
    %3327 = vmatprep.subr.mxu0 0.0
    %3328 = vmatpush1.msra.mxu0 0.0
    %3329 = vmatprep.subr.mxu0 0.0
    %3330 = vmatpush1.msra.mxu0 0.0
    %3331 = vmatprep.subr.mxu0 0.0
    %3332 = vmatpush1.msra.mxu0 0.0
    %3333 = vmatprep.subr.mxu0 0.0
    %3334 = vmatpush1.msra.mxu0 0.0
    %3335 = vmatprep.subr.mxu0 0.0
    %3336 = vmatpush1.msra.mxu0 0.0
    %3337 = vmatprep.subr.mxu0 0.0
    %3338 = vmatpush1.msra.mxu0 0.0
    %3339 = vmatprep.subr.mxu0 0.0
    %3340 = vmatpush1.msra.mxu0 0.0
    %3341 = vmatprep.subr.mxu0 0.0
    %3342 = vmatpush1.msra.mxu0 0.0
    %3343 = vmatprep.subr.mxu0 0.0
    %3344 = vmatpush1.msra.mxu0 0.0
    %3345 = vmatprep.subr.mxu0 0.0
    %3346 = vmatpush1.msra.mxu0 0.0
    %3347 = vmatprep.subr.mxu0 0.0
    %3348 = vmatpush1.msra.mxu0 0.0
    %3349 = vmatprep.subr.mxu0 0.0
    %3350 = vmatpush1.msra.mxu0 0.0
    %3351 = vmatprep.subr.mxu0 0.0
    %3352 = vmatpush1.msra.mxu0 0.0
    %3353 = vmatprep.mubr.f32.mxu0 %v3203
    %3354 = vmatmul.mubr.f32.gmra.mrb[0].mxu0 %v3182
    %v3355 = vpop.f32.mrb[0].mxu0
    %v3356 = vadd.f32 %v3276, %v3355
    %v3357 = vpop.f32.mrb[0].mxu0
    %3358 = vmatprep.mubr.f32.mxu0 %v3205
    %3359 = vmatmul.mubr.f32.gmra.mrb[0].mxu0 %v3191
    %v3360 = vpop.f32.mrb[0].mxu0
    %v3361 = vadd.f32 %v3281, %v3360
    %v3362 = vpop.f32.mrb[0].mxu0
    %3363 = vmatprep.mubr.f32.mxu0 %v3207
    %3364 = vmatmul.mubr.f32.gmra.mrb[0].mxu0 %v3190
    %v3365 = vpop.f32.mrb[0].mxu0
    %v3366 = vadd.f32 %v3286, %v3365
    %v3367 = vpop.f32.mrb[0].mxu0
    %3368 = vdwg.mxu0
    %v3369 = vsel %vm1251, %v3149, 0
    %v3371 = vsel %vm1251, %v3153, 0
    %v3373 = vsel %vm1251, %v3157, 0
    %3375 = vmatprep.subr.mxu0 0.0
    %3376 = vmatpush1.msra.mxu0 %v127
    %3377 = vmatprep.subr.mxu0 0.0
    %3378 = vmatpush1.msra.mxu0 %v128
    %3379 = vmatprep.subr.mxu0 0.0
    %3380 = vmatpush1.msra.mxu0 %v129
    %3381 = vmatprep.subr.mxu0 0.0
    %3382 = vmatpush1.msra.mxu0 %v130
    %3383 = vmatprep.subr.mxu0 0.0
    %3384 = vmatpush1.msra.mxu0 %v131
    %3385 = vmatprep.subr.mxu0 0.0
    %3386 = vmatpush1.msra.mxu0 %v132
    %3387 = vmatprep.subr.mxu0 0.0
    %3388 = vmatpush1.msra.mxu0 %v133
    %3389 = vmatprep.subr.mxu0 0.0
    %3390 = vmatpush1.msra.mxu0 %v134
    %3391 = vmatprep.subr.mxu0 0.0
    %3392 = vmatpush1.msra.mxu0 %v135
    %3393 = vmatprep.subr.mxu0 0.0
    %3394 = vmatpush1.msra.mxu0 %v136
    %3395 = vmatprep.subr.mxu0 0.0
    %3396 = vmatpush1.msra.mxu0 %v137
    %3397 = vmatprep.subr.mxu0 0.0
    %3398 = vmatpush1.msra.mxu0 %v138
    %3399 = vmatprep.subr.mxu0 0.0
    %3400 = vmatpush1.msra.mxu0 %v139
    %3401 = vmatprep.subr.mxu0 0.0
    %3402 = vmatpush1.msra.mxu0 %v140
    %3403 = vmatprep.subr.mxu0 0.0
    %3404 = vmatpush1.msra.mxu0 %v141
    %3405 = vmatprep.subr.mxu0 0.0
    %3406 = vmatpush1.msra.mxu0 %v142
    %3407 = vmatprep.subr.mxu0 0.0
    %3408 = vmatpush1.msra.mxu0 %v143
    %3409 = vmatprep.subr.mxu0 0.0
    %3410 = vmatpush1.msra.mxu0 %v144
    %3411 = vmatprep.subr.mxu0 0.0
    %3412 = vmatpush1.msra.mxu0 %v145
    %3413 = vmatprep.subr.mxu0 0.0
    %3414 = vmatpush1.msra.mxu0 %v146
    %3415 = vmatprep.subr.mxu0 0.0
    %3416 = vmatpush1.msra.mxu0 %v147
    %3417 = vmatprep.subr.mxu0 0.0
    %3418 = vmatpush1.msra.mxu0 %v148
    %3419 = vmatprep.subr.mxu0 0.0
    %3420 = vmatpush1.msra.mxu0 %v149
    %3421 = vmatprep.subr.mxu0 0.0
    %3422 = vmatpush1.msra.mxu0 %v150
    %3423 = vmatprep.subr.mxu0 0.0
    %3424 = vmatpush1.msra.mxu0 %v151
    %3425 = vmatprep.subr.mxu0 0.0
    %3426 = vmatpush1.msra.mxu0 %v152
    %3427 = vmatprep.subr.mxu0 0.0
    %3428 = vmatpush1.msra.mxu0 %v153
    %3429 = vmatprep.subr.mxu0 0.0
    %3430 = vmatpush1.msra.mxu0 %v154
    %3431 = vmatprep.subr.mxu0 0.0
    %3432 = vmatpush1.msra.mxu0 %v155
    %3433 = vmatprep.subr.mxu0 0.0
    %3434 = vmatpush1.msra.mxu0 %v156
    %3435 = vmatprep.subr.mxu0 0.0
    %3436 = vmatpush1.msra.mxu0 %v157
    %3437 = vmatprep.subr.mxu0 0.0
    %3438 = vmatpush1.msra.mxu0 %v158
    %3439 = vmatprep.mubr.f32.mxu0 %v3147
    %3440 = vmatmul.mubr.f32.gmra.mrb[0].mxu0 %v3146
    %v3441 = vpop.f32.mrb[0].mxu0
    %v3442 = vadd.f32 %v3356, %v3441
    %v3443 = vpop.f32.mrb[0].mxu0
    %3444 = vmatprep.mubr.f32.mxu0 %v3151
    %3445 = vmatmul.mubr.f32.gmra.mrb[0].mxu0 %v3150
    %v3446 = vpop.f32.mrb[0].mxu0
    %v3447 = vadd.f32 %v3361, %v3446
    %v3448 = vpop.f32.mrb[0].mxu0
    %3449 = vmatprep.mubr.f32.mxu0 %v3155
    %3450 = vmatmul.mubr.f32.gmra.mrb[0].mxu0 %v3154
    %v3451 = vpop.f32.mrb[0].mxu0
    %v3452 = vadd.f32 %v3366, %v3451
    %v3453 = vpop.f32.mrb[0].mxu0
    %3454 = vdwg.mxu0
    %3455 = vmatprep.subr.mxu0 0.0
    %3456 = vmatpush1.msra.mxu0 %v159
    %3457 = vmatprep.subr.mxu0 0.0
    %3458 = vmatpush1.msra.mxu0 %v160
    %3459 = vmatprep.subr.mxu0 0.0
    %3460 = vmatpush1.msra.mxu0 %v161
    %3461 = vmatprep.subr.mxu0 0.0
    %3462 = vmatpush1.msra.mxu0 %v162
    %3463 = vmatprep.subr.mxu0 0.0
    %3464 = vmatpush1.msra.mxu0 %v163
    %3465 = vmatprep.subr.mxu0 0.0
    %3466 = vmatpush1.msra.mxu0 %v164
    %3467 = vmatprep.subr.mxu0 0.0
    %3468 = vmatpush1.msra.mxu0 %v165
    %3469 = vmatprep.subr.mxu0 0.0
    %3470 = vmatpush1.msra.mxu0 %v166
    %3471 = vmatprep.subr.mxu0 0.0
    %3472 = vmatpush1.msra.mxu0 %v167
    %3473 = vmatprep.subr.mxu0 0.0
    %3474 = vmatpush1.msra.mxu0 %v168
    %3475 = vmatprep.subr.mxu0 0.0
    %3476 = vmatpush1.msra.mxu0 %v169
    %3477 = vmatprep.subr.mxu0 0.0
    %3478 = vmatpush1.msra.mxu0 %v170
    %3479 = vmatprep.subr.mxu0 0.0
    %3480 = vmatpush1.msra.mxu0 %v171
    %3481 = vmatprep.subr.mxu0 0.0
    %3482 = vmatpush1.msra.mxu0 %v172
    %3483 = vmatprep.subr.mxu0 0.0
    %3484 = vmatpush1.msra.mxu0 %v173
    %3485 = vmatprep.subr.mxu0 0.0
    %3486 = vmatpush1.msra.mxu0 %v174
    %3487 = vmatprep.subr.mxu0 0.0
    %3488 = vmatpush1.msra.mxu0 %v175
    %3489 = vmatprep.subr.mxu0 0.0
    %3490 = vmatpush1.msra.mxu0 %v176
    %3491 = vmatprep.subr.mxu0 0.0
    %3492 = vmatpush1.msra.mxu0 0.0
    %3493 = vmatprep.subr.mxu0 0.0
    %3494 = vmatpush1.msra.mxu0 0.0
    %3495 = vmatprep.subr.mxu0 0.0
    %3496 = vmatpush1.msra.mxu0 0.0
    %3497 = vmatprep.subr.mxu0 0.0
    %3498 = vmatpush1.msra.mxu0 0.0
    %3499 = vmatprep.subr.mxu0 0.0
    %3500 = vmatpush1.msra.mxu0 0.0
    %3501 = vmatprep.subr.mxu0 0.0
    %3502 = vmatpush1.msra.mxu0 0.0
    %3503 = vmatprep.subr.mxu0 0.0
    %3504 = vmatpush1.msra.mxu0 0.0
    %3505 = vmatprep.subr.mxu0 0.0
    %3506 = vmatpush1.msra.mxu0 0.0
    %3507 = vmatprep.subr.mxu0 0.0
    %3508 = vmatpush1.msra.mxu0 0.0
    %3509 = vmatprep.subr.mxu0 0.0
    %3510 = vmatpush1.msra.mxu0 0.0
    %3511 = vmatprep.subr.mxu0 0.0
    %3512 = vmatpush1.msra.mxu0 0.0
    %3513 = vmatprep.subr.mxu0 0.0
    %3514 = vmatpush1.msra.mxu0 0.0
    %3515 = vmatprep.subr.mxu0 0.0
    %3516 = vmatpush1.msra.mxu0 0.0
    %3517 = vmatprep.subr.mxu0 0.0
    %3518 = vmatpush1.msra.mxu0 0.0
    %3519 = vmatprep.mubr.f32.mxu0 %v3369
    %3520 = vmatmul.mubr.f32.gmra.mrb[0].mxu0 %v3148
    %v3521 = vpop.f32.mrb[0].mxu0
    %v3522 = vadd.f32 %v3442, %v3521
    %v3523 = vpop.f32.mrb[0].mxu0
    %3524 = vmatprep.mubr.f32.mxu0 %v3371
    %3525 = vmatmul.mubr.f32.gmra.mrb[0].mxu0 %v3152
    %v3526 = vpop.f32.mrb[0].mxu0
    %v3527 = vadd.f32 %v3447, %v3526
    %v3528 = vpop.f32.mrb[0].mxu0
    %3529 = vmatprep.mubr.f32.mxu0 %v3373
    %3530 = vmatmul.mubr.f32.gmra.mrb[0].mxu0 %v3156
    %v3531 = vpop.f32.mrb[0].mxu0
    %v3532 = vadd.f32 %v3452, %v3531
    %v3533 = vpop.f32.mrb[0].mxu0
    %3534 = vdwg.mxu0
    %v3539 = vrot.slane %v3146, 4
    %v3540 = vrot.slane %v3150, 4
    %v3541 = vsel %vm345, %v3539, %v3540
    %v3542 = vrot.slane %v3147, 4
    %v3543 = vrot.slane %v3151, 4
    %v3544 = vsel %vm345, %v3542, %v3543
    %v3545 = vrot.slane %v3148, 4
    %v3546 = vrot.slane %v3152, 4
    %v3547 = vsel %vm345, %v3545, %v3546
    %v3548 = vrot.slane %v3149, 4
    %v3549 = vrot.slane %v3153, 4
    %v3550 = vsel %vm345, %v3548, %v3549
    %v3551 = vrot.slane %v3154, 4
    %v3552 = vsel %vm345, %v3540, %v3551
    %v3553 = vrot.slane %v3155, 4
    %v3554 = vsel %vm345, %v3543, %v3553
    %v3555 = vrot.slane %v3156, 4
    %v3556 = vsel %vm345, %v3546, %v3555
    %v3557 = vrot.slane %v3157, 4
    %v3558 = vsel %vm345, %v3549, %v3557
    %v3559 = vrot.slane %v3158, 4
    %v3560 = vsel %vm345, %v3551, %v3559
    %v3561 = vrot.slane %v3159, 4
    %v3562 = vsel %vm345, %v3553, %v3561
    %v3563 = vrot.slane %v3160, 4
    %v3564 = vsel %vm345, %v3555, %v3563
    %v3565 = vrot.slane %v3161, 4
    %v3566 = vsel %vm345, %v3557, %v3565
    %v3576 = vsel %vm1251, %v3550, 0
    %v3578 = vsel %vm1251, %v3558, 0
    %v3580 = vsel %vm1251, %v3566, 0
    %3582 = vmatprep.subr.mxu0 0.0
    %3583 = vmatpush1.msra.mxu0 %v229
    %3584 = vmatprep.subr.mxu0 0.0
    %3585 = vmatpush1.msra.mxu0 %v230
    %3586 = vmatprep.subr.mxu0 0.0
    %3587 = vmatpush1.msra.mxu0 %v231
    %3588 = vmatprep.subr.mxu0 0.0
    %3589 = vmatpush1.msra.mxu0 %v232
    %3590 = vmatprep.subr.mxu0 0.0
    %3591 = vmatpush1.msra.mxu0 %v233
    %3592 = vmatprep.subr.mxu0 0.0
    %3593 = vmatpush1.msra.mxu0 %v234
    %3594 = vmatprep.subr.mxu0 0.0
    %3595 = vmatpush1.msra.mxu0 %v235
    %3596 = vmatprep.subr.mxu0 0.0
    %3597 = vmatpush1.msra.mxu0 %v236
    %3598 = vmatprep.subr.mxu0 0.0
    %3599 = vmatpush1.msra.mxu0 %v237
    %3600 = vmatprep.subr.mxu0 0.0
    %3601 = vmatpush1.msra.mxu0 %v238
    %3602 = vmatprep.subr.mxu0 0.0
    %3603 = vmatpush1.msra.mxu0 %v239
    %3604 = vmatprep.subr.mxu0 0.0
    %3605 = vmatpush1.msra.mxu0 %v240
    %3606 = vmatprep.subr.mxu0 0.0
    %3607 = vmatpush1.msra.mxu0 %v241
    %3608 = vmatprep.subr.mxu0 0.0
    %3609 = vmatpush1.msra.mxu0 %v242
    %3610 = vmatprep.subr.mxu0 0.0
    %3611 = vmatpush1.msra.mxu0 %v243
    %3612 = vmatprep.subr.mxu0 0.0
    %3613 = vmatpush1.msra.mxu0 %v244
    %3614 = vmatprep.subr.mxu0 0.0
    %3615 = vmatpush1.msra.mxu0 %v245
    %3616 = vmatprep.subr.mxu0 0.0
    %3617 = vmatpush1.msra.mxu0 %v246
    %3618 = vmatprep.subr.mxu0 0.0
    %3619 = vmatpush1.msra.mxu0 %v247
    %3620 = vmatprep.subr.mxu0 0.0
    %3621 = vmatpush1.msra.mxu0 %v248
    %3622 = vmatprep.subr.mxu0 0.0
    %3623 = vmatpush1.msra.mxu0 %v249
    %3624 = vmatprep.subr.mxu0 0.0
    %3625 = vmatpush1.msra.mxu0 %v250
    %3626 = vmatprep.subr.mxu0 0.0
    %3627 = vmatpush1.msra.mxu0 %v251
    %3628 = vmatprep.subr.mxu0 0.0
    %3629 = vmatpush1.msra.mxu0 %v252
    %3630 = vmatprep.subr.mxu0 0.0
    %3631 = vmatpush1.msra.mxu0 %v253
    %3632 = vmatprep.subr.mxu0 0.0
    %3633 = vmatpush1.msra.mxu0 %v254
    %3634 = vmatprep.subr.mxu0 0.0
    %3635 = vmatpush1.msra.mxu0 %v255
    %3636 = vmatprep.subr.mxu0 0.0
    %3637 = vmatpush1.msra.mxu0 %v256
    %3638 = vmatprep.subr.mxu0 0.0
    %3639 = vmatpush1.msra.mxu0 %v257
    %3640 = vmatprep.subr.mxu0 0.0
    %3641 = vmatpush1.msra.mxu0 %v258
    %3642 = vmatprep.subr.mxu0 0.0
    %3643 = vmatpush1.msra.mxu0 %v259
    %3644 = vmatprep.subr.mxu0 0.0
    %3645 = vmatpush1.msra.mxu0 %v260
    %3646 = vmatprep.mubr.f32.mxu0 %v3544
    %3647 = vmatmul.mubr.f32.gmra.mrb[0].mxu0 %v3541
    %v3648 = vpop.f32.mrb[0].mxu0
    %v3649 = vadd.f32 0.0, %v3648
    %v3650 = vpop.f32.mrb[0].mxu0
    %3651 = vmatprep.mubr.f32.mxu0 %v3554
    %3652 = vmatmul.mubr.f32.gmra.mrb[0].mxu0 %v3552
    %v3653 = vpop.f32.mrb[0].mxu0
    %v3654 = vadd.f32 0.0, %v3653
    %v3655 = vpop.f32.mrb[0].mxu0
    %3656 = vmatprep.mubr.f32.mxu0 %v3562
    %3657 = vmatmul.mubr.f32.gmra.mrb[0].mxu0 %v3560
    %v3658 = vpop.f32.mrb[0].mxu0
    %v3659 = vadd.f32 0.0, %v3658
    %v3660 = vpop.f32.mrb[0].mxu0
    %3661 = vdwg.mxu0
    %3662 = vmatprep.subr.mxu0 0.0
    %3663 = vmatpush1.msra.mxu0 %v261
    %3664 = vmatprep.subr.mxu0 0.0
    %3665 = vmatpush1.msra.mxu0 %v262
    %3666 = vmatprep.subr.mxu0 0.0
    %3667 = vmatpush1.msra.mxu0 %v263
    %3668 = vmatprep.subr.mxu0 0.0
    %3669 = vmatpush1.msra.mxu0 %v264
    %3670 = vmatprep.subr.mxu0 0.0
    %3671 = vmatpush1.msra.mxu0 %v265
    %3672 = vmatprep.subr.mxu0 0.0
    %3673 = vmatpush1.msra.mxu0 %v266
    %3674 = vmatprep.subr.mxu0 0.0
    %3675 = vmatpush1.msra.mxu0 %v267
    %3676 = vmatprep.subr.mxu0 0.0
    %3677 = vmatpush1.msra.mxu0 %v268
    %3678 = vmatprep.subr.mxu0 0.0
    %3679 = vmatpush1.msra.mxu0 %v269
    %3680 = vmatprep.subr.mxu0 0.0
    %3681 = vmatpush1.msra.mxu0 %v270
    %3682 = vmatprep.subr.mxu0 0.0
    %3683 = vmatpush1.msra.mxu0 %v271
    %3684 = vmatprep.subr.mxu0 0.0
    %3685 = vmatpush1.msra.mxu0 %v272
    %3686 = vmatprep.subr.mxu0 0.0
    %3687 = vmatpush1.msra.mxu0 %v273
    %3688 = vmatprep.subr.mxu0 0.0
    %3689 = vmatpush1.msra.mxu0 %v274
    %3690 = vmatprep.subr.mxu0 0.0
    %3691 = vmatpush1.msra.mxu0 %v275
    %3692 = vmatprep.subr.mxu0 0.0
    %3693 = vmatpush1.msra.mxu0 %v276
    %3694 = vmatprep.subr.mxu0 0.0
    %3695 = vmatpush1.msra.mxu0 %v277
    %3696 = vmatprep.subr.mxu0 0.0
    %3697 = vmatpush1.msra.mxu0 %v278
    %3698 = vmatprep.subr.mxu0 0.0
    %3699 = vmatpush1.msra.mxu0 0.0
    %3700 = vmatprep.subr.mxu0 0.0
    %3701 = vmatpush1.msra.mxu0 0.0
    %3702 = vmatprep.subr.mxu0 0.0
    %3703 = vmatpush1.msra.mxu0 0.0
    %3704 = vmatprep.subr.mxu0 0.0
    %3705 = vmatpush1.msra.mxu0 0.0
    %3706 = vmatprep.subr.mxu0 0.0
    %3707 = vmatpush1.msra.mxu0 0.0
    %3708 = vmatprep.subr.mxu0 0.0
    %3709 = vmatpush1.msra.mxu0 0.0
    %3710 = vmatprep.subr.mxu0 0.0
    %3711 = vmatpush1.msra.mxu0 0.0
    %3712 = vmatprep.subr.mxu0 0.0
    %3713 = vmatpush1.msra.mxu0 0.0
    %3714 = vmatprep.subr.mxu0 0.0
    %3715 = vmatpush1.msra.mxu0 0.0
    %3716 = vmatprep.subr.mxu0 0.0
    %3717 = vmatpush1.msra.mxu0 0.0
    %3718 = vmatprep.subr.mxu0 0.0
    %3719 = vmatpush1.msra.mxu0 0.0
    %3720 = vmatprep.subr.mxu0 0.0
    %3721 = vmatpush1.msra.mxu0 0.0
    %3722 = vmatprep.subr.mxu0 0.0
    %3723 = vmatpush1.msra.mxu0 0.0
    %3724 = vmatprep.subr.mxu0 0.0
    %3725 = vmatpush1.msra.mxu0 0.0
    %3726 = vmatprep.mubr.f32.mxu0 %v3576
    %3727 = vmatmul.mubr.f32.gmra.mrb[0].mxu0 %v3547
    %v3728 = vpop.f32.mrb[0].mxu0
    %v3729 = vadd.f32 %v3649, %v3728
    %v3730 = vpop.f32.mrb[0].mxu0
    %3731 = vmatprep.mubr.f32.mxu0 %v3578
    %3732 = vmatmul.mubr.f32.gmra.mrb[0].mxu0 %v3556
    %v3733 = vpop.f32.mrb[0].mxu0
    %v3734 = vadd.f32 %v3654, %v3733
    %v3735 = vpop.f32.mrb[0].mxu0
    %3736 = vmatprep.mubr.f32.mxu0 %v3580
    %3737 = vmatmul.mubr.f32.gmra.mrb[0].mxu0 %v3564
    %v3738 = vpop.f32.mrb[0].mxu0
    %v3739 = vadd.f32 %v3659, %v3738
    %v3740 = vpop.f32.mrb[0].mxu0
    %3741 = vdwg.mxu0
    %v3742 = vadd.f32 %v3522, %v3729
    %v3743 = vadd.f32 %v3527, %v3734
    %v3744 = vadd.f32 %v3532, %v3739
    %v3745 = vadd.f32 %v3742, %v1798
    %v3746 = vadd.f32 %v3743, %v1798
    %v3747 = vadd.f32 %v3744, %v1798
    %vm3748 = vcmp.ge.f32.partialorder %v3745, 0.0
    %vm3749 = vcmp.ge.f32.partialorder %v3746, 0.0
    %vm3750 = vcmp.ge.f32.partialorder %v3747, 0.0
    %v3751 = vmul.f32 %v3745, 0.1
    %v3752 = vmul.f32 %v3746, 0.1
    %v3753 = vmul.f32 %v3747, 0.1
    %v3754 = vsel %vm3748, %v3745, %v3751
    %v3755 = vsel %vm3749, %v3746, %v3752
    %v3756 = vsel %vm3750, %v3747, %v3753
    %v3760 = vrot.slane %v3754, 2
    %v3761 = vrot.slane %v3755, 2
    %v3762 = vsel %vm734, %v3760, %v3761
    %v3763 = vrot.slane %v3756, 2
    %v3764 = vsel %vm734, %v3761, %v3763
    %v3768 = vmax.f32 %v3754, %v3762
    %v3769 = vmax.f32 %v3755, %v3764
    %v3770 = vmax.f32 %v3756, %v3763
    %3774 = vrot.lane.b32.xlu0 %v3768, 120
    %v3775 = vpop.permute.xlu0 %3774
    %3776 = vrot.lane.b32.xlu0 %v3769, 120
    %v3777 = vpop.permute.xlu0 %3776
    %3778 = vrot.lane.b32.xlu0 %v3770, 120
    %v3779 = vpop.permute.xlu0 %3778
    %v3783 = vmax.f32 %v3768, %v3775
    %v3784 = vmax.f32 %v3769, %v3777
    %v3785 = vmax.f32 %v3770, %v3779
    %v3788 = vrot.slane %v3783, 4
    %v3789 = vrot.slane %v3784, 4
    %v3790 = vsel %vm345, %v3788, %v3789
    %v3791 = vsel %vm1846, %v3790, 0
    %v3793 = vsel %vm1846, %v3789, 0
    %3795 = vmatprep.subr.mxu0 0.0
    %3796 = vmatpush1.msra.mxu0 %v290
    %3797 = vmatprep.subr.mxu0 0.0
    %3798 = vmatpush1.msra.mxu0 %v291
    %3799 = vmatprep.subr.mxu0 0.0
    %3800 = vmatpush1.msra.mxu0 %v292
    %3801 = vmatprep.subr.mxu0 0.0
    %3802 = vmatpush1.msra.mxu0 %v293
    %3803 = vmatprep.subr.mxu0 0.0
    %3804 = vmatpush1.msra.mxu0 %v294
    %3805 = vmatprep.subr.mxu0 0.0
    %3806 = vmatpush1.msra.mxu0 %v295
    %3807 = vmatprep.subr.mxu0 0.0
    %3808 = vmatpush1.msra.mxu0 %v296
    %3809 = vmatprep.subr.mxu0 0.0
    %3810 = vmatpush1.msra.mxu0 %v297
    %3811 = vmatprep.subr.mxu0 0.0
    %3812 = vmatpush1.msra.mxu0 %v298
    %3813 = vmatprep.subr.mxu0 0.0
    %3814 = vmatpush1.msra.mxu0 %v299
    %3815 = vmatprep.subr.mxu0 0.0
    %3816 = vmatpush1.msra.mxu0 0.0
    %3817 = vmatprep.subr.mxu0 0.0
    %3818 = vmatpush1.msra.mxu0 0.0
    %3819 = vmatprep.subr.mxu0 0.0
    %3820 = vmatpush1.msra.mxu0 0.0
    %3821 = vmatprep.subr.mxu0 0.0
    %3822 = vmatpush1.msra.mxu0 0.0
    %3823 = vmatprep.subr.mxu0 0.0
    %3824 = vmatpush1.msra.mxu0 0.0
    %3825 = vmatprep.subr.mxu0 0.0
    %3826 = vmatpush1.msra.mxu0 0.0
    %3827 = vmatprep.subr.mxu0 0.0
    %3828 = vmatpush1.msra.mxu0 0.0
    %3829 = vmatprep.subr.mxu0 0.0
    %3830 = vmatpush1.msra.mxu0 0.0
    %3831 = vmatprep.subr.mxu0 0.0
    %3832 = vmatpush1.msra.mxu0 0.0
    %3833 = vmatprep.subr.mxu0 0.0
    %3834 = vmatpush1.msra.mxu0 0.0
    %3835 = vmatprep.subr.mxu0 0.0
    %3836 = vmatpush1.msra.mxu0 0.0
    %3837 = vmatprep.subr.mxu0 0.0
    %3838 = vmatpush1.msra.mxu0 0.0
    %3839 = vmatprep.subr.mxu0 0.0
    %3840 = vmatpush1.msra.mxu0 0.0
    %3841 = vmatprep.subr.mxu0 0.0
    %3842 = vmatpush1.msra.mxu0 0.0
    %3843 = vmatprep.subr.mxu0 0.0
    %3844 = vmatpush1.msra.mxu0 0.0
    %3845 = vmatprep.subr.mxu0 0.0
    %3846 = vmatpush1.msra.mxu0 0.0
    %3847 = vmatprep.subr.mxu0 0.0
    %3848 = vmatpush1.msra.mxu0 0.0
    %3849 = vmatprep.subr.mxu0 0.0
    %3850 = vmatpush1.msra.mxu0 0.0
    %3851 = vmatprep.subr.mxu0 0.0
    %3852 = vmatpush1.msra.mxu0 0.0
    %3853 = vmatprep.subr.mxu0 0.0
    %3854 = vmatpush1.msra.mxu0 0.0
    %3855 = vmatprep.subr.mxu0 0.0
    %3856 = vmatpush1.msra.mxu0 0.0
    %3857 = vmatprep.subr.mxu0 0.0
    %3858 = vmatpush1.msra.mxu0 0.0
    %3859 = vmatprep.mubr.f32.mxu0 0.0
    %3860 = vmatmul.mubr.f32.gmra.mrb[0].mxu0 %v3791
    %v3861 = vpop.f32.mrb[0].mxu0
    %v3862 = vadd.f32 0.0, %v3861
    %v3863 = vpop.f32.mrb[0].mxu0
    %3864 = vmatprep.mubr.f32.mxu0 0.0
    %3865 = vmatmul.mubr.f32.gmra.mrb[0].mxu0 %v3793
    %v3866 = vpop.f32.mrb[0].mxu0
    %v3867 = vadd.f32 0.0, %v3866
    %v3868 = vpop.f32.mrb[0].mxu0
    %3869 = vdwg.mxu0
    %v3870 = vsel %vm1846, %v3783, 0
    %v3872 = vsel %vm1846, %v3784, 0
    %3874 = vmatprep.subr.mxu0 0.0
    %3875 = vmatpush1.msra.mxu0 %v279
    %3876 = vmatprep.subr.mxu0 0.0
    %3877 = vmatpush1.msra.mxu0 %v280
    %3878 = vmatprep.subr.mxu0 0.0
    %3879 = vmatpush1.msra.mxu0 %v281
    %3880 = vmatprep.subr.mxu0 0.0
    %3881 = vmatpush1.msra.mxu0 %v282
    %3882 = vmatprep.subr.mxu0 0.0
    %3883 = vmatpush1.msra.mxu0 %v283
    %3884 = vmatprep.subr.mxu0 0.0
    %3885 = vmatpush1.msra.mxu0 %v284
    %3886 = vmatprep.subr.mxu0 0.0
    %3887 = vmatpush1.msra.mxu0 %v285
    %3888 = vmatprep.subr.mxu0 0.0
    %3889 = vmatpush1.msra.mxu0 %v286
    %3890 = vmatprep.subr.mxu0 0.0
    %3891 = vmatpush1.msra.mxu0 %v287
    %3892 = vmatprep.subr.mxu0 0.0
    %3893 = vmatpush1.msra.mxu0 %v288
    %3894 = vmatprep.subr.mxu0 0.0
    %3895 = vmatpush1.msra.mxu0 0.0
    %3896 = vmatprep.subr.mxu0 0.0
    %3897 = vmatpush1.msra.mxu0 0.0
    %3898 = vmatprep.subr.mxu0 0.0
    %3899 = vmatpush1.msra.mxu0 0.0
    %3900 = vmatprep.subr.mxu0 0.0
    %3901 = vmatpush1.msra.mxu0 0.0
    %3902 = vmatprep.subr.mxu0 0.0
    %3903 = vmatpush1.msra.mxu0 0.0
    %3904 = vmatprep.subr.mxu0 0.0
    %3905 = vmatpush1.msra.mxu0 0.0
    %3906 = vmatprep.subr.mxu0 0.0
    %3907 = vmatpush1.msra.mxu0 0.0
    %3908 = vmatprep.subr.mxu0 0.0
    %3909 = vmatpush1.msra.mxu0 0.0
    %3910 = vmatprep.subr.mxu0 0.0
    %3911 = vmatpush1.msra.mxu0 0.0
    %3912 = vmatprep.subr.mxu0 0.0
    %3913 = vmatpush1.msra.mxu0 0.0
    %3914 = vmatprep.subr.mxu0 0.0
    %3915 = vmatpush1.msra.mxu0 0.0
    %3916 = vmatprep.subr.mxu0 0.0
    %3917 = vmatpush1.msra.mxu0 0.0
    %3918 = vmatprep.subr.mxu0 0.0
    %3919 = vmatpush1.msra.mxu0 0.0
    %3920 = vmatprep.subr.mxu0 0.0
    %3921 = vmatpush1.msra.mxu0 0.0
    %3922 = vmatprep.subr.mxu0 0.0
    %3923 = vmatpush1.msra.mxu0 0.0
    %3924 = vmatprep.subr.mxu0 0.0
    %3925 = vmatpush1.msra.mxu0 0.0
    %3926 = vmatprep.subr.mxu0 0.0
    %3927 = vmatpush1.msra.mxu0 0.0
    %3928 = vmatprep.subr.mxu0 0.0
    %3929 = vmatpush1.msra.mxu0 0.0
    %3930 = vmatprep.subr.mxu0 0.0
    %3931 = vmatpush1.msra.mxu0 0.0
    %3932 = vmatprep.subr.mxu0 0.0
    %3933 = vmatpush1.msra.mxu0 0.0
    %3934 = vmatprep.subr.mxu0 0.0
    %3935 = vmatpush1.msra.mxu0 0.0
    %3936 = vmatprep.subr.mxu0 0.0
    %3937 = vmatpush1.msra.mxu0 0.0
    %3938 = vmatprep.mubr.f32.mxu0 0.0
    %3939 = vmatmul.mubr.f32.gmra.mrb[0].mxu0 %v3870
    %v3940 = vpop.f32.mrb[0].mxu0
    %v3941 = vadd.f32 %v3862, %v3940
    %v3942 = vpop.f32.mrb[0].mxu0
    %3943 = vmatprep.mubr.f32.mxu0 0.0
    %3944 = vmatmul.mubr.f32.gmra.mrb[0].mxu0 %v3872
    %v3945 = vpop.f32.mrb[0].mxu0
    %v3946 = vadd.f32 %v3867, %v3945
    %v3947 = vpop.f32.mrb[0].mxu0
    %3948 = vdwg.mxu0
    %v3950 = vsel %vm1846, %v3785, 0
    %3952 = vmatprep.subr.mxu0 0.0
    %3953 = vmatpush1.msra.mxu0 %v301
    %3954 = vmatprep.subr.mxu0 0.0
    %3955 = vmatpush1.msra.mxu0 %v302
    %3956 = vmatprep.subr.mxu0 0.0
    %3957 = vmatpush1.msra.mxu0 %v303
    %3958 = vmatprep.subr.mxu0 0.0
    %3959 = vmatpush1.msra.mxu0 %v304
    %3960 = vmatprep.subr.mxu0 0.0
    %3961 = vmatpush1.msra.mxu0 %v305
    %3962 = vmatprep.subr.mxu0 0.0
    %3963 = vmatpush1.msra.mxu0 %v306
    %3964 = vmatprep.subr.mxu0 0.0
    %3965 = vmatpush1.msra.mxu0 %v307
    %3966 = vmatprep.subr.mxu0 0.0
    %3967 = vmatpush1.msra.mxu0 %v308
    %3968 = vmatprep.subr.mxu0 0.0
    %3969 = vmatpush1.msra.mxu0 %v309
    %3970 = vmatprep.subr.mxu0 0.0
    %3971 = vmatpush1.msra.mxu0 %v310
    %3972 = vmatprep.subr.mxu0 0.0
    %3973 = vmatpush1.msra.mxu0 0.0
    %3974 = vmatprep.subr.mxu0 0.0
    %3975 = vmatpush1.msra.mxu0 0.0
    %3976 = vmatprep.subr.mxu0 0.0
    %3977 = vmatpush1.msra.mxu0 0.0
    %3978 = vmatprep.subr.mxu0 0.0
    %3979 = vmatpush1.msra.mxu0 0.0
    %3980 = vmatprep.subr.mxu0 0.0
    %3981 = vmatpush1.msra.mxu0 0.0
    %3982 = vmatprep.subr.mxu0 0.0
    %3983 = vmatpush1.msra.mxu0 0.0
    %3984 = vmatprep.subr.mxu0 0.0
    %3985 = vmatpush1.msra.mxu0 0.0
    %3986 = vmatprep.subr.mxu0 0.0
    %3987 = vmatpush1.msra.mxu0 0.0
    %3988 = vmatprep.subr.mxu0 0.0
    %3989 = vmatpush1.msra.mxu0 0.0
    %3990 = vmatprep.subr.mxu0 0.0
    %3991 = vmatpush1.msra.mxu0 0.0
    %3992 = vmatprep.subr.mxu0 0.0
    %3993 = vmatpush1.msra.mxu0 0.0
    %3994 = vmatprep.subr.mxu0 0.0
    %3995 = vmatpush1.msra.mxu0 0.0
    %3996 = vmatprep.subr.mxu0 0.0
    %3997 = vmatpush1.msra.mxu0 0.0
    %3998 = vmatprep.subr.mxu0 0.0
    %3999 = vmatpush1.msra.mxu0 0.0
    %4000 = vmatprep.subr.mxu0 0.0
    %4001 = vmatpush1.msra.mxu0 0.0
    %4002 = vmatprep.subr.mxu0 0.0
    %4003 = vmatpush1.msra.mxu0 0.0
    %4004 = vmatprep.subr.mxu0 0.0
    %4005 = vmatpush1.msra.mxu0 0.0
    %4006 = vmatprep.subr.mxu0 0.0
    %4007 = vmatpush1.msra.mxu0 0.0
    %4008 = vmatprep.subr.mxu0 0.0
    %4009 = vmatpush1.msra.mxu0 0.0
    %4010 = vmatprep.subr.mxu0 0.0
    %4011 = vmatpush1.msra.mxu0 0.0
    %4012 = vmatprep.subr.mxu0 0.0
    %4013 = vmatpush1.msra.mxu0 0.0
    %4014 = vmatprep.subr.mxu0 0.0
    %4015 = vmatpush1.msra.mxu0 0.0
    %4016 = vmatprep.mubr.f32.mxu0 0.0
    %4017 = vmatmul.mubr.f32.gmra.mrb[0].mxu0 %v3872
    %v4018 = vpop.f32.mrb[0].mxu0
    %v4019 = vadd.f32 0.0, %v4018
    %v4020 = vpop.f32.mrb[0].mxu0
    %4021 = vmatprep.mubr.f32.mxu0 0.0
    %4022 = vmatmul.mubr.f32.gmra.mrb[0].mxu0 %v3950
    %v4023 = vpop.f32.mrb[0].mxu0
    %v4024 = vadd.f32 0.0, %v4023
    %v4025 = vpop.f32.mrb[0].mxu0
    %4026 = vdwg.mxu0
    %v4027 = vadd.f32 %v3941, %v4019
    %v4028 = vadd.f32 %v3946, %v4024
    %v4029 = vadd.f32 %v4027, %v2089
    %v4030 = vadd.f32 %v4028, %v2089
    %vm4031 = vcmp.ge.f32.partialorder %v4029, 0.0
    %vm4032 = vcmp.ge.f32.partialorder %v4030, 0.0
    %v4033 = vmul.f32 %v4029, 0.1
    %v4034 = vmul.f32 %v4030, 0.1
    %v4035 = vsel %vm4031, %v4029, %v4033
    %v4036 = vsel %vm4032, %v4030, %v4034
    %v4038 = vsel %vm2099, %v4035, 0
    %4040 = vmatprep.subr.mxu0 0.0
    %4041 = vmatpush1.msra.mxu0 %v311
    %4042 = vmatprep.subr.mxu0 0.0
    %4043 = vmatpush1.msra.mxu0 %v2104
    %4044 = vmatprep.subr.mxu0 0.0
    %4045 = vmatpush1.msra.mxu0 0.0
    %4046 = vmatprep.subr.mxu0 0.0
    %4047 = vmatpush1.msra.mxu0 0.0
    %4048 = vmatprep.subr.mxu0 0.0
    %4049 = vmatpush1.msra.mxu0 0.0
    %4050 = vmatprep.subr.mxu0 0.0
    %4051 = vmatpush1.msra.mxu0 0.0
    %4052 = vmatprep.subr.mxu0 0.0
    %4053 = vmatpush1.msra.mxu0 0.0
    %4054 = vmatprep.subr.mxu0 0.0
    %4055 = vmatpush1.msra.mxu0 0.0
    %4056 = vmatprep.subr.mxu0 0.0
    %4057 = vmatpush1.msra.mxu0 0.0
    %4058 = vmatprep.subr.mxu0 0.0
    %4059 = vmatpush1.msra.mxu0 0.0
    %4060 = vmatprep.subr.mxu0 0.0
    %4061 = vmatpush1.msra.mxu0 0.0
    %4062 = vmatprep.subr.mxu0 0.0
    %4063 = vmatpush1.msra.mxu0 0.0
    %4064 = vmatprep.subr.mxu0 0.0
    %4065 = vmatpush1.msra.mxu0 0.0
    %4066 = vmatprep.subr.mxu0 0.0
    %4067 = vmatpush1.msra.mxu0 0.0
    %4068 = vmatprep.subr.mxu0 0.0
    %4069 = vmatpush1.msra.mxu0 0.0
    %4070 = vmatprep.subr.mxu0 0.0
    %4071 = vmatpush1.msra.mxu0 0.0
    %4072 = vmatprep.subr.mxu0 0.0
    %4073 = vmatpush1.msra.mxu0 0.0
    %4074 = vmatprep.subr.mxu0 0.0
    %4075 = vmatpush1.msra.mxu0 0.0
    %4076 = vmatprep.subr.mxu0 0.0
    %4077 = vmatpush1.msra.mxu0 0.0
    %4078 = vmatprep.subr.mxu0 0.0
    %4079 = vmatpush1.msra.mxu0 0.0
    %4080 = vmatprep.subr.mxu0 0.0
    %4081 = vmatpush1.msra.mxu0 0.0
    %4082 = vmatprep.subr.mxu0 0.0
    %4083 = vmatpush1.msra.mxu0 0.0
    %4084 = vmatprep.subr.mxu0 0.0
    %4085 = vmatpush1.msra.mxu0 0.0
    %4086 = vmatprep.subr.mxu0 0.0
    %4087 = vmatpush1.msra.mxu0 0.0
    %4088 = vmatprep.subr.mxu0 0.0
    %4089 = vmatpush1.msra.mxu0 0.0
    %4090 = vmatprep.subr.mxu0 0.0
    %4091 = vmatpush1.msra.mxu0 0.0
    %4092 = vmatprep.subr.mxu0 0.0
    %4093 = vmatpush1.msra.mxu0 0.0
    %4094 = vmatprep.subr.mxu0 0.0
    %4095 = vmatpush1.msra.mxu0 0.0
    %4096 = vmatprep.subr.mxu0 0.0
    %4097 = vmatpush1.msra.mxu0 0.0
    %4098 = vmatprep.subr.mxu0 0.0
    %4099 = vmatpush1.msra.mxu0 0.0
    %4100 = vmatprep.subr.mxu0 0.0
    %4101 = vmatpush1.msra.mxu0 0.0
    %4102 = vmatprep.subr.mxu0 0.0
    %4103 = vmatpush1.msra.mxu0 0.0
    %4104 = vmatprep.mubr.f32.mxu0 0.0
    %4105 = vmatmul.mubr.f32.gmra.mrb[0].mxu0 %v4038
    %v4106 = vpop.f32.mrb[0].mxu0
    %v4107 = vadd.f32 0.0, %v4106
    %v4108 = vpop.f32.mrb[0].mxu0
    %4109 = vdwg.mxu0
    %v4110 = vadd.f32 %v319, %v4107
    %v4111 = vrot.slane %v4035, 4
    %v4112 = vsel %vm2099, %v4111, 0
    %4114 = vmatprep.subr.mxu0 0.0
    %4115 = vmatpush1.msra.mxu0 %v314
    %4116 = vmatprep.subr.mxu0 0.0
    %4117 = vmatpush1.msra.mxu0 %v2181
    %4118 = vmatprep.subr.mxu0 0.0
    %4119 = vmatpush1.msra.mxu0 0.0
    %4120 = vmatprep.subr.mxu0 0.0
    %4121 = vmatpush1.msra.mxu0 0.0
    %4122 = vmatprep.subr.mxu0 0.0
    %4123 = vmatpush1.msra.mxu0 0.0
    %4124 = vmatprep.subr.mxu0 0.0
    %4125 = vmatpush1.msra.mxu0 0.0
    %4126 = vmatprep.subr.mxu0 0.0
    %4127 = vmatpush1.msra.mxu0 0.0
    %4128 = vmatprep.subr.mxu0 0.0
    %4129 = vmatpush1.msra.mxu0 0.0
    %4130 = vmatprep.subr.mxu0 0.0
    %4131 = vmatpush1.msra.mxu0 0.0
    %4132 = vmatprep.subr.mxu0 0.0
    %4133 = vmatpush1.msra.mxu0 0.0
    %4134 = vmatprep.subr.mxu0 0.0
    %4135 = vmatpush1.msra.mxu0 0.0
    %4136 = vmatprep.subr.mxu0 0.0
    %4137 = vmatpush1.msra.mxu0 0.0
    %4138 = vmatprep.subr.mxu0 0.0
    %4139 = vmatpush1.msra.mxu0 0.0
    %4140 = vmatprep.subr.mxu0 0.0
    %4141 = vmatpush1.msra.mxu0 0.0
    %4142 = vmatprep.subr.mxu0 0.0
    %4143 = vmatpush1.msra.mxu0 0.0
    %4144 = vmatprep.subr.mxu0 0.0
    %4145 = vmatpush1.msra.mxu0 0.0
    %4146 = vmatprep.subr.mxu0 0.0
    %4147 = vmatpush1.msra.mxu0 0.0
    %4148 = vmatprep.subr.mxu0 0.0
    %4149 = vmatpush1.msra.mxu0 0.0
    %4150 = vmatprep.subr.mxu0 0.0
    %4151 = vmatpush1.msra.mxu0 0.0
    %4152 = vmatprep.subr.mxu0 0.0
    %4153 = vmatpush1.msra.mxu0 0.0
    %4154 = vmatprep.subr.mxu0 0.0
    %4155 = vmatpush1.msra.mxu0 0.0
    %4156 = vmatprep.subr.mxu0 0.0
    %4157 = vmatpush1.msra.mxu0 0.0
    %4158 = vmatprep.subr.mxu0 0.0
    %4159 = vmatpush1.msra.mxu0 0.0
    %4160 = vmatprep.subr.mxu0 0.0
    %4161 = vmatpush1.msra.mxu0 0.0
    %4162 = vmatprep.subr.mxu0 0.0
    %4163 = vmatpush1.msra.mxu0 0.0
    %4164 = vmatprep.subr.mxu0 0.0
    %4165 = vmatpush1.msra.mxu0 0.0
    %4166 = vmatprep.subr.mxu0 0.0
    %4167 = vmatpush1.msra.mxu0 0.0
    %4168 = vmatprep.subr.mxu0 0.0
    %4169 = vmatpush1.msra.mxu0 0.0
    %4170 = vmatprep.subr.mxu0 0.0
    %4171 = vmatpush1.msra.mxu0 0.0
    %4172 = vmatprep.subr.mxu0 0.0
    %4173 = vmatpush1.msra.mxu0 0.0
    %4174 = vmatprep.subr.mxu0 0.0
    %4175 = vmatpush1.msra.mxu0 0.0
    %4176 = vmatprep.subr.mxu0 0.0
    %4177 = vmatpush1.msra.mxu0 0.0
    %4178 = vmatprep.mubr.f32.mxu0 0.0
    %4179 = vmatmul.mubr.f32.gmra.mrb[0].mxu0 %v4112
    %v4180 = vpop.f32.mrb[0].mxu0
    %v4181 = vadd.f32 0.0, %v4180
    %v4182 = vpop.f32.mrb[0].mxu0
    %4183 = vdwg.mxu0
    %v4184 = vadd.f32 %v4110, %v4181
    %v4186 = vsel %vm2099, %v4036, 0
    %4188 = vmatprep.subr.mxu0 0.0
    %4189 = vmatpush1.msra.mxu0 %v317
    %4190 = vmatprep.subr.mxu0 0.0
    %4191 = vmatpush1.msra.mxu0 %v2258
    %4192 = vmatprep.subr.mxu0 0.0
    %4193 = vmatpush1.msra.mxu0 0.0
    %4194 = vmatprep.subr.mxu0 0.0
    %4195 = vmatpush1.msra.mxu0 0.0
    %4196 = vmatprep.subr.mxu0 0.0
    %4197 = vmatpush1.msra.mxu0 0.0
    %4198 = vmatprep.subr.mxu0 0.0
    %4199 = vmatpush1.msra.mxu0 0.0
    %4200 = vmatprep.subr.mxu0 0.0
    %4201 = vmatpush1.msra.mxu0 0.0
    %4202 = vmatprep.subr.mxu0 0.0
    %4203 = vmatpush1.msra.mxu0 0.0
    %4204 = vmatprep.subr.mxu0 0.0
    %4205 = vmatpush1.msra.mxu0 0.0
    %4206 = vmatprep.subr.mxu0 0.0
    %4207 = vmatpush1.msra.mxu0 0.0
    %4208 = vmatprep.subr.mxu0 0.0
    %4209 = vmatpush1.msra.mxu0 0.0
    %4210 = vmatprep.subr.mxu0 0.0
    %4211 = vmatpush1.msra.mxu0 0.0
    %4212 = vmatprep.subr.mxu0 0.0
    %4213 = vmatpush1.msra.mxu0 0.0
    %4214 = vmatprep.subr.mxu0 0.0
    %4215 = vmatpush1.msra.mxu0 0.0
    %4216 = vmatprep.subr.mxu0 0.0
    %4217 = vmatpush1.msra.mxu0 0.0
    %4218 = vmatprep.subr.mxu0 0.0
    %4219 = vmatpush1.msra.mxu0 0.0
    %4220 = vmatprep.subr.mxu0 0.0
    %4221 = vmatpush1.msra.mxu0 0.0
    %4222 = vmatprep.subr.mxu0 0.0
    %4223 = vmatpush1.msra.mxu0 0.0
    %4224 = vmatprep.subr.mxu0 0.0
    %4225 = vmatpush1.msra.mxu0 0.0
    %4226 = vmatprep.subr.mxu0 0.0
    %4227 = vmatpush1.msra.mxu0 0.0
    %4228 = vmatprep.subr.mxu0 0.0
    %4229 = vmatpush1.msra.mxu0 0.0
    %4230 = vmatprep.subr.mxu0 0.0
    %4231 = vmatpush1.msra.mxu0 0.0
    %4232 = vmatprep.subr.mxu0 0.0
    %4233 = vmatpush1.msra.mxu0 0.0
    %4234 = vmatprep.subr.mxu0 0.0
    %4235 = vmatpush1.msra.mxu0 0.0
    %4236 = vmatprep.subr.mxu0 0.0
    %4237 = vmatpush1.msra.mxu0 0.0
    %4238 = vmatprep.subr.mxu0 0.0
    %4239 = vmatpush1.msra.mxu0 0.0
    %4240 = vmatprep.subr.mxu0 0.0
    %4241 = vmatpush1.msra.mxu0 0.0
    %4242 = vmatprep.subr.mxu0 0.0
    %4243 = vmatpush1.msra.mxu0 0.0
    %4244 = vmatprep.subr.mxu0 0.0
    %4245 = vmatpush1.msra.mxu0 0.0
    %4246 = vmatprep.subr.mxu0 0.0
    %4247 = vmatpush1.msra.mxu0 0.0
    %4248 = vmatprep.subr.mxu0 0.0
    %4249 = vmatpush1.msra.mxu0 0.0
    %4250 = vmatprep.subr.mxu0 0.0
    %4251 = vmatpush1.msra.mxu0 0.0
    %4252 = vmatprep.mubr.f32.mxu0 0.0
    %4253 = vmatmul.mubr.f32.gmra.mrb[0].mxu0 %v4186
    %v4254 = vpop.f32.mrb[0].mxu0
    %v4255 = vadd.f32 0.0, %v4254
    %v4256 = vpop.f32.mrb[0].mxu0
    %4257 = vdwg.mxu0
    %v4258 = vadd.f32 %v4184, %v4255
    %4259 = vst.msk [vmem:[#allocation8 + $0x1] sm:$0x1] %vm2331, %v4258
    // Predicated region
    $region50: #{_lambda_.1} parent=1 // pred_check
      _
    $region51: #{_lambda_.1} parent=1 // pred_check_branch
      %4261 = sbr.rel (0) target = $region53
    $region52: #{_lambda_.1} parent=1 // pred_region
      %s4263 = ssub.s32 32, 32
      %4264 = vsyncadd [#allocation4], %s4263
      %s4266 = sshll.u32 [#allocation8], 4
      %s4267 = int_to_ptr.vmem [resolvable:$true] %s4266
      %4269 = dma.vmem_to_hbm [thread:$0]  %s4267, 32, %s9, [#allocation4]
    $region53: #{_lambda_.1} parent=1 // pred_fallthru
      _
    // Predicated region
    $region54: #{_lambda_.1} parent=1 // pred_check
      _
    $region55: #{_lambda_.1} parent=1 // pred_check_branch
      %4271 = sbr.rel (0) target = $region57
    $region56: #{_lambda_.1} parent=1 // pred_region
      %4272 = dma.done [#allocation4], 32
    $region57: #{_lambda_.1} parent=1 // pred_fallthru
      _
    %4273 = vsyncpa [#allocation3], 1
    %4274 = vsyncpa [#allocation6], 1
    %4275 = vsyncpa [#allocation4], 1

</llo_original>
